<compile_context>
chip_gen: v6e
topology: v6e:2x2x1
jax: 0.10.0
libtpu: 0.0.40
codegen_flags: <defaults>
</compile_context>

<pallas_src>
import functools

import jax
import jax.numpy as jnp
from jax.experimental import pallas as pl
from jax.experimental.pallas import tpu as pltpu


# --------------------------------------------------------------------------- #
# Kernel A: fused QKV projection (K-tiled over E) + rotary embedding.
# Grid: (B, S/s_tile, E/tk_e); reduction axis (E) is last / "arbitrary".
# --------------------------------------------------------------------------- #
def _qkv_rope_kernel(x_ref, cos_ref, sin_ref, w_ref,
                     q_ref, k_ref, v_ref, acc_ref,
                     *, num_heads, num_kv_heads, head_dim):
    H, G, D = num_heads, num_kv_heads, head_dim
    half = D // 2
    kstep = pl.program_id(2)

    @pl.when(kstep == 0)
    def _():
        acc_ref[...] = jnp.zeros(acc_ref.shape, acc_ref.dtype)

    # bf16 x bf16 -> f32 accumulation on the MXU.
    acc_ref[...] += jnp.dot(x_ref[0], w_ref[...],
                            preferred_element_type=jnp.float32)

    @pl.when(kstep == pl.num_programs(2) - 1)
    def _():
        qkv = acc_ref[...]                       # (s_tile, (H+2G)*D) f32
        s_tile = qkv.shape[0]
        cos = cos_ref[0]                         # (1, D) f32
        sin = sin_ref[0]
        scale = D ** -0.5

        def rope(flat, n, c, s):                 # flat: (s_tile, n*D)
            t = flat.reshape(s_tile, n, D)       # head chunks == lane tiles (D=128)
            rot = jnp.concatenate([-t[..., half:], t[..., :half]], axis=-1)
            return (t * c + rot * s).reshape(s_tile, n * D)

        q_flat = qkv[:, : H * D]
        k_flat = qkv[:, H * D:(H + G) * D]
        v_flat = qkv[:, (H + G) * D:]

        # Fold 1/sqrt(D) into q's cos/sin (cheaper than scaling the scores).
        q_flat = rope(q_flat, H, cos * scale, sin * scale)
        k_flat = rope(k_flat, G, cos, sin)

        q_ref[0] = q_flat.astype(q_ref.dtype)    # (s_tile, H*D) bf16, lane dense
        k_ref[0] = k_flat.astype(k_ref.dtype)    # (s_tile, G*D)
        v_ref[0] = v_flat.astype(v_ref.dtype)    # (s_tile, G*D)


# --------------------------------------------------------------------------- #
# Kernel B: flash attention with online softmax.
# Grid: (B, G, S/q_tile, S/kv_tile); kv axis is the reduction / "arbitrary" one.
# Head-group selection happens in the BlockSpec index_map (contiguous columns),
# so the kernel body never gathers / stacks / transposes heads.
# --------------------------------------------------------------------------- #
def _flash_attn_kernel(q_ref, k_ref, v_ref, *rest,
                       num_heads, num_kv_heads, head_dim,
                       q_tile, kv_tile, causal, has_mask):
    if has_mask:
        mask_ref, o_ref, m_s, l_s, acc_s = rest
    else:
        o_ref, m_s, l_s, acc_s = rest
        mask_ref = None

    D = head_dim
    R = num_heads // num_kv_heads            # query heads per kv group
    qi = pl.program_id(2)
    ki = pl.program_id(3)

    @pl.when(ki == 0)
    def _():
        m_s[...] = jnp.full(m_s.shape, -jnp.inf, m_s.dtype)
        l_s[...] = jnp.zeros(l_s.shape, l_s.dtype)
        acc_s[...] = jnp.zeros(acc_s.shape, acc_s.dtype)

    def update():
        qb = q_ref[0]                         # (q_tile, R*D) bf16
        k = k_ref[0]                          # (kv_tile, D)  bf16
        v = v_ref[0]                          # (kv_tile, D)  bf16

        if has_mask:
            bias = mask_ref[0, 0].astype(jnp.float32)            # (q_tile, kv_tile)
            keep = None
        elif causal:
            row = qi * q_tile + jax.lax.broadcasted_iota(
                jnp.int32, (q_tile, kv_tile), 0)
            col = ki * kv_tile + jax.lax.broadcasted_iota(
                jnp.int32, (q_tile, kv_tile), 1)
            keep = row >= col
            bias = None
        else:
            keep = bias = None

        # R small; each head is a lane-aligned static slice feeding a full-size
        # MXU matmul (M=q_tile, K=D, N=kv_tile) that reuses the group's K/V block.
        for r in range(R):
            q_h = qb[:, r * D:(r + 1) * D]                        # (q_tile, D)
            s = jnp.einsum('qd,kd->qk', q_h, k,
                           preferred_element_type=jnp.float32)    # (q_tile, kv_tile)
            if bias is not None:
                s = s + bias
            elif keep is not None:
                s = jnp.where(keep, s, -1e9)

            m_prev = m_s[r]                                       # (q_tile, 1)
            m_new = jnp.maximum(m_prev, jnp.max(s, axis=-1, keepdims=True))
            alpha = jnp.exp(m_prev - m_new)
            p = jnp.exp(s - m_new)
            l_s[r] = alpha * l_s[r] + jnp.sum(p, axis=-1, keepdims=True)
            acc_s[r] = alpha * acc_s[r] + jnp.dot(
                p.astype(v.dtype), v, preferred_element_type=jnp.float32)
            m_s[r] = m_new

    if causal and not has_mask:
        # Skip kv tiles that lie entirely above the causal diagonal
        # (kv tile 0 is never skipped, so state is always initialized/used).
        pl.when((qi + 1) * q_tile > ki * kv_tile)(update)
    else:
        update()

    @pl.when(ki == pl.num_programs(3) - 1)
    def _():
        for r in range(R):
            attn_r = acc_s[r] * pl.reciprocal(l_s[r], approx=True)   # EUP recip
            o_ref[0, :, r * D:(r + 1) * D] = attn_r.astype(o_ref.dtype)


# --------------------------------------------------------------------------- #
# Kernel C: output projection, K-tiled over H*D.
# Grid: (B, S/s_tile, (H*D)/tk_hd); reduction axis last.
# --------------------------------------------------------------------------- #
def _out_proj_kernel(a_ref, w_ref, o_ref, acc_ref):
    kstep = pl.program_id(2)

    @pl.when(kstep == 0)
    def _():
        acc_ref[...] = jnp.zeros(acc_ref.shape, acc_ref.dtype)

    acc_ref[...] += jnp.dot(a_ref[0], w_ref[...],
                            preferred_element_type=jnp.float32)

    @pl.when(kstep == pl.num_programs(2) - 1)
    def _():
        o_ref[0] = acc_ref[...].astype(o_ref.dtype)


# --------------------------------------------------------------------------- #
# Host-side wrapper.
# --------------------------------------------------------------------------- #
def _pick_tile(dim, target):
    """Use `target` if it cleanly tiles `dim`, otherwise fall back to `dim`."""
    return target if (dim > target and dim % target == 0) else dim


def _nbytes(shape, dtype):
    n = 1
    for d in shape:
        n *= d
    return n * jnp.dtype(dtype).itemsize


def _vmem_limit(blocks, scratch_bytes=0):
    """Scoped-VMEM budget: double-buffered pipeline blocks + scratch + headroom.

    Defaults are only 16 MiB (v5e) / 32 MiB (v6e/v7x); clamp to 64 MiB so the
    request also stays within v7x physical VMEM.
    """
    need = 2 * sum(_nbytes(s, d) for s, d in blocks) + scratch_bytes + (4 << 20)
    return int(min(max(need, 32 << 20), 64 << 20))


def llama_attention_forward(x, cos, sin, wq, wk, wv, wo, *,
                            num_heads, num_kv_heads, mask=None, causal=False,
                            q_tile_target=256, kv_tile_target=256,
                            k_tile_target=512):
    """LlamaAttention forward (GQA + rotary, attention_dropout == 0).

    x   : (B, S, E) float32/bfloat16     cos/sin : (B, 1, head_dim)
    wq  : (H*D, E), wk/wv : (G*D, E), wo : (E, H*D)   -- torch nn.Linear layout.
    mask: optional (B, 1, S, S) additive mask (takes precedence over `causal`);
          `causal=True` builds the causal mask in-kernel (no HBM mask stream).
    Tile targets default to 256 / 256 / 512 so the score & PV matmuls feed the
    256x256 MXU (v6e/v7x) and per-step VMEM stays well under 64 MiB (v7x).
    """
    B, S, E = x.shape
    H, G = num_heads, num_kv_heads
    D = E // H
    R = H // G
    HD = H * D
    QKVD = (H + 2 * G) * D

    s_tile = _pick_tile(S, q_tile_target)
    q_tile = _pick_tile(S, q_tile_target)
    kv_tile = _pick_tile(S, kv_tile_target)
    tk_e = _pick_tile(E, k_tile_target)
    tk_hd = _pick_tile(HD, k_tile_target)

    # bf16 streaming of activations and weights halves HBM traffic (biggest win on
    # v5e's ~0.8 TB/s); all in-kernel math that matters stays f32.
    x_bf = x.astype(jnp.bfloat16)
    wqkv_t = jnp.concatenate([wq.T, wk.T, wv.T], axis=1).astype(jnp.bfloat16)  # (E, QKVD)
    wo_t = wo.T.astype(jnp.bfloat16)                                           # (HD, E)

    # ---------------- Kernel A: QKV projection + RoPE ---------------- #
    vmem_a = _vmem_limit(
        [((1, s_tile, tk_e), jnp.bfloat16), ((tk_e, QKVD), jnp.bfloat16),
         ((1, 1, D), jnp.float32), ((1, 1, D), jnp.float32),
         ((1, s_tile, HD), jnp.bfloat16), ((1, s_tile, G * D), jnp.bfloat16),
         ((1, s_tile, G * D), jnp.bfloat16)],
        scratch_bytes=_nbytes((s_tile, QKVD), jnp.float32))
    q_flat, k_flat, v_flat = pl.pallas_call(
        functools.partial(_qkv_rope_kernel,
                          num_heads=H, num_kv_heads=G, head_dim=D),
        out_shape=[jax.ShapeDtypeStruct((B, S, HD), jnp.bfloat16),
                   jax.ShapeDtypeStruct((B, S, G * D), jnp.bfloat16),
                   jax.ShapeDtypeStruct((B, S, G * D), jnp.bfloat16)],
        grid_spec=pltpu.PrefetchScalarGridSpec(
            num_scalar_prefetch=0,
            grid=(B, S // s_tile, E // tk_e),
            in_specs=[
                pl.BlockSpec((1, s_tile, tk_e), lambda b, s, k: (b, s, k)),
                pl.BlockSpec((1, 1, D), lambda b, s, k: (b, 0, 0)),
                pl.BlockSpec((1, 1, D), lambda b, s, k: (b, 0, 0)),
                pl.BlockSpec((tk_e, QKVD), lambda b, s, k: (k, 0)),
            ],
            out_specs=[
                pl.BlockSpec((1, s_tile, HD), lambda b, s, k: (b, s, 0)),
                pl.BlockSpec((1, s_tile, G * D), lambda b, s, k: (b, s, 0)),
                pl.BlockSpec((1, s_tile, G * D), lambda b, s, k: (b, s, 0)),
            ],
            scratch_shapes=[pltpu.VMEM((s_tile, QKVD), jnp.float32)]),
        compiler_params=pltpu.CompilerParams(
            dimension_semantics=("parallel", "parallel", "arbitrary"),
            vmem_limit_bytes=vmem_a),
    )(x_bf, cos, sin, wqkv_t)

    # ---------------- Kernel B: flash attention ---------------- #
    has_mask = mask is not None
    in_specs = [
        pl.BlockSpec((1, q_tile, R * D), lambda b, g, i, j: (b, i, g)),
        pl.BlockSpec((1, kv_tile, D), lambda b, g, i, j: (b, j, g)),
        pl.BlockSpec((1, kv_tile, D), lambda b, g, i, j: (b, j, g)),
    ]
    inputs = [q_flat, k_flat, v_flat]
    blocks_b = [((1, q_tile, R * D), jnp.bfloat16),
                ((1, kv_tile, D), jnp.bfloat16),
                ((1, kv_tile, D), jnp.bfloat16),
                ((1, q_tile, R * D), jnp.bfloat16)]
    if has_mask:
        in_specs.append(
            pl.BlockSpec((1, 1, q_tile, kv_tile), lambda b, g, i, j: (b, 0, i, j)))
        inputs.append(mask)
        blocks_b.append(((1, 1, q_tile, kv_tile), mask.dtype))
    scratch_b = (2 * _nbytes((R, q_tile, 128), jnp.float32)      # m/l pad lanes to 128
                 + _nbytes((R, q_tile, D), jnp.float32))
    vmem_b = _vmem_limit(blocks_b, scratch_bytes=scratch_b)

    attn_flat = pl.pallas_call(
        functools.partial(_flash_attn_kernel,
                          num_heads=H, num_kv_heads=G, head_dim=D,
                          q_tile=q_tile, kv_tile=kv_tile,
                          causal=causal, has_mask=has_mask),
        out_shape=jax.ShapeDtypeStruct((B, S, HD), jnp.bfloat16),
        grid_spec=pltpu.PrefetchScalarGridSpec(
            num_scalar_prefetch=0,
            grid=(B, G, S // q_tile, S // kv_tile),
            in_specs=in_specs,
            out_specs=pl.BlockSpec((1, q_tile, R * D), lambda b, g, i, j: (b, i, g)),
            scratch_shapes=[pltpu.VMEM((R, q_tile, 1), jnp.float32),
                            pltpu.VMEM((R, q_tile, 1), jnp.float32),
                            pltpu.VMEM((R, q_tile, D), jnp.float32)]),
        compiler_params=pltpu.CompilerParams(
            dimension_semantics=("parallel", "parallel", "parallel", "arbitrary"),
            vmem_limit_bytes=vmem_b),
    )(*inputs)

    # ---------------- Kernel C: output projection ---------------- #
    vmem_c = _vmem_limit(
        [((1, s_tile, tk_hd), jnp.bfloat16), ((tk_hd, E), jnp.bfloat16),
         ((1, s_tile, E), x.dtype)],
        scratch_bytes=_nbytes((s_tile, E), jnp.float32))
    out = pl.pallas_call(
        _out_proj_kernel,
        out_shape=jax.ShapeDtypeStruct((B, S, E), x.dtype),
        grid_spec=pltpu.PrefetchScalarGridSpec(
            num_scalar_prefetch=0,
            grid=(B, S // s_tile, HD // tk_hd),
            in_specs=[pl.BlockSpec((1, s_tile, tk_hd), lambda b, s, k: (b, s, k)),
                      pl.BlockSpec((tk_hd, E), lambda b, s, k: (k, 0))],
            out_specs=pl.BlockSpec((1, s_tile, E), lambda b, s, k: (b, s, 0)),
            scratch_shapes=[pltpu.VMEM((s_tile, E), jnp.float32)]),
        compiler_params=pltpu.CompilerParams(
            dimension_semantics=("parallel", "parallel", "arbitrary"),
            vmem_limit_bytes=vmem_c),
    )(attn_flat, wo_t)
    return out


# --------------------------------------------------------------------------- #
# Pure-JAX f32 mirror of the PyTorch forward (same broadcast semantics).
# --------------------------------------------------------------------------- #
def reference_forward(x, cos, sin, mask, wq, wk, wv, wo,
                      *, num_heads, num_kv_heads):
    B, S, E = x.shape
    D = E // num_heads
    n_rep = num_heads // num_kv_heads

    q = (x @ wq.T).reshape(B, S, num_heads, D).transpose(0, 2, 1, 3)
    k = (x @ wk.T).reshape(B, S, num_kv_heads, D).transpose(0, 2, 1, 3)
    v = (x @ wv.T).reshape(B, S, num_kv_heads, D).transpose(0, 2, 1, 3)

    cos_u = cos[:, :, None, :]   # unsqueeze(2)
    sin_u = sin[:, :, None, :]

    def rot_half(t):
        return jnp.concatenate([-t[..., D // 2:], t[..., :D // 2]], axis=-1)

    q = q * cos_u + rot_half(q) * sin_u
    k = k * cos_u + rot_half(k) * sin_u

    k = jnp.repeat(k, n_rep, axis=1)   # repeat_kv
    v = jnp.repeat(v, n_rep, axis=1)

    w = jnp.einsum('bhqd,bhkd->bhqk', q, k) * (D ** -0.5) + mask
    p = jax.nn.softmax(w, axis=-1)
    o = jnp.einsum('bhqk,bhkd->bhqd', p, v)
    o = o.transpose(0, 2, 1, 3).reshape(B, S, num_heads * D)
    return o @ wo.T


if __name__ == "__main__":
    # Small LlamaConfig-consistent shapes (head_dim kept at the native 128 so all
    # blocks are lane aligned); tiles chosen so the flash grid has multiple q and
    # kv tiles and the projections have multiple K tiles (exercises init /
    # accumulate / finalize and the causal tile skip).
    B, S = 2, 64
    num_heads = 4
    num_kv_heads = 2
    head_dim = 128
    hidden_size = num_heads * head_dim          # 512
    init_range = 0.02

    key = jax.random.PRNGKey(0)
    k_x, k_q, k_k, k_v, k_o, k_ang = jax.random.split(key, 6)

    x = jax.random.normal(k_x, (B, S, hidden_size), dtype=jnp.float32)

    # nn.Linear weights: (out_features, in_features), no bias.
    wq = init_range * jax.random.normal(k_q, (num_heads * head_dim, hidden_size), jnp.float32)
    wk = init_range * jax.random.normal(k_k, (num_kv_heads * head_dim, hidden_size), jnp.float32)
    wv = init_range * jax.random.normal(k_v, (num_kv_heads * head_dim, hidden_size), jnp.float32)
    wo = init_range * jax.random.normal(k_o, (hidden_size, num_heads * head_dim), jnp.float32)

    # Position embeddings (cos, sin) -- see layout note at top of file.
    angles = jax.random.uniform(k_ang, (B, 1, head_dim), jnp.float32, 0.0, 3.14159)
    cos = jnp.cos(angles)
    sin = jnp.sin(angles)

    # Reference uses an explicit additive causal mask (f32 math end to end).
    keep = jnp.tril(jnp.ones((S, S), dtype=bool))
    add_mask = jnp.where(keep, 0.0, -1e9).astype(jnp.float32)
    add_mask = jnp.broadcast_to(add_mask[None, None], (B, 1, S, S))
    ref = reference_forward(x, cos, sin, add_mask, wq, wk, wv, wo,
                            num_heads=num_heads, num_kv_heads=num_kv_heads)

    # 1) In-kernel causal path: 2 q-tiles x 2 kv-tiles, upper-triangle tile skipped,
    #    no (B,1,S,S) mask streamed from HBM.
    out_causal = llama_attention_forward(
        x, cos, sin, wq, wk, wv, wo,
        num_heads=num_heads, num_kv_heads=num_kv_heads, causal=True,
        q_tile_target=32, kv_tile_target=32, k_tile_target=256)
    out_causal = jax.block_until_ready(out_causal)

    # 2) Explicit additive-mask path (module-parity branch; kv tile spans S so the
    #    streamed mask block keeps a full lane dimension).
    out_masked = llama_attention_forward(
        x, cos, sin, wq, wk, wv, wo,
        num_heads=num_heads, num_kv_heads=num_kv_heads, mask=add_mask,
        q_tile_target=32, kv_tile_target=S, k_tile_target=256)
    out_masked = jax.block_until_ready(out_masked)

    assert out_causal.shape == (B, S, hidden_size)
    assert out_masked.shape == (B, S, hidden_size)
    # bf16 MXU operands (f32 accumulation) + approx reciprocal -> loosened tolerance.
    err_c = float(jnp.max(jnp.abs(out_causal - ref)))
    err_m = float(jnp.max(jnp.abs(out_masked - ref)))
    assert jnp.allclose(out_causal, ref, atol=1e-2, rtol=5e-2), err_c
    assert jnp.allclose(out_masked, ref, atol=1e-2, rtol=5e-2), err_m

    print("KERNEL_OK")
</pallas_src>

<mosaic_0001>
module attributes {stable_mosaic.version = 11 : i64} {
  func.func @_qkv_rope_kernel(%arg0: i32, %arg1: i32, %arg2: i32, %arg3: memref<1x32x256xbf16, #tpu.memory_space<vmem>>, %arg4: memref<1x1x128xf32, #tpu.memory_space<vmem>>, %arg5: memref<1x1x128xf32, #tpu.memory_space<vmem>>, %arg6: memref<256x1024xbf16, #tpu.memory_space<vmem>>, %arg7: memref<1x32x512xbf16, #tpu.memory_space<vmem>>, %arg8: memref<1x32x256xbf16, #tpu.memory_space<vmem>>, %arg9: memref<1x32x256xbf16, #tpu.memory_space<vmem>>, %arg10: memref<32x1024xf32, #tpu.memory_space<vmem>>) attributes {dimension_semantics = [#tpu.dimension_semantics<parallel>, #tpu.dimension_semantics<parallel>, #tpu.dimension_semantics<arbitrary>], iteration_bounds = array<i64: 2, 2, 2>, scalar_prefetch = 0 : i64, scratch_operands = 1 : i64, tpu.core_type = #tpu.core_type<tc>, window_params = [{transform_indices = @transform_0, window_bounds = array<i64: 1, 32, 256>}, {transform_indices = @transform_1, window_bounds = array<i64: 1, 1, 128>}, {transform_indices = @transform_2, window_bounds = array<i64: 1, 1, 128>}, {transform_indices = @transform_3, window_bounds = array<i64: 256, 1024>}, {transform_indices = @transform_4, window_bounds = array<i64: 1, 32, 512>}, {transform_indices = @transform_5, window_bounds = array<i64: 1, 32, 256>}, {transform_indices = @transform_6, window_bounds = array<i64: 1, 32, 256>}]} {
    %c0_i32 = arith.constant 0 : i32
    %0 = arith.cmpi eq, %arg2, %c0_i32 : i32
    %1 = arith.extui %0 : i1 to i32
    %c0_i32_0 = arith.constant 0 : i32
    %2 = arith.cmpi ne, %1, %c0_i32_0 : i32
    scf.if %2 {
      %cst_10 = arith.constant 0.000000e+00 : f32
      %13 = vector.broadcast %cst_10 : f32 to vector<32x1024xf32>
      %c0_11 = arith.constant 0 : index
      %c0_12 = arith.constant 0 : index
      %14 = vector.load %arg10[%c0_11, %c0_12] : memref<32x1024xf32, #tpu.memory_space<vmem>>, vector<32x1024xf32>
      tpu.vector_store %arg10[%c0_11, %c0_12], %13 {strides = array<i32>} : memref<32x1024xf32, #tpu.memory_space<vmem>>, vector<32x1024xf32>,
    } else {
    }
    %c0 = arith.constant 0 : index
    %c0_1 = arith.constant 0 : index
    %3 = vector.load %arg10[%c0, %c0_1] : memref<32x1024xf32, #tpu.memory_space<vmem>>, vector<32x1024xf32>
    %c0_2 = arith.constant 0 : index
    %c0_3 = arith.constant 0 : index
    %c0_4 = arith.constant 0 : index
    %4 = vector.load %arg3[%c0_2, %c0_3, %c0_4] : memref<1x32x256xbf16, #tpu.memory_space<vmem>>, vector<1x32x256xbf16>
    %5 = vector.shape_cast %4 : vector<1x32x256xbf16> to vector<32x256xbf16>
    %c0_5 = arith.constant 0 : index
    %c0_6 = arith.constant 0 : index
    %6 = vector.load %arg6[%c0_5, %c0_6] : memref<256x1024xbf16, #tpu.memory_space<vmem>>, vector<256x1024xbf16>
    %cst = arith.constant dense<0.000000e+00> : vector<32x1024xf32>
    %7 = tpu.matmul %5, %6, %cst {dimension_numbers = #tpu.dot_dimension_numbers<[1], [0], [0], [1], [0, 0, 1, 1], [], []>} : vector<32x256xbf16>, vector<256x1024xbf16>, vector<32x1024xf32> -> vector<32x1024xf32>
    %8 = arith.addf %3, %7 : vector<32x1024xf32>
    %c0_7 = arith.constant 0 : index
    %c0_8 = arith.constant 0 : index
    %9 = vector.load %arg10[%c0_7, %c0_8] : memref<32x1024xf32, #tpu.memory_space<vmem>>, vector<32x1024xf32>
    tpu.vector_store %arg10[%c0_7, %c0_8], %8 {strides = array<i32>} : memref<32x1024xf32, #tpu.memory_space<vmem>>, vector<32x1024xf32>,
    %c1_i32 = arith.constant 1 : i32
    %10 = arith.cmpi eq, %arg2, %c1_i32 : i32
    %11 = arith.extui %10 : i1 to i32
    %c0_i32_9 = arith.constant 0 : i32
    %12 = arith.cmpi ne, %11, %c0_i32_9 : i32
    scf.if %12 {
      %c0_10 = arith.constant 0 : index
      %c0_11 = arith.constant 0 : index
      %13 = vector.load %arg10[%c0_10, %c0_11] : memref<32x1024xf32, #tpu.memory_space<vmem>>, vector<32x1024xf32>
      %c0_12 = arith.constant 0 : index
      %c0_13 = arith.constant 0 : index
      %c0_14 = arith.constant 0 : index
      %14 = vector.load %arg4[%c0_12, %c0_13, %c0_14] : memref<1x1x128xf32, #tpu.memory_space<vmem>>, vector<1x1x128xf32>
      %15 = vector.shape_cast %14 : vector<1x1x128xf32> to vector<1x128xf32>
      %c0_15 = arith.constant 0 : index
      %c0_16 = arith.constant 0 : index
      %c0_17 = arith.constant 0 : index
      %16 = vector.load %arg5[%c0_15, %c0_16, %c0_17] : memref<1x1x128xf32, #tpu.memory_space<vmem>>, vector<1x1x128xf32>
      %17 = vector.shape_cast %16 : vector<1x1x128xf32> to vector<1x128xf32>
      %18 = vector.extract_strided_slice %13 {offsets = [0, 0], sizes = [32, 512], strides = [1, 1]} : vector<32x1024xf32> to vector<32x512xf32>
      %19 = vector.extract_strided_slice %13 {offsets = [0, 512], sizes = [32, 256], strides = [1, 1]} : vector<32x1024xf32> to vector<32x256xf32>
      %20 = vector.extract_strided_slice %13 {offsets = [0, 768], sizes = [32, 256], strides = [1, 1]} : vector<32x1024xf32> to vector<32x256xf32>
      %cst_18 = arith.constant 0.0883883461 : f32
      %21 = vector.broadcast %cst_18 : f32 to vector<1x128xf32>
      %22 = arith.mulf %15, %21 : vector<1x128xf32>
      %cst_19 = arith.constant 0.0883883461 : f32
      %23 = vector.broadcast %cst_19 : f32 to vector<1x128xf32>
      %24 = arith.mulf %17, %23 : vector<1x128xf32>
      %25 = vector.shape_cast %18 : vector<32x512xf32> to vector<32x4x128xf32>
      %26 = vector.extract_strided_slice %25 {offsets = [0, 0, 64], sizes = [32, 4, 64], strides = [1, 1, 1]} : vector<32x4x128xf32> to vector<32x4x64xf32>
      %cst_20 = arith.constant 0.000000e+00 : f32
      %27 = vector.broadcast %cst_20 : f32 to vector<32x4x64xf32>
      %28 = arith.subf %27, %26 : vector<32x4x64xf32>
      %29 = vector.extract_strided_slice %25 {offsets = [0, 0, 0], sizes = [32, 4, 64], strides = [1, 1, 1]} : vector<32x4x128xf32> to vector<32x4x64xf32>
      %30 = tpu.concatenate %28, %29 in 2 : vector<32x4x64xf32>, vector<32x4x64xf32> -> vector<32x4x128xf32>
      %31 = vector.shape_cast %22 : vector<1x128xf32> to vector<1x1x128xf32>
      %32 = vector.broadcast %31 : vector<1x1x128xf32> to vector<32x4x128xf32>
      %33 = arith.mulf %25, %32 : vector<32x4x128xf32>
      %34 = vector.shape_cast %24 : vector<1x128xf32> to vector<1x1x128xf32>
      %35 = vector.broadcast %34 : vector<1x1x128xf32> to vector<32x4x128xf32>
      %36 = arith.mulf %30, %35 : vector<32x4x128xf32>
      %37 = arith.addf %33, %36 : vector<32x4x128xf32>
      %38 = vector.shape_cast %37 : vector<32x4x128xf32> to vector<32x512xf32>
      %39 = vector.shape_cast %19 : vector<32x256xf32> to vector<32x2x128xf32>
      %40 = vector.extract_strided_slice %39 {offsets = [0, 0, 64], sizes = [32, 2, 64], strides = [1, 1, 1]} : vector<32x2x128xf32> to vector<32x2x64xf32>
      %cst_21 = arith.constant 0.000000e+00 : f32
      %41 = vector.broadcast %cst_21 : f32 to vector<32x2x64xf32>
      %42 = arith.subf %41, %40 : vector<32x2x64xf32>
      %43 = vector.extract_strided_slice %39 {offsets = [0, 0, 0], sizes = [32, 2, 64], strides = [1, 1, 1]} : vector<32x2x128xf32> to vector<32x2x64xf32>
      %44 = tpu.concatenate %42, %43 in 2 : vector<32x2x64xf32>, vector<32x2x64xf32> -> vector<32x2x128xf32>
      %45 = vector.shape_cast %15 : vector<1x128xf32> to vector<1x1x128xf32>
      %46 = vector.broadcast %45 : vector<1x1x128xf32> to vector<32x2x128xf32>
      %47 = arith.mulf %39, %46 : vector<32x2x128xf32>
      %48 = vector.shape_cast %17 : vector<1x128xf32> to vector<1x1x128xf32>
      %49 = vector.broadcast %48 : vector<1x1x128xf32> to vector<32x2x128xf32>
      %50 = arith.mulf %44, %49 : vector<32x2x128xf32>
      %51 = arith.addf %47, %50 : vector<32x2x128xf32>
      %52 = vector.shape_cast %51 : vector<32x2x128xf32> to vector<32x256xf32>
      %53 = arith.truncf %38 : vector<32x512xf32> to vector<32x512xbf16>
      %c0_22 = arith.constant 0 : index
      %c0_23 = arith.constant 0 : index
      %c0_24 = arith.constant 0 : index
      %54 = vector.load %arg7[%c0_22, %c0_23, %c0_24] : memref<1x32x512xbf16, #tpu.memory_space<vmem>>, vector<1x32x512xbf16>
      %55 = vector.shape_cast %54 : vector<1x32x512xbf16> to vector<32x512xbf16>
      %56 = vector.shape_cast %53 : vector<32x512xbf16> to vector<1x32x512xbf16>
      tpu.vector_store %arg7[%c0_22, %c0_23, %c0_24], %56 {strides = array<i32>} : memref<1x32x512xbf16, #tpu.memory_space<vmem>>, vector<1x32x512xbf16>,
      %57 = arith.truncf %52 : vector<32x256xf32> to vector<32x256xbf16>
      %c0_25 = arith.constant 0 : index
      %c0_26 = arith.constant 0 : index
      %c0_27 = arith.constant 0 : index
      %58 = vector.load %arg8[%c0_25, %c0_26, %c0_27] : memref<1x32x256xbf16, #tpu.memory_space<vmem>>, vector<1x32x256xbf16>
      %59 = vector.shape_cast %58 : vector<1x32x256xbf16> to vector<32x256xbf16>
      %60 = vector.shape_cast %57 : vector<32x256xbf16> to vector<1x32x256xbf16>
      tpu.vector_store %arg8[%c0_25, %c0_26, %c0_27], %60 {strides = array<i32>} : memref<1x32x256xbf16, #tpu.memory_space<vmem>>, vector<1x32x256xbf16>,
      %61 = arith.truncf %20 : vector<32x256xf32> to vector<32x256xbf16>
      %c0_28 = arith.constant 0 : index
      %c0_29 = arith.constant 0 : index
      %c0_30 = arith.constant 0 : index
      %62 = vector.load %arg9[%c0_28, %c0_29, %c0_30] : memref<1x32x256xbf16, #tpu.memory_space<vmem>>, vector<1x32x256xbf16>
      %63 = vector.shape_cast %62 : vector<1x32x256xbf16> to vector<32x256xbf16>
      %64 = vector.shape_cast %61 : vector<32x256xbf16> to vector<1x32x256xbf16>
      tpu.vector_store %arg9[%c0_28, %c0_29, %c0_30], %64 {strides = array<i32>} : memref<1x32x256xbf16, #tpu.memory_space<vmem>>, vector<1x32x256xbf16>,
    } else {
    }
    return
  }
  func.func @transform_0(%arg0: i32, %arg1: i32, %arg2: i32) -> (i32, i32, i32) {
    %c0_i32 = arith.constant 0 : i32
    return %arg0, %arg1, %arg2 : i32, i32, i32
  }
  func.func @transform_1(%arg0: i32, %arg1: i32, %arg2: i32) -> (i32, i32, i32) {
    %c0_i32 = arith.constant 0 : i32
    %c0_i32_0 = arith.constant 0 : i32
    %c0_i32_1 = arith.constant 0 : i32
    return %arg0, %c0_i32, %c0_i32_0 : i32, i32, i32
  }
  func.func @transform_2(%arg0: i32, %arg1: i32, %arg2: i32) -> (i32, i32, i32) {
    %c0_i32 = arith.constant 0 : i32
    %c0_i32_0 = arith.constant 0 : i32
    %c0_i32_1 = arith.constant 0 : i32
    return %arg0, %c0_i32, %c0_i32_0 : i32, i32, i32
  }
  func.func @transform_3(%arg0: i32, %arg1: i32, %arg2: i32) -> (i32, i32) {
    %c0_i32 = arith.constant 0 : i32
    %c0_i32_0 = arith.constant 0 : i32
    return %arg2, %c0_i32 : i32, i32
  }
  func.func @transform_4(%arg0: i32, %arg1: i32, %arg2: i32) -> (i32, i32, i32) {
    %c0_i32 = arith.constant 0 : i32
    %c0_i32_0 = arith.constant 0 : i32
    return %arg0, %arg1, %c0_i32 : i32, i32, i32
  }
  func.func @transform_5(%arg0: i32, %arg1: i32, %arg2: i32) -> (i32, i32, i32) {
    %c0_i32 = arith.constant 0 : i32
    %c0_i32_0 = arith.constant 0 : i32
    return %arg0, %arg1, %c0_i32 : i32, i32, i32
  }
  func.func @transform_6(%arg0: i32, %arg1: i32, %arg2: i32) -> (i32, i32, i32) {
    %c0_i32 = arith.constant 0 : i32
    %c0_i32_0 = arith.constant 0 : i32
    return %arg0, %arg1, %c0_i32 : i32, i32, i32
  }
}

</mosaic_0001>

<llo_original>
// kernel: tpu_custom_call.1
$region0: #{tpu_custom_call.1}
  #allocation0 [shape = 'u32[]', space=smem, size = 0x4, offset = 0x4, fixed_abs, tag = 'smem constant byte address 0x4 - core index']
  #allocation1 [shape = 'u32[144,128]{1,0:T(1,128)}', space=vmem, size = 0x12000, scoped, tag = 'internal scratch']
  #allocation2 [shape = 'f32[32,1024]{1,0:T(8,128)}', space=vmem, size = 0x20000, scoped, tag = 'scratch operand']
  %s0 = inlined_call_operand.hbm [shape: bf16[2,64,512], index: 0, kind: input, shape index: {}]
  %s1 = inlined_call_operand.hbm [shape: f32[2,1,128], index: 1, kind: input, shape index: {}]
  %s2 = inlined_call_operand.vmem [shape: f32[2,1,128], index: 2, kind: input, shape index: {}]
  %s3 = inlined_call_operand.hbm [shape: bf16[512,1024], index: 3, kind: input, shape index: {}]
  %s4 = inlined_call_operand.hbm [shape: bf16[2,64,512], index: 4, kind: output, shape index: {0}]
  %s5 = inlined_call_operand.hbm [shape: bf16[2,64,256], index: 5, kind: output, shape index: {1}]
  %s6 = inlined_call_operand.hbm [shape: bf16[2,64,256], index: 6, kind: output, shape index: {2}]
  %7 = xla_tuple %s4, %s5, %s6
  %s8 = sld [smem:[#allocation0]]
  $region85: #{tpu_custom_call.1} parent=0
    _
  %s10 = ssub.s32 1, %s8
  %s11 = scalar_select 0, %s10, %s8
  $region1: #{tpu_custom_call.1} parent=0
    #allocation3 [shape = 'u8[32768]{0}', space=vmem, size = 0x8000, scoped, tag = 'input window, operand 0']
    #allocation4 [shape = 's32[2]{0}', space=sflag, size = 0x8, scoped, tag = 'scoped memory for tpu_custom_call.1']
    #allocation5 [shape = 's32[2]{0}', space=sflag, size = 0x8, scoped, tag = 'scoped memory for tpu_custom_call.1']
    #allocation6 [shape = 'u8[1024]{0}', space=vmem, size = 0x400, scoped, tag = 'input window, operand 1']
    #allocation7 [shape = 's32[2]{0}', space=sflag, size = 0x8, scoped, tag = 'scoped memory for tpu_custom_call.1']
    #allocation8 [shape = 'u8[1048576]{0}', space=vmem, size = 0x100000, scoped, tag = 'input window, operand 3']
    #allocation9 [shape = 'u8[65536]{0}', space=vmem, size = 0x10000, scoped, tag = 'output window, operand 0']
    #allocation10 [shape = 'u8[32768]{0}', space=vmem, size = 0x8000, scoped, tag = 'output window, operand 1']
    #allocation11 [shape = 's32[2]{0}', space=sflag, size = 0x8, scoped, tag = 'scoped memory for tpu_custom_call.1']
    #allocation12 [shape = 'u8[32768]{0}', space=vmem, size = 0x8000, scoped, tag = 'output window, operand 2']
    %12 = vsyncpa [#allocation4], 0
    %s13 = scalar_lea.sflag [#allocation4], 1
    %14 = vsyncpa %s13, 0
    %15 = vsyncpa [#allocation7], 0
    %s16 = scalar_lea.sflag [#allocation7], 1
    %17 = vsyncpa %s16, 0
    %18 = vsyncpa [#allocation5], 0
    %s19 = scalar_lea.sflag [#allocation5], 1
    %20 = vsyncpa %s19, 0
    %21 = vsyncpa [#allocation11], 0
    %s22 = scalar_lea.sflag [#allocation11], 1
    %23 = vsyncpa %s22, 0
    loop: start=0, step=1, limit=10
    $region2: #{tpu_custom_call.1} parent=1 // loop_pre_header
      _
    $region3: #{tpu_custom_call.1} parent=1 // loop_header
      %s25 = sphi 0, %s29
      %p26 = scmp.ge.s32.totalorder %s25, 10
      %s32 = sphi 0, %s51
      %s33 = sphi 0, %s47
      %s34 = sphi 0, %s43
      %s35 = sphi 0, %s32
      %s36 = sphi 0, %s33
      %s37 = sphi 0, %s34
      %s38 = sphi 0, %s35
      %s39 = sphi 0, %s36
      %s40 = sphi 0, %s37
      %s58 = sphi 0, %s60
      %s61 = sphi 0, %s58
      %s62 = sphi 0, %s61
      %s78 = sphi 0, %s62
      %s84 = sphi 0, %s86
      %s87 = sphi 0, %s84
      %s88 = sphi 0, %s87
      %s104 = sphi 0, %s88
      %s110 = sphi 0, %s112
      %s113 = sphi 0, %s110
      %s114 = sphi 0, %s113
      %s130 = sphi 0, %s114
      %s136 = sphi 0, %s138
      %s139 = sphi 0, %s136
      %s140 = sphi 0, %s139
      %s156 = sphi 0, %s140
      %s164 = sphi 0, %s166
      %s167 = sphi 0, %s164
      %s168 = sphi 0, %s167
      %s184 = sphi 0, %s168
      %s192 = sphi 0, %s194
      %s195 = sphi 0, %s192
      %s196 = sphi 0, %s195
      %s212 = sphi 0, %s196
      %s220 = sphi 0, %s222
      %s223 = sphi 0, %s220
      %s224 = sphi 0, %s223
      %s240 = sphi 0, %s224
    $region4: #{tpu_custom_call.1} parent=1 // loop_header_branch
      %28 = sbr.rel (%p26) target = $region8
    $region5: #{tpu_custom_call.1} parent=1 // loop_body
      %s30 = ssub.s32 %s25, 1
      %s31 = ssub.s32 %s25, 2
      %s41 = sadd.s32 1, %s34
      %p42 = scmp.ge.s32.totalorder %s41, 2
      %s43 = scalar_select %p42, 0, %s41
      %s44 = sadd.s32 1, %s33
      %s45 = scalar_select %p42, %s44, %s33
      %p46 = scmp.ge.s32.totalorder %s45, 2
      %s47 = scalar_select %p46, 0, %s45
      %s48 = sadd.s32 1, %s32
      %s49 = scalar_select %p46, %s48, %s32
      %p50 = scmp.ge.s32.totalorder %s49, 2
      %s51 = scalar_select %p50, 0, %s49
      %s52 = ssub.s32 %s32, %s51
      %s53 = ssub.s32 %s33, %s47
      %s54 = sor.u32 %s52, %s53
      %s55 = ssub.s32 %s34, %s43
      %s56 = sor.u32 %s54, %s55
      %p57 = scmp.eq.s32.totalorder %s56, 0
      %s59 = sadd.s32 %s58, 1
      %s60 = scalar_select %p57, %s58, %s59
      %p63 = pneg %p57
      %p64 = scmp.eq.s32.totalorder %s25, 7
      %p65 = por %p63, %p64
      %p66 = scmp.ne.s32.totalorder %s58, %s61
      %p67 = scmp.eq.s32.totalorder %s25, 0
      %p68 = por %p66, %p67
      %p69 = scmp.ne.s32.totalorder %s58, %s61
      %p70 = scmp.eq.s32.totalorder %s30, 7
      %p71 = por %p69, %p70
      %p72 = scmp.ne.s32.totalorder %s61, %s62
      %p73 = scmp.eq.s32.totalorder %s30, 0
      %p74 = por %p72, %p73
      %p75 = scmp.ne.s32.totalorder %s61, %s62
      %p76 = scmp.eq.s32.totalorder %s31, 7
      %p77 = por %p75, %p76
      %p79 = scmp.ne.s32.totalorder %s62, %s78
      %p80 = scmp.eq.s32.totalorder %s31, 0
      %p81 = por %p79, %p80
      %s82 = ssub.s32 %s32, %s51
      %p83 = scmp.eq.s32.totalorder %s82, 0
      %s85 = sadd.s32 %s84, 1
      %s86 = scalar_select %p83, %s84, %s85
      %p89 = pneg %p83
      %p90 = scmp.eq.s32.totalorder %s25, 7
      %p91 = por %p89, %p90
      %p92 = scmp.ne.s32.totalorder %s84, %s87
      %p93 = scmp.eq.s32.totalorder %s25, 0
      %p94 = por %p92, %p93
      %p95 = scmp.ne.s32.totalorder %s84, %s87
      %p96 = scmp.eq.s32.totalorder %s30, 7
      %p97 = por %p95, %p96
      %p98 = scmp.ne.s32.totalorder %s87, %s88
      %p99 = scmp.eq.s32.totalorder %s30, 0
      %p100 = por %p98, %p99
      %p101 = scmp.ne.s32.totalorder %s87, %s88
      %p102 = scmp.eq.s32.totalorder %s31, 7
      %p103 = por %p101, %p102
      %p105 = scmp.ne.s32.totalorder %s88, %s104
      %p106 = scmp.eq.s32.totalorder %s31, 0
      %p107 = por %p105, %p106
      %s108 = ssub.s32 %s32, %s51
      %p109 = scmp.eq.s32.totalorder %s108, 0
      %s111 = sadd.s32 %s110, 1
      %s112 = scalar_select %p109, %s110, %s111
      %p115 = pneg %p109
      %p116 = scmp.eq.s32.totalorder %s25, 7
      %p117 = por %p115, %p116
      %p118 = scmp.ne.s32.totalorder %s110, %s113
      %p119 = scmp.eq.s32.totalorder %s25, 0
      %p120 = por %p118, %p119
      %p121 = scmp.ne.s32.totalorder %s110, %s113
      %p122 = scmp.eq.s32.totalorder %s30, 7
      %p123 = por %p121, %p122
      %p124 = scmp.ne.s32.totalorder %s113, %s114
      %p125 = scmp.eq.s32.totalorder %s30, 0
      %p126 = por %p124, %p125
      %p127 = scmp.ne.s32.totalorder %s113, %s114
      %p128 = scmp.eq.s32.totalorder %s31, 7
      %p129 = por %p127, %p128
      %p131 = scmp.ne.s32.totalorder %s114, %s130
      %p132 = scmp.eq.s32.totalorder %s31, 0
      %p133 = por %p131, %p132
      %s134 = ssub.s32 %s34, %s43
      %p135 = scmp.eq.s32.totalorder %s134, 0
      %s137 = sadd.s32 %s136, 1
      %s138 = scalar_select %p135, %s136, %s137
      %p141 = pneg %p135
      %p142 = scmp.eq.s32.totalorder %s25, 7
      %p143 = por %p141, %p142
      %p144 = scmp.ne.s32.totalorder %s136, %s139
      %p145 = scmp.eq.s32.totalorder %s25, 0
      %p146 = por %p144, %p145
      %p147 = scmp.ne.s32.totalorder %s136, %s139
      %p148 = scmp.eq.s32.totalorder %s30, 7
      %p149 = por %p147, %p148
      %p150 = scmp.ne.s32.totalorder %s139, %s140
      %p151 = scmp.eq.s32.totalorder %s30, 0
      %p152 = por %p150, %p151
      %p153 = scmp.ne.s32.totalorder %s139, %s140
      %p154 = scmp.eq.s32.totalorder %s31, 7
      %p155 = por %p153, %p154
      %p157 = scmp.ne.s32.totalorder %s140, %s156
      %p158 = scmp.eq.s32.totalorder %s31, 0
      %p159 = por %p157, %p158
      %s160 = ssub.s32 %s32, %s51
      %s161 = ssub.s32 %s33, %s47
      %s162 = sor.u32 %s160, %s161
      %p163 = scmp.eq.s32.totalorder %s162, 0
      %s165 = sadd.s32 %s164, 1
      %s166 = scalar_select %p163, %s164, %s165
      %p169 = pneg %p163
      %p170 = scmp.eq.s32.totalorder %s25, 7
      %p171 = por %p169, %p170
      %p172 = scmp.ne.s32.totalorder %s164, %s167
      %p173 = scmp.eq.s32.totalorder %s25, 0
      %p174 = por %p172, %p173
      %p175 = scmp.ne.s32.totalorder %s164, %s167
      %p176 = scmp.eq.s32.totalorder %s30, 7
      %p177 = por %p175, %p176
      %p178 = scmp.ne.s32.totalorder %s167, %s168
      %p179 = scmp.eq.s32.totalorder %s30, 0
      %p180 = por %p178, %p179
      %p181 = scmp.ne.s32.totalorder %s167, %s168
      %p182 = scmp.eq.s32.totalorder %s31, 7
      %p183 = por %p181, %p182
      %p185 = scmp.ne.s32.totalorder %s168, %s184
      %p186 = scmp.eq.s32.totalorder %s31, 0
      %p187 = por %p185, %p186
      %s188 = ssub.s32 %s32, %s51
      %s189 = ssub.s32 %s33, %s47
      %s190 = sor.u32 %s188, %s189
      %p191 = scmp.eq.s32.totalorder %s190, 0
      %s193 = sadd.s32 %s192, 1
      %s194 = scalar_select %p191, %s192, %s193
      %p197 = pneg %p191
      %p198 = scmp.eq.s32.totalorder %s25, 7
      %p199 = por %p197, %p198
      %p200 = scmp.ne.s32.totalorder %s192, %s195
      %p201 = scmp.eq.s32.totalorder %s25, 0
      %p202 = por %p200, %p201
      %p203 = scmp.ne.s32.totalorder %s192, %s195
      %p204 = scmp.eq.s32.totalorder %s30, 7
      %p205 = por %p203, %p204
      %p206 = scmp.ne.s32.totalorder %s195, %s196
      %p207 = scmp.eq.s32.totalorder %s30, 0
      %p208 = por %p206, %p207
      %p209 = scmp.ne.s32.totalorder %s195, %s196
      %p210 = scmp.eq.s32.totalorder %s31, 7
      %p211 = por %p209, %p210
      %p213 = scmp.ne.s32.totalorder %s196, %s212
      %p214 = scmp.eq.s32.totalorder %s31, 0
      %p215 = por %p213, %p214
      %s216 = ssub.s32 %s32, %s51
      %s217 = ssub.s32 %s33, %s47
      %s218 = sor.u32 %s216, %s217
      %p219 = scmp.eq.s32.totalorder %s218, 0
      %s221 = sadd.s32 %s220, 1
      %s222 = scalar_select %p219, %s220, %s221
      %p225 = pneg %p219
      %p226 = scmp.eq.s32.totalorder %s25, 7
      %p227 = por %p225, %p226
      %p228 = scmp.ne.s32.totalorder %s220, %s223
      %p229 = scmp.eq.s32.totalorder %s25, 0
      %p230 = por %p228, %p229
      %p231 = scmp.ne.s32.totalorder %s220, %s223
      %p232 = scmp.eq.s32.totalorder %s30, 7
      %p233 = por %p231, %p232
      %p234 = scmp.ne.s32.totalorder %s223, %s224
      %p235 = scmp.eq.s32.totalorder %s30, 0
      %p236 = por %p234, %p235
      %p237 = scmp.ne.s32.totalorder %s223, %s224
      %p238 = scmp.eq.s32.totalorder %s31, 7
      %p239 = por %p237, %p238
      %p241 = scmp.ne.s32.totalorder %s224, %s240
      %p242 = scmp.eq.s32.totalorder %s31, 0
      %p243 = por %p241, %p242
      %p244 = scmp.le.s32.totalorder 1, %s25
      %p245 = scmp.lt.s32.totalorder %s25, 9
      %p246 = pnand %p244, %p245
      %p247 = pneg %p246
      // Predicated region
      $region9: #{tpu_custom_call.1} parent=5 // pred_check
        _
      $region10: #{tpu_custom_call.1} parent=5 // pred_check_branch
        %249 = sbr.rel (%p246) target = $region12
      $region11: #{tpu_custom_call.1} parent=5 // pred_region
        %s250 = ssub.s32 %s25, 1
      $region12: #{tpu_custom_call.1} parent=5 // pred_fallthru
        _
      %p251 = scmp.lt.s32.totalorder %s25, 8
      // Predicated region
      $region13: #{tpu_custom_call.1} parent=5 // pred_check
        %p252 = pneg %p251
      $region14: #{tpu_custom_call.1} parent=5 // pred_check_branch
        %254 = sbr.rel (%p252) target = $region16
      $region15: #{tpu_custom_call.1} parent=5 // pred_region
        // Predicated region
        $region17: #{tpu_custom_call.1} parent=15 // pred_check
          %p255 = pneg %p68
        $region18: #{tpu_custom_call.1} parent=15 // pred_check_branch
          %257 = sbr.rel (%p255) target = $region20
        $region19: #{tpu_custom_call.1} parent=15 // pred_region
          %s258 = sand.u32 %s58, 1
          %s259 = scalar_lea.sflag [#allocation4], %s258
          %s260 = sand.u32 %s58, 1
          %s261 = smul.addr %s260, 32
          %s262 = scalar_lea.vmem [#allocation3], %s261
          %s263 = smul.u32 4, %s33
          %s264 = smul.u32 2, %s34
          %s266 = ssub.s32 512, 512
          %267 = vsyncadd %s259, %s266
          %s268 = smul.addr %s263, 4
          %s269 = sadd.s32 %s264, %s268
          %s270 = smul.addr %s32, 32
          %s271 = sadd.s32 %s269, %s270
          %s272 = smul.addr %s271, 64
          %s273 = scalar_lea.hbm %s0, %s272
          %s274 = sshll.u32 %s262, 4
          %s275 = int_to_ptr.vmem [resolvable:$true] %s274
          %280 = dma.hbm_to_vmem [thread:$0]  %s273, 512, %s275, %s259, 256, 128, 8
        $region20: #{tpu_custom_call.1} parent=15 // pred_fallthru
          _
        // Predicated region
        $region21: #{tpu_custom_call.1} parent=15 // pred_check
          %p281 = pneg %p94
        $region22: #{tpu_custom_call.1} parent=15 // pred_check_branch
          %283 = sbr.rel (%p281) target = $region24
        $region23: #{tpu_custom_call.1} parent=15 // pred_region
          %s284 = sand.u32 %s25, 1
          %s285 = scalar_lea.sflag [#allocation7], %s284
          %s286 = sand.u32 %s84, 1
          %s287 = scalar_lea.vmem [#allocation6], %s286
          %s289 = ssub.s32 16, 16
          %290 = vsyncadd %s285, %s289
          %s291 = smul.addr %s32, 16
          %s292 = scalar_lea.hbm %s1, %s291
          %s294 = sshll.u32 %s287, 4
          %s295 = int_to_ptr.vmem [resolvable:$true] %s294
          %297 = dma.hbm_to_vmem [thread:$0]  %s292, 16, %s295, %s285
        $region24: #{tpu_custom_call.1} parent=15 // pred_fallthru
          _
        // Predicated region
        $region25: #{tpu_custom_call.1} parent=15 // pred_check
          %p298 = pneg %p120
        $region26: #{tpu_custom_call.1} parent=15 // pred_check_branch
          %300 = sbr.rel (%p298) target = $region28
        $region27: #{tpu_custom_call.1} parent=15 // pred_region
          %p301 = scmp.lt.s32.totalorder %s32, 1
          %s302 = scalar_select %p301, %s32, 1
          %s303 = scalar_lea.vmem %s2, %s302
        $region28: #{tpu_custom_call.1} parent=15 // pred_fallthru
          _
        // Predicated region
        $region29: #{tpu_custom_call.1} parent=15 // pred_check
          %p304 = pneg %p146
        $region30: #{tpu_custom_call.1} parent=15 // pred_check_branch
          %306 = sbr.rel (%p304) target = $region32
        $region31: #{tpu_custom_call.1} parent=15 // pred_region
          %s307 = sand.u32 %s25, 1
          %s308 = scalar_lea.sflag [#allocation7], %s307
          %s309 = sand.u32 %s136, 1
          %s310 = smul.addr %s309, 1024
          %s311 = scalar_lea.vmem [#allocation8], %s310
          %s312 = smul.u32 32, %s34
          %s314 = ssub.s32 16384, 16384
          %315 = vsyncadd %s308, %s314
          %s316 = smul.addr %s312, 8
          %s317 = smul.addr %s316, 64
          %s318 = scalar_lea.hbm %s3, %s317
          %s319 = sshll.u32 %s311, 4
          %s320 = int_to_ptr.vmem [resolvable:$true] %s319
          %325 = dma.hbm_to_vmem [thread:$0]  %s318, 16384, %s320, %s308, 512, 512, 32
        $region32: #{tpu_custom_call.1} parent=15 // pred_fallthru
          _
      $region16: #{tpu_custom_call.1} parent=5 // pred_fallthru
        _
      %p326 = scmp.le.s32.totalorder 1, %s25
      %p327 = scmp.lt.s32.totalorder %s25, 9
      %p328 = pnand %p326, %p327
      %p329 = pneg %p328
      // Predicated region
      $region33: #{tpu_custom_call.1} parent=5 // pred_check
        _
      $region34: #{tpu_custom_call.1} parent=5 // pred_check_branch
        %331 = sbr.rel (%p328) target = $region36
      $region35: #{tpu_custom_call.1} parent=5 // pred_region
        %s332 = ssub.s32 %s25, 1
        %s333 = sand.u32 %s61, 1
        %s334 = scalar_lea.sflag [#allocation4], %s333
        %s335 = sand.u32 %s61, 1
        %s336 = smul.addr %s335, 32
        %s337 = scalar_lea.vmem [#allocation3], %s336
        // Predicated region
        $region37: #{tpu_custom_call.1} parent=35 // pred_check
          %p338 = pneg %p74
        $region38: #{tpu_custom_call.1} parent=35 // pred_check_branch
          %340 = sbr.rel (%p338) target = $region40
        $region39: #{tpu_custom_call.1} parent=35 // pred_region
          %341 = dma.done %s334, 512
        $region40: #{tpu_custom_call.1} parent=35 // pred_fallthru
          _
        %s342 = sand.u32 %s30, 1
        %s343 = scalar_lea.sflag [#allocation7], %s342
        %s344 = sand.u32 %s87, 1
        %s345 = scalar_lea.vmem [#allocation6], %s344
        // Predicated region
        $region41: #{tpu_custom_call.1} parent=35 // pred_check
          %p346 = pneg %p100
        $region42: #{tpu_custom_call.1} parent=35 // pred_check_branch
          %348 = sbr.rel (%p346) target = $region44
        $region43: #{tpu_custom_call.1} parent=35 // pred_region
          %349 = dma.done %s343, 16
        $region44: #{tpu_custom_call.1} parent=35 // pred_fallthru
          _
        %s350 = sand.u32 %s30, 1
        %s351 = scalar_lea.sflag [#allocation7], %s350
        %s352 = sand.u32 %s139, 1
        %s353 = smul.addr %s352, 1024
        %s354 = scalar_lea.vmem [#allocation8], %s353
        // Predicated region
        $region45: #{tpu_custom_call.1} parent=35 // pred_check
          %p355 = pneg %p152
        $region46: #{tpu_custom_call.1} parent=35 // pred_check_branch
          %357 = sbr.rel (%p355) target = $region48
        $region47: #{tpu_custom_call.1} parent=35 // pred_region
          %358 = dma.done %s351, 16384
        $region48: #{tpu_custom_call.1} parent=35 // pred_fallthru
          _
        %s359 = sand.u32 %s61, 1
        %s360 = scalar_lea.sflag [#allocation4], %s359
        %s361 = sand.u32 %s61, 1
        %s362 = smul.addr %s361, 32
        %s363 = scalar_lea.vmem [#allocation3], %s362
        %p364 = pneg %p74
        %p365 = pneg %p71
        %s366 = sand.u32 %s30, 1
        %s367 = scalar_lea.sflag [#allocation7], %s366
        %s368 = sand.u32 %s87, 1
        %s369 = scalar_lea.vmem [#allocation6], %s368
        %p370 = pneg %p100
        %p371 = pneg %p97
        %p372 = scmp.lt.s32.totalorder %s35, 1
        %s373 = scalar_select %p372, %s35, 1
        %s374 = scalar_lea.vmem %s2, %s373
        %p375 = pneg %p126
        %p376 = pneg %p123
        %s377 = sand.u32 %s30, 1
        %s378 = scalar_lea.sflag [#allocation7], %s377
        %s379 = sand.u32 %s139, 1
        %s380 = smul.addr %s379, 1024
        %s381 = scalar_lea.vmem [#allocation8], %s380
        %p382 = pneg %p152
        %p383 = pneg %p149
        %p384 = pneg %p180
        %p385 = pneg %p177
        %s386 = sand.u32 %s167, 1
        %s387 = scalar_lea.sflag [#allocation5], %s386
        %s388 = sand.u32 %s167, 1
        %s389 = smul.addr %s388, 64
        %s390 = scalar_lea.vmem [#allocation9], %s389
        %p391 = pneg %p208
        %p392 = pneg %p205
        %s393 = sand.u32 %s30, 1
        %s394 = scalar_lea.sflag [#allocation11], %s393
        %s395 = sand.u32 %s195, 1
        %s396 = smul.addr %s395, 32
        %s397 = scalar_lea.vmem [#allocation10], %s396
        %p398 = pneg %p236
        %p399 = pneg %p233
        %s400 = sand.u32 %s30, 1
        %s401 = scalar_lea.sflag [#allocation11], %s400
        %s402 = sand.u32 %s223, 1
        %s403 = smul.addr %s402, 32
        %s404 = scalar_lea.vmem [#allocation12], %s403
        %s405 = smul.u32 4, %s36
        %s406 = smul.u32 2, %s37
        %p407 = scmp.lt.s32.totalorder %s35, 1
        %s408 = scalar_select %p407, %s35, 1
        %s409 = scalar_lea.vmem %s2, %s408
        %s410 = smul.u32 32, %s37
        %s411 = smul.u32 4, %s36
        %s412 = smul.u32 4, %s36
        %s413 = smul.u32 4, %s36
        %p414 = scmp.eq.s32.totalorder %s37, 0
        // Predicated region
        $region49: #{tpu_custom_call.1} parent=35 // pred_check
          %p415 = pneg %p414
        $region50: #{tpu_custom_call.1} parent=35 // pred_check_branch
          %417 = sbr.rel (%p415) target = $region52
        $region51: #{tpu_custom_call.1} parent=35 // pred_region
          %418 = vst [vmem:[#allocation2] sm:$0xff] 0.0
          %419 = vst [vmem:[#allocation2 + $0x8] sm:$0xff] 0.0
          %420 = vst [vmem:[#allocation2 + $0x10] sm:$0xff] 0.0
          %421 = vst [vmem:[#allocation2 + $0x18] sm:$0xff] 0.0
          %422 = vst [vmem:[#allocation2 + $0x20] sm:$0xff] 0.0
          %423 = vst [vmem:[#allocation2 + $0x28] sm:$0xff] 0.0
          %424 = vst [vmem:[#allocation2 + $0x30] sm:$0xff] 0.0
          %425 = vst [vmem:[#allocation2 + $0x38] sm:$0xff] 0.0
          %426 = vst [vmem:[#allocation2 + $0x40] sm:$0xff] 0.0
          %427 = vst [vmem:[#allocation2 + $0x48] sm:$0xff] 0.0
          %428 = vst [vmem:[#allocation2 + $0x50] sm:$0xff] 0.0
          %429 = vst [vmem:[#allocation2 + $0x58] sm:$0xff] 0.0
          %430 = vst [vmem:[#allocation2 + $0x60] sm:$0xff] 0.0
          %431 = vst [vmem:[#allocation2 + $0x68] sm:$0xff] 0.0
          %432 = vst [vmem:[#allocation2 + $0x70] sm:$0xff] 0.0
          %433 = vst [vmem:[#allocation2 + $0x78] sm:$0xff] 0.0
          %434 = vst [vmem:[#allocation2 + $0x80] sm:$0xff] 0.0
          %435 = vst [vmem:[#allocation2 + $0x88] sm:$0xff] 0.0
          %436 = vst [vmem:[#allocation2 + $0x90] sm:$0xff] 0.0
          %437 = vst [vmem:[#allocation2 + $0x98] sm:$0xff] 0.0
          %438 = vst [vmem:[#allocation2 + $0xa0] sm:$0xff] 0.0
          %439 = vst [vmem:[#allocation2 + $0xa8] sm:$0xff] 0.0
          %440 = vst [vmem:[#allocation2 + $0xb0] sm:$0xff] 0.0
          %441 = vst [vmem:[#allocation2 + $0xb8] sm:$0xff] 0.0
          %442 = vst [vmem:[#allocation2 + $0xc0] sm:$0xff] 0.0
          %443 = vst [vmem:[#allocation2 + $0xc8] sm:$0xff] 0.0
          %444 = vst [vmem:[#allocation2 + $0xd0] sm:$0xff] 0.0
          %445 = vst [vmem:[#allocation2 + $0xd8] sm:$0xff] 0.0
          %446 = vst [vmem:[#allocation2 + $0xe0] sm:$0xff] 0.0
          %447 = vst [vmem:[#allocation2 + $0xe8] sm:$0xff] 0.0
          %448 = vst [vmem:[#allocation2 + $0xf0] sm:$0xff] 0.0
          %449 = vst [vmem:[#allocation2 + $0xf8] sm:$0xff] 0.0
        $region52: #{tpu_custom_call.1} parent=35 // pred_fallthru
          _
        %v450 = vld [vmem:[#allocation2] sm:$0xff]
        %v451 = vld [vmem:[#allocation2 + $0x8] sm:$0xff]
        %v452 = vld [vmem:[#allocation2 + $0x10] sm:$0xff]
        %v453 = vld [vmem:[#allocation2 + $0x18] sm:$0xff]
        %v454 = vld [vmem:[#allocation2 + $0x20] sm:$0xff]
        %v455 = vld [vmem:[#allocation2 + $0x28] sm:$0xff]
        %v456 = vld [vmem:[#allocation2 + $0x30] sm:$0xff]
        %v457 = vld [vmem:[#allocation2 + $0x38] sm:$0xff]
        %v458 = vld [vmem:[#allocation2 + $0x40] sm:$0xff]
        %v459 = vld [vmem:[#allocation2 + $0x48] sm:$0xff]
        %v460 = vld [vmem:[#allocation2 + $0x50] sm:$0xff]
        %v461 = vld [vmem:[#allocation2 + $0x58] sm:$0xff]
        %v462 = vld [vmem:[#allocation2 + $0x60] sm:$0xff]
        %v463 = vld [vmem:[#allocation2 + $0x68] sm:$0xff]
        %v464 = vld [vmem:[#allocation2 + $0x70] sm:$0xff]
        %v465 = vld [vmem:[#allocation2 + $0x78] sm:$0xff]
        %v466 = vld [vmem:[#allocation2 + $0x80] sm:$0xff]
        %v467 = vld [vmem:[#allocation2 + $0x88] sm:$0xff]
        %v468 = vld [vmem:[#allocation2 + $0x90] sm:$0xff]
        %v469 = vld [vmem:[#allocation2 + $0x98] sm:$0xff]
        %v470 = vld [vmem:[#allocation2 + $0xa0] sm:$0xff]
        %v471 = vld [vmem:[#allocation2 + $0xa8] sm:$0xff]
        %v472 = vld [vmem:[#allocation2 + $0xb0] sm:$0xff]
        %v473 = vld [vmem:[#allocation2 + $0xb8] sm:$0xff]
        %v474 = vld [vmem:[#allocation2 + $0xc0] sm:$0xff]
        %v475 = vld [vmem:[#allocation2 + $0xc8] sm:$0xff]
        %v476 = vld [vmem:[#allocation2 + $0xd0] sm:$0xff]
        %v477 = vld [vmem:[#allocation2 + $0xd8] sm:$0xff]
        %v478 = vld [vmem:[#allocation2 + $0xe0] sm:$0xff]
        %v479 = vld [vmem:[#allocation2 + $0xe8] sm:$0xff]
        %v480 = vld [vmem:[#allocation2 + $0xf0] sm:$0xff]
        %v481 = vld [vmem:[#allocation2 + $0xf8] sm:$0xff]
        %v482 = vld [vmem:[%s337] sm:$0xff]
        %v483 = vld [vmem:[%s337 + $0x8] sm:$0xff]
        %v484 = vld [vmem:[%s337 + $0x10] sm:$0xff]
        %v485 = vld [vmem:[%s337 + $0x18] sm:$0xff]
        %v486 = vld [vmem:[%s354] sm:$0xff]
        %v487 = vld [vmem:[%s354 + $0x8] sm:$0xff]
        %v488 = vld [vmem:[%s354 + $0x10] sm:$0xff]
        %v489 = vld [vmem:[%s354 + $0x18] sm:$0xff]
        %v490 = vld [vmem:[%s354 + $0x20] sm:$0xff]
        %v491 = vld [vmem:[%s354 + $0x28] sm:$0xff]
        %v492 = vld [vmem:[%s354 + $0x30] sm:$0xff]
        %v493 = vld [vmem:[%s354 + $0x38] sm:$0xff]
        %v494 = vld [vmem:[%s354 + $0x40] sm:$0xff]
        %v495 = vld [vmem:[%s354 + $0x48] sm:$0xff]
        %v496 = vld [vmem:[%s354 + $0x50] sm:$0xff]
        %v497 = vld [vmem:[%s354 + $0x58] sm:$0xff]
        %v498 = vld [vmem:[%s354 + $0x60] sm:$0xff]
        %v499 = vld [vmem:[%s354 + $0x68] sm:$0xff]
        %v500 = vld [vmem:[%s354 + $0x70] sm:$0xff]
        %v501 = vld [vmem:[%s354 + $0x78] sm:$0xff]
        %v502 = vld [vmem:[%s354 + $0x80] sm:$0xff]
        %v503 = vld [vmem:[%s354 + $0x88] sm:$0xff]
        %v504 = vld [vmem:[%s354 + $0x90] sm:$0xff]
        %v505 = vld [vmem:[%s354 + $0x98] sm:$0xff]
        %v506 = vld [vmem:[%s354 + $0xa0] sm:$0xff]
        %v507 = vld [vmem:[%s354 + $0xa8] sm:$0xff]
        %v508 = vld [vmem:[%s354 + $0xb0] sm:$0xff]
        %v509 = vld [vmem:[%s354 + $0xb8] sm:$0xff]
        %v510 = vld [vmem:[%s354 + $0xc0] sm:$0xff]
        %v511 = vld [vmem:[%s354 + $0xc8] sm:$0xff]
        %v512 = vld [vmem:[%s354 + $0xd0] sm:$0xff]
        %v513 = vld [vmem:[%s354 + $0xd8] sm:$0xff]
        %v514 = vld [vmem:[%s354 + $0xe0] sm:$0xff]
        %v515 = vld [vmem:[%s354 + $0xe8] sm:$0xff]
        %v516 = vld [vmem:[%s354 + $0xf0] sm:$0xff]
        %v517 = vld [vmem:[%s354 + $0xf8] sm:$0xff]
        %v518 = vld [vmem:[%s354 + $0x100] sm:$0xff]
        %v519 = vld [vmem:[%s354 + $0x108] sm:$0xff]
        %v520 = vld [vmem:[%s354 + $0x110] sm:$0xff]
        %v521 = vld [vmem:[%s354 + $0x118] sm:$0xff]
        %v522 = vld [vmem:[%s354 + $0x120] sm:$0xff]
        %v523 = vld [vmem:[%s354 + $0x128] sm:$0xff]
        %v524 = vld [vmem:[%s354 + $0x130] sm:$0xff]
        %v525 = vld [vmem:[%s354 + $0x138] sm:$0xff]
        %v526 = vld [vmem:[%s354 + $0x140] sm:$0xff]
        %v527 = vld [vmem:[%s354 + $0x148] sm:$0xff]
        %v528 = vld [vmem:[%s354 + $0x150] sm:$0xff]
        %v529 = vld [vmem:[%s354 + $0x158] sm:$0xff]
        %v530 = vld [vmem:[%s354 + $0x160] sm:$0xff]
        %v531 = vld [vmem:[%s354 + $0x168] sm:$0xff]
        %v532 = vld [vmem:[%s354 + $0x170] sm:$0xff]
        %v533 = vld [vmem:[%s354 + $0x178] sm:$0xff]
        %v534 = vld [vmem:[%s354 + $0x180] sm:$0xff]
        %v535 = vld [vmem:[%s354 + $0x188] sm:$0xff]
        %v536 = vld [vmem:[%s354 + $0x190] sm:$0xff]
        %v537 = vld [vmem:[%s354 + $0x198] sm:$0xff]
        %v538 = vld [vmem:[%s354 + $0x1a0] sm:$0xff]
        %v539 = vld [vmem:[%s354 + $0x1a8] sm:$0xff]
        %v540 = vld [vmem:[%s354 + $0x1b0] sm:$0xff]
        %v541 = vld [vmem:[%s354 + $0x1b8] sm:$0xff]
        %v542 = vld [vmem:[%s354 + $0x1c0] sm:$0xff]
        %v543 = vld [vmem:[%s354 + $0x1c8] sm:$0xff]
        %v544 = vld [vmem:[%s354 + $0x1d0] sm:$0xff]
        %v545 = vld [vmem:[%s354 + $0x1d8] sm:$0xff]
        %v546 = vld [vmem:[%s354 + $0x1e0] sm:$0xff]
        %v547 = vld [vmem:[%s354 + $0x1e8] sm:$0xff]
        %v548 = vld [vmem:[%s354 + $0x1f0] sm:$0xff]
        %v549 = vld [vmem:[%s354 + $0x1f8] sm:$0xff]
        %v550 = vld [vmem:[%s354 + $0x200] sm:$0xff]
        %v551 = vld [vmem:[%s354 + $0x208] sm:$0xff]
        %v552 = vld [vmem:[%s354 + $0x210] sm:$0xff]
        %v553 = vld [vmem:[%s354 + $0x218] sm:$0xff]
        %v554 = vld [vmem:[%s354 + $0x220] sm:$0xff]
        %v555 = vld [vmem:[%s354 + $0x228] sm:$0xff]
        %v556 = vld [vmem:[%s354 + $0x230] sm:$0xff]
        %v557 = vld [vmem:[%s354 + $0x238] sm:$0xff]
        %v558 = vld [vmem:[%s354 + $0x240] sm:$0xff]
        %v559 = vld [vmem:[%s354 + $0x248] sm:$0xff]
        %v560 = vld [vmem:[%s354 + $0x250] sm:$0xff]
        %v561 = vld [vmem:[%s354 + $0x258] sm:$0xff]
        %v562 = vld [vmem:[%s354 + $0x260] sm:$0xff]
        %v563 = vld [vmem:[%s354 + $0x268] sm:$0xff]
        %v564 = vld [vmem:[%s354 + $0x270] sm:$0xff]
        %v565 = vld [vmem:[%s354 + $0x278] sm:$0xff]
        %v566 = vld [vmem:[%s354 + $0x280] sm:$0xff]
        %v567 = vld [vmem:[%s354 + $0x288] sm:$0xff]
        %v568 = vld [vmem:[%s354 + $0x290] sm:$0xff]
        %v569 = vld [vmem:[%s354 + $0x298] sm:$0xff]
        %v570 = vld [vmem:[%s354 + $0x2a0] sm:$0xff]
        %v571 = vld [vmem:[%s354 + $0x2a8] sm:$0xff]
        %v572 = vld [vmem:[%s354 + $0x2b0] sm:$0xff]
        %v573 = vld [vmem:[%s354 + $0x2b8] sm:$0xff]
        %v574 = vld [vmem:[%s354 + $0x2c0] sm:$0xff]
        %v575 = vld [vmem:[%s354 + $0x2c8] sm:$0xff]
        %v576 = vld [vmem:[%s354 + $0x2d0] sm:$0xff]
        %v577 = vld [vmem:[%s354 + $0x2d8] sm:$0xff]
        %v578 = vld [vmem:[%s354 + $0x2e0] sm:$0xff]
        %v579 = vld [vmem:[%s354 + $0x2e8] sm:$0xff]
        %v580 = vld [vmem:[%s354 + $0x2f0] sm:$0xff]
        %v581 = vld [vmem:[%s354 + $0x2f8] sm:$0xff]
        %v582 = vld [vmem:[%s354 + $0x300] sm:$0xff]
        %v583 = vld [vmem:[%s354 + $0x308] sm:$0xff]
        %v584 = vld [vmem:[%s354 + $0x310] sm:$0xff]
        %v585 = vld [vmem:[%s354 + $0x318] sm:$0xff]
        %v586 = vld [vmem:[%s354 + $0x320] sm:$0xff]
        %v587 = vld [vmem:[%s354 + $0x328] sm:$0xff]
        %v588 = vld [vmem:[%s354 + $0x330] sm:$0xff]
        %v589 = vld [vmem:[%s354 + $0x338] sm:$0xff]
        %v590 = vld [vmem:[%s354 + $0x340] sm:$0xff]
        %v591 = vld [vmem:[%s354 + $0x348] sm:$0xff]
        %v592 = vld [vmem:[%s354 + $0x350] sm:$0xff]
        %v593 = vld [vmem:[%s354 + $0x358] sm:$0xff]
        %v594 = vld [vmem:[%s354 + $0x360] sm:$0xff]
        %v595 = vld [vmem:[%s354 + $0x368] sm:$0xff]
        %v596 = vld [vmem:[%s354 + $0x370] sm:$0xff]
        %v597 = vld [vmem:[%s354 + $0x378] sm:$0xff]
        %v598 = vld [vmem:[%s354 + $0x380] sm:$0xff]
        %v599 = vld [vmem:[%s354 + $0x388] sm:$0xff]
        %v600 = vld [vmem:[%s354 + $0x390] sm:$0xff]
        %v601 = vld [vmem:[%s354 + $0x398] sm:$0xff]
        %v602 = vld [vmem:[%s354 + $0x3a0] sm:$0xff]
        %v603 = vld [vmem:[%s354 + $0x3a8] sm:$0xff]
        %v604 = vld [vmem:[%s354 + $0x3b0] sm:$0xff]
        %v605 = vld [vmem:[%s354 + $0x3b8] sm:$0xff]
        %v606 = vld [vmem:[%s354 + $0x3c0] sm:$0xff]
        %v607 = vld [vmem:[%s354 + $0x3c8] sm:$0xff]
        %v608 = vld [vmem:[%s354 + $0x3d0] sm:$0xff]
        %v609 = vld [vmem:[%s354 + $0x3d8] sm:$0xff]
        %v610 = vld [vmem:[%s354 + $0x3e0] sm:$0xff]
        %v611 = vld [vmem:[%s354 + $0x3e8] sm:$0xff]
        %v612 = vld [vmem:[%s354 + $0x3f0] sm:$0xff]
        %v613 = vld [vmem:[%s354 + $0x3f8] sm:$0xff]
        %v618 = vunpack.c.l.b16 %v482
        %v619 = vunpack.c.h.b16 %v482
        %v620 = vunpack.c.l.b16 %v483
        %v621 = vunpack.c.h.b16 %v483
        %v622 = vunpack.c.l.b16 %v484
        %v623 = vunpack.c.h.b16 %v484
        %v624 = vunpack.c.l.b16 %v485
        %v625 = vunpack.c.h.b16 %v485
        %v626 = vpack.c.b16 %v620, %v618
        %v627 = vpack.c.b16 %v621, %v619
        %v628 = vpack.c.b16 %v624, %v622
        %v629 = vpack.c.b16 %v625, %v623
        %v762 = vunpack.c.l.b16 %v486
        %v763 = vunpack.c.h.b16 %v486
        %v764 = vunpack.c.l.b16 %v487
        %v765 = vunpack.c.h.b16 %v487
        %v766 = vunpack.c.l.b16 %v488
        %v767 = vunpack.c.h.b16 %v488
        %v768 = vunpack.c.l.b16 %v489
        %v769 = vunpack.c.h.b16 %v489
        %v770 = vunpack.c.l.b16 %v490
        %v771 = vunpack.c.h.b16 %v490
        %v772 = vunpack.c.l.b16 %v491
        %v773 = vunpack.c.h.b16 %v491
        %v774 = vunpack.c.l.b16 %v492
        %v775 = vunpack.c.h.b16 %v492
        %v776 = vunpack.c.l.b16 %v493
        %v777 = vunpack.c.h.b16 %v493
        %v778 = vunpack.c.l.b16 %v494
        %v779 = vunpack.c.h.b16 %v494
        %v780 = vunpack.c.l.b16 %v495
        %v781 = vunpack.c.h.b16 %v495
        %v782 = vunpack.c.l.b16 %v496
        %v783 = vunpack.c.h.b16 %v496
        %v784 = vunpack.c.l.b16 %v497
        %v785 = vunpack.c.h.b16 %v497
        %v786 = vunpack.c.l.b16 %v498
        %v787 = vunpack.c.h.b16 %v498
        %v788 = vunpack.c.l.b16 %v499
        %v789 = vunpack.c.h.b16 %v499
        %v790 = vunpack.c.l.b16 %v500
        %v791 = vunpack.c.h.b16 %v500
        %v792 = vunpack.c.l.b16 %v501
        %v793 = vunpack.c.h.b16 %v501
        %v794 = vunpack.c.l.b16 %v502
        %v795 = vunpack.c.h.b16 %v502
        %v796 = vunpack.c.l.b16 %v503
        %v797 = vunpack.c.h.b16 %v503
        %v798 = vunpack.c.l.b16 %v504
        %v799 = vunpack.c.h.b16 %v504
        %v800 = vunpack.c.l.b16 %v505
        %v801 = vunpack.c.h.b16 %v505
        %v802 = vunpack.c.l.b16 %v506
        %v803 = vunpack.c.h.b16 %v506
        %v804 = vunpack.c.l.b16 %v507
        %v805 = vunpack.c.h.b16 %v507
        %v806 = vunpack.c.l.b16 %v508
        %v807 = vunpack.c.h.b16 %v508
        %v808 = vunpack.c.l.b16 %v509
        %v809 = vunpack.c.h.b16 %v509
        %v810 = vunpack.c.l.b16 %v510
        %v811 = vunpack.c.h.b16 %v510
        %v812 = vunpack.c.l.b16 %v511
        %v813 = vunpack.c.h.b16 %v511
        %v814 = vunpack.c.l.b16 %v512
        %v815 = vunpack.c.h.b16 %v512
        %v816 = vunpack.c.l.b16 %v513
        %v817 = vunpack.c.h.b16 %v513
        %v818 = vunpack.c.l.b16 %v514
        %v819 = vunpack.c.h.b16 %v514
        %v820 = vunpack.c.l.b16 %v515
        %v821 = vunpack.c.h.b16 %v515
        %v822 = vunpack.c.l.b16 %v516
        %v823 = vunpack.c.h.b16 %v516
        %v824 = vunpack.c.l.b16 %v517
        %v825 = vunpack.c.h.b16 %v517
        %v826 = vunpack.c.l.b16 %v518
        %v827 = vunpack.c.h.b16 %v518
        %v828 = vunpack.c.l.b16 %v519
        %v829 = vunpack.c.h.b16 %v519
        %v830 = vunpack.c.l.b16 %v520
        %v831 = vunpack.c.h.b16 %v520
        %v832 = vunpack.c.l.b16 %v521
        %v833 = vunpack.c.h.b16 %v521
        %v834 = vunpack.c.l.b16 %v522
        %v835 = vunpack.c.h.b16 %v522
        %v836 = vunpack.c.l.b16 %v523
        %v837 = vunpack.c.h.b16 %v523
        %v838 = vunpack.c.l.b16 %v524
        %v839 = vunpack.c.h.b16 %v524
        %v840 = vunpack.c.l.b16 %v525
        %v841 = vunpack.c.h.b16 %v525
        %v842 = vunpack.c.l.b16 %v526
        %v843 = vunpack.c.h.b16 %v526
        %v844 = vunpack.c.l.b16 %v527
        %v845 = vunpack.c.h.b16 %v527
        %v846 = vunpack.c.l.b16 %v528
        %v847 = vunpack.c.h.b16 %v528
        %v848 = vunpack.c.l.b16 %v529
        %v849 = vunpack.c.h.b16 %v529
        %v850 = vunpack.c.l.b16 %v530
        %v851 = vunpack.c.h.b16 %v530
        %v852 = vunpack.c.l.b16 %v531
        %v853 = vunpack.c.h.b16 %v531
        %v854 = vunpack.c.l.b16 %v532
        %v855 = vunpack.c.h.b16 %v532
        %v856 = vunpack.c.l.b16 %v533
        %v857 = vunpack.c.h.b16 %v533
        %v858 = vunpack.c.l.b16 %v534
        %v859 = vunpack.c.h.b16 %v534
        %v860 = vunpack.c.l.b16 %v535
        %v861 = vunpack.c.h.b16 %v535
        %v862 = vunpack.c.l.b16 %v536
        %v863 = vunpack.c.h.b16 %v536
        %v864 = vunpack.c.l.b16 %v537
        %v865 = vunpack.c.h.b16 %v537
        %v866 = vunpack.c.l.b16 %v538
        %v867 = vunpack.c.h.b16 %v538
        %v868 = vunpack.c.l.b16 %v539
        %v869 = vunpack.c.h.b16 %v539
        %v870 = vunpack.c.l.b16 %v540
        %v871 = vunpack.c.h.b16 %v540
        %v872 = vunpack.c.l.b16 %v541
        %v873 = vunpack.c.h.b16 %v541
        %v874 = vunpack.c.l.b16 %v542
        %v875 = vunpack.c.h.b16 %v542
        %v876 = vunpack.c.l.b16 %v543
        %v877 = vunpack.c.h.b16 %v543
        %v878 = vunpack.c.l.b16 %v544
        %v879 = vunpack.c.h.b16 %v544
        %v880 = vunpack.c.l.b16 %v545
        %v881 = vunpack.c.h.b16 %v545
        %v882 = vunpack.c.l.b16 %v546
        %v883 = vunpack.c.h.b16 %v546
        %v884 = vunpack.c.l.b16 %v547
        %v885 = vunpack.c.h.b16 %v547
        %v886 = vunpack.c.l.b16 %v548
        %v887 = vunpack.c.h.b16 %v548
        %v888 = vunpack.c.l.b16 %v549
        %v889 = vunpack.c.h.b16 %v549
        %v890 = vunpack.c.l.b16 %v550
        %v891 = vunpack.c.h.b16 %v550
        %v892 = vunpack.c.l.b16 %v551
        %v893 = vunpack.c.h.b16 %v551
        %v894 = vunpack.c.l.b16 %v552
        %v895 = vunpack.c.h.b16 %v552
        %v896 = vunpack.c.l.b16 %v553
        %v897 = vunpack.c.h.b16 %v553
        %v898 = vunpack.c.l.b16 %v554
        %v899 = vunpack.c.h.b16 %v554
        %v900 = vunpack.c.l.b16 %v555
        %v901 = vunpack.c.h.b16 %v555
        %v902 = vunpack.c.l.b16 %v556
        %v903 = vunpack.c.h.b16 %v556
        %v904 = vunpack.c.l.b16 %v557
        %v905 = vunpack.c.h.b16 %v557
        %v906 = vunpack.c.l.b16 %v558
        %v907 = vunpack.c.h.b16 %v558
        %v908 = vunpack.c.l.b16 %v559
        %v909 = vunpack.c.h.b16 %v559
        %v910 = vunpack.c.l.b16 %v560
        %v911 = vunpack.c.h.b16 %v560
        %v912 = vunpack.c.l.b16 %v561
        %v913 = vunpack.c.h.b16 %v561
        %v914 = vunpack.c.l.b16 %v562
        %v915 = vunpack.c.h.b16 %v562
        %v916 = vunpack.c.l.b16 %v563
        %v917 = vunpack.c.h.b16 %v563
        %v918 = vunpack.c.l.b16 %v564
        %v919 = vunpack.c.h.b16 %v564
        %v920 = vunpack.c.l.b16 %v565
        %v921 = vunpack.c.h.b16 %v565
        %v922 = vunpack.c.l.b16 %v566
        %v923 = vunpack.c.h.b16 %v566
        %v924 = vunpack.c.l.b16 %v567
        %v925 = vunpack.c.h.b16 %v567
        %v926 = vunpack.c.l.b16 %v568
        %v927 = vunpack.c.h.b16 %v568
        %v928 = vunpack.c.l.b16 %v569
        %v929 = vunpack.c.h.b16 %v569
        %v930 = vunpack.c.l.b16 %v570
        %v931 = vunpack.c.h.b16 %v570
        %v932 = vunpack.c.l.b16 %v571
        %v933 = vunpack.c.h.b16 %v571
        %v934 = vunpack.c.l.b16 %v572
        %v935 = vunpack.c.h.b16 %v572
        %v936 = vunpack.c.l.b16 %v573
        %v937 = vunpack.c.h.b16 %v573
        %v938 = vunpack.c.l.b16 %v574
        %v939 = vunpack.c.h.b16 %v574
        %v940 = vunpack.c.l.b16 %v575
        %v941 = vunpack.c.h.b16 %v575
        %v942 = vunpack.c.l.b16 %v576
        %v943 = vunpack.c.h.b16 %v576
        %v944 = vunpack.c.l.b16 %v577
        %v945 = vunpack.c.h.b16 %v577
        %v946 = vunpack.c.l.b16 %v578
        %v947 = vunpack.c.h.b16 %v578
        %v948 = vunpack.c.l.b16 %v579
        %v949 = vunpack.c.h.b16 %v579
        %v950 = vunpack.c.l.b16 %v580
        %v951 = vunpack.c.h.b16 %v580
        %v952 = vunpack.c.l.b16 %v581
        %v953 = vunpack.c.h.b16 %v581
        %v954 = vunpack.c.l.b16 %v582
        %v955 = vunpack.c.h.b16 %v582
        %v956 = vunpack.c.l.b16 %v583
        %v957 = vunpack.c.h.b16 %v583
        %v958 = vunpack.c.l.b16 %v584
        %v959 = vunpack.c.h.b16 %v584
        %v960 = vunpack.c.l.b16 %v585
        %v961 = vunpack.c.h.b16 %v585
        %v962 = vunpack.c.l.b16 %v586
        %v963 = vunpack.c.h.b16 %v586
        %v964 = vunpack.c.l.b16 %v587
        %v965 = vunpack.c.h.b16 %v587
        %v966 = vunpack.c.l.b16 %v588
        %v967 = vunpack.c.h.b16 %v588
        %v968 = vunpack.c.l.b16 %v589
        %v969 = vunpack.c.h.b16 %v589
        %v970 = vunpack.c.l.b16 %v590
        %v971 = vunpack.c.h.b16 %v590
        %v972 = vunpack.c.l.b16 %v591
        %v973 = vunpack.c.h.b16 %v591
        %v974 = vunpack.c.l.b16 %v592
        %v975 = vunpack.c.h.b16 %v592
        %v976 = vunpack.c.l.b16 %v593
        %v977 = vunpack.c.h.b16 %v593
        %v978 = vunpack.c.l.b16 %v594
        %v979 = vunpack.c.h.b16 %v594
        %v980 = vunpack.c.l.b16 %v595
        %v981 = vunpack.c.h.b16 %v595
        %v982 = vunpack.c.l.b16 %v596
        %v983 = vunpack.c.h.b16 %v596
        %v984 = vunpack.c.l.b16 %v597
        %v985 = vunpack.c.h.b16 %v597
        %v986 = vunpack.c.l.b16 %v598
        %v987 = vunpack.c.h.b16 %v598
        %v988 = vunpack.c.l.b16 %v599
        %v989 = vunpack.c.h.b16 %v599
        %v990 = vunpack.c.l.b16 %v600
        %v991 = vunpack.c.h.b16 %v600
        %v992 = vunpack.c.l.b16 %v601
        %v993 = vunpack.c.h.b16 %v601
        %v994 = vunpack.c.l.b16 %v602
        %v995 = vunpack.c.h.b16 %v602
        %v996 = vunpack.c.l.b16 %v603
        %v997 = vunpack.c.h.b16 %v603
        %v998 = vunpack.c.l.b16 %v604
        %v999 = vunpack.c.h.b16 %v604
        %v1000 = vunpack.c.l.b16 %v605
        %v1001 = vunpack.c.h.b16 %v605
        %v1002 = vunpack.c.l.b16 %v606
        %v1003 = vunpack.c.h.b16 %v606
        %v1004 = vunpack.c.l.b16 %v607
        %v1005 = vunpack.c.h.b16 %v607
        %v1006 = vunpack.c.l.b16 %v608
        %v1007 = vunpack.c.h.b16 %v608
        %v1008 = vunpack.c.l.b16 %v609
        %v1009 = vunpack.c.h.b16 %v609
        %v1010 = vunpack.c.l.b16 %v610
        %v1011 = vunpack.c.h.b16 %v610
        %v1012 = vunpack.c.l.b16 %v611
        %v1013 = vunpack.c.h.b16 %v611
        %v1014 = vunpack.c.l.b16 %v612
        %v1015 = vunpack.c.h.b16 %v612
        %v1016 = vunpack.c.l.b16 %v613
        %v1017 = vunpack.c.h.b16 %v613
        %v1018 = vpack.c.b16 %v770, %v762
        %v1019 = vpack.c.b16 %v771, %v763
        %v1020 = vpack.c.b16 %v772, %v764
        %v1021 = vpack.c.b16 %v773, %v765
        %v1022 = vpack.c.b16 %v774, %v766
        %v1023 = vpack.c.b16 %v775, %v767
        %v1024 = vpack.c.b16 %v776, %v768
        %v1025 = vpack.c.b16 %v777, %v769
        %v1026 = vpack.c.b16 %v786, %v778
        %v1027 = vpack.c.b16 %v787, %v779
        %v1028 = vpack.c.b16 %v788, %v780
        %v1029 = vpack.c.b16 %v789, %v781
        %v1030 = vpack.c.b16 %v790, %v782
        %v1031 = vpack.c.b16 %v791, %v783
        %v1032 = vpack.c.b16 %v792, %v784
        %v1033 = vpack.c.b16 %v793, %v785
        %v1034 = vpack.c.b16 %v802, %v794
        %v1035 = vpack.c.b16 %v803, %v795
        %v1036 = vpack.c.b16 %v804, %v796
        %v1037 = vpack.c.b16 %v805, %v797
        %v1038 = vpack.c.b16 %v806, %v798
        %v1039 = vpack.c.b16 %v807, %v799
        %v1040 = vpack.c.b16 %v808, %v800
        %v1041 = vpack.c.b16 %v809, %v801
        %v1042 = vpack.c.b16 %v818, %v810
        %v1043 = vpack.c.b16 %v819, %v811
        %v1044 = vpack.c.b16 %v820, %v812
        %v1045 = vpack.c.b16 %v821, %v813
        %v1046 = vpack.c.b16 %v822, %v814
        %v1047 = vpack.c.b16 %v823, %v815
        %v1048 = vpack.c.b16 %v824, %v816
        %v1049 = vpack.c.b16 %v825, %v817
        %v1050 = vpack.c.b16 %v834, %v826
        %v1051 = vpack.c.b16 %v835, %v827
        %v1052 = vpack.c.b16 %v836, %v828
        %v1053 = vpack.c.b16 %v837, %v829
        %v1054 = vpack.c.b16 %v838, %v830
        %v1055 = vpack.c.b16 %v839, %v831
        %v1056 = vpack.c.b16 %v840, %v832
        %v1057 = vpack.c.b16 %v841, %v833
        %v1058 = vpack.c.b16 %v850, %v842
        %v1059 = vpack.c.b16 %v851, %v843
        %v1060 = vpack.c.b16 %v852, %v844
        %v1061 = vpack.c.b16 %v853, %v845
        %v1062 = vpack.c.b16 %v854, %v846
        %v1063 = vpack.c.b16 %v855, %v847
        %v1064 = vpack.c.b16 %v856, %v848
        %v1065 = vpack.c.b16 %v857, %v849
        %v1066 = vpack.c.b16 %v866, %v858
        %v1067 = vpack.c.b16 %v867, %v859
        %v1068 = vpack.c.b16 %v868, %v860
        %v1069 = vpack.c.b16 %v869, %v861
        %v1070 = vpack.c.b16 %v870, %v862
        %v1071 = vpack.c.b16 %v871, %v863
        %v1072 = vpack.c.b16 %v872, %v864
        %v1073 = vpack.c.b16 %v873, %v865
        %v1074 = vpack.c.b16 %v882, %v874
        %v1075 = vpack.c.b16 %v883, %v875
        %v1076 = vpack.c.b16 %v884, %v876
        %v1077 = vpack.c.b16 %v885, %v877
        %v1078 = vpack.c.b16 %v886, %v878
        %v1079 = vpack.c.b16 %v887, %v879
        %v1080 = vpack.c.b16 %v888, %v880
        %v1081 = vpack.c.b16 %v889, %v881
        %v1082 = vpack.c.b16 %v898, %v890
        %v1083 = vpack.c.b16 %v899, %v891
        %v1084 = vpack.c.b16 %v900, %v892
        %v1085 = vpack.c.b16 %v901, %v893
        %v1086 = vpack.c.b16 %v902, %v894
        %v1087 = vpack.c.b16 %v903, %v895
        %v1088 = vpack.c.b16 %v904, %v896
        %v1089 = vpack.c.b16 %v905, %v897
        %v1090 = vpack.c.b16 %v914, %v906
        %v1091 = vpack.c.b16 %v915, %v907
        %v1092 = vpack.c.b16 %v916, %v908
        %v1093 = vpack.c.b16 %v917, %v909
        %v1094 = vpack.c.b16 %v918, %v910
        %v1095 = vpack.c.b16 %v919, %v911
        %v1096 = vpack.c.b16 %v920, %v912
        %v1097 = vpack.c.b16 %v921, %v913
        %v1098 = vpack.c.b16 %v930, %v922
        %v1099 = vpack.c.b16 %v931, %v923
        %v1100 = vpack.c.b16 %v932, %v924
        %v1101 = vpack.c.b16 %v933, %v925
        %v1102 = vpack.c.b16 %v934, %v926
        %v1103 = vpack.c.b16 %v935, %v927
        %v1104 = vpack.c.b16 %v936, %v928
        %v1105 = vpack.c.b16 %v937, %v929
        %v1106 = vpack.c.b16 %v946, %v938
        %v1107 = vpack.c.b16 %v947, %v939
        %v1108 = vpack.c.b16 %v948, %v940
        %v1109 = vpack.c.b16 %v949, %v941
        %v1110 = vpack.c.b16 %v950, %v942
        %v1111 = vpack.c.b16 %v951, %v943
        %v1112 = vpack.c.b16 %v952, %v944
        %v1113 = vpack.c.b16 %v953, %v945
        %v1114 = vpack.c.b16 %v962, %v954
        %v1115 = vpack.c.b16 %v963, %v955
        %v1116 = vpack.c.b16 %v964, %v956
        %v1117 = vpack.c.b16 %v965, %v957
        %v1118 = vpack.c.b16 %v966, %v958
        %v1119 = vpack.c.b16 %v967, %v959
        %v1120 = vpack.c.b16 %v968, %v960
        %v1121 = vpack.c.b16 %v969, %v961
        %v1122 = vpack.c.b16 %v978, %v970
        %v1123 = vpack.c.b16 %v979, %v971
        %v1124 = vpack.c.b16 %v980, %v972
        %v1125 = vpack.c.b16 %v981, %v973
        %v1126 = vpack.c.b16 %v982, %v974
        %v1127 = vpack.c.b16 %v983, %v975
        %v1128 = vpack.c.b16 %v984, %v976
        %v1129 = vpack.c.b16 %v985, %v977
        %v1130 = vpack.c.b16 %v994, %v986
        %v1131 = vpack.c.b16 %v995, %v987
        %v1132 = vpack.c.b16 %v996, %v988
        %v1133 = vpack.c.b16 %v997, %v989
        %v1134 = vpack.c.b16 %v998, %v990
        %v1135 = vpack.c.b16 %v999, %v991
        %v1136 = vpack.c.b16 %v1000, %v992
        %v1137 = vpack.c.b16 %v1001, %v993
        %v1138 = vpack.c.b16 %v1010, %v1002
        %v1139 = vpack.c.b16 %v1011, %v1003
        %v1140 = vpack.c.b16 %v1012, %v1004
        %v1141 = vpack.c.b16 %v1013, %v1005
        %v1142 = vpack.c.b16 %v1014, %v1006
        %v1143 = vpack.c.b16 %v1015, %v1007
        %v1144 = vpack.c.b16 %v1016, %v1008
        %v1145 = vpack.c.b16 %v1017, %v1009
        %1274 = vmatprep.subr.bf16.mxu0 %v1075
        %1275 = vmatpush1.bf16.msra.mxu0 %v1074
        %1276 = vmatprep.subr.bf16.mxu0 %v1067
        %1277 = vmatpush1.bf16.msra.mxu0 %v1066
        %1278 = vmatprep.subr.bf16.mxu0 %v1059
        %1279 = vmatpush1.bf16.msra.mxu0 %v1058
        %1280 = vmatprep.subr.bf16.mxu0 %v1051
        %1281 = vmatpush1.bf16.msra.mxu0 %v1050
        %1282 = vmatprep.subr.bf16.mxu0 %v1043
        %1283 = vmatpush1.bf16.msra.mxu0 %v1042
        %1284 = vmatprep.subr.bf16.mxu0 %v1035
        %1285 = vmatpush1.bf16.msra.mxu0 %v1034
        %1286 = vmatprep.subr.bf16.mxu0 %v1027
        %1287 = vmatpush1.bf16.msra.mxu0 %v1026
        %1288 = vmatprep.subr.bf16.mxu0 %v1019
        %1289 = vmatpush1.bf16.msra.mxu0 %v1018
        %1290 = vmatprep.subr.bf16.mxu0 %v1139
        %1291 = vmatpush2.bf16.msra.mxu0 %v1138
        %1292 = vmatprep.subr.bf16.mxu0 %v1131
        %1293 = vmatpush2.bf16.msra.mxu0 %v1130
        %1294 = vmatprep.subr.bf16.mxu0 %v1123
        %1295 = vmatpush2.bf16.msra.mxu0 %v1122
        %1296 = vmatprep.subr.bf16.mxu0 %v1115
        %1297 = vmatpush2.bf16.msra.mxu0 %v1114
        %1298 = vmatprep.subr.bf16.mxu0 %v1107
        %1299 = vmatpush2.bf16.msra.mxu0 %v1106
        %1300 = vmatprep.subr.bf16.mxu0 %v1099
        %1301 = vmatpush2.bf16.msra.mxu0 %v1098
        %1302 = vmatprep.subr.bf16.mxu0 %v1091
        %1303 = vmatpush2.bf16.msra.mxu0 %v1090
        %1304 = vmatprep.subr.bf16.mxu0 %v1083
        %1305 = vmatpush2.bf16.msra.mxu0 %v1082
        %1306 = vmatprep.mubr.bf16.mxu0 %v627
        %1307 = vmatmul.mubr.bf16.gmra.mxu0 %v626
        %v1308 = vpop.f32.mrf.mxu0
        %v1309 = vadd.f32 0.0, %v1308
        %v1310 = vpop.f32.mrf.mxu0
        %v1311 = vadd.f32 0.0, %v1310
        %v1312 = vpop.f32.mrf.mxu0
        %v1313 = vadd.f32 0.0, %v1312
        %v1314 = vpop.f32.mrf.mxu0
        %v1315 = vadd.f32 0.0, %v1314
        %1316 = vmatprep.mubr.bf16.mxu0 %v629
        %1317 = vmatmul.mubr.bf16.gmra.mxu0 %v628
        %v1318 = vpop.f32.mrf.mxu0
        %v1319 = vadd.f32 0.0, %v1318
        %v1320 = vpop.f32.mrf.mxu0
        %v1321 = vadd.f32 0.0, %v1320
        %v1322 = vpop.f32.mrf.mxu0
        %v1323 = vadd.f32 0.0, %v1322
        %v1324 = vpop.f32.mrf.mxu0
        %v1325 = vadd.f32 0.0, %v1324
        %1326 = vdwg.mxu0
        %1327 = vmatprep.subr.bf16.mxu0 %v1077
        %1328 = vmatpush1.bf16.msra.mxu0 %v1076
        %1329 = vmatprep.subr.bf16.mxu0 %v1069
        %1330 = vmatpush1.bf16.msra.mxu0 %v1068
        %1331 = vmatprep.subr.bf16.mxu0 %v1061
        %1332 = vmatpush1.bf16.msra.mxu0 %v1060
        %1333 = vmatprep.subr.bf16.mxu0 %v1053
        %1334 = vmatpush1.bf16.msra.mxu0 %v1052
        %1335 = vmatprep.subr.bf16.mxu0 %v1045
        %1336 = vmatpush1.bf16.msra.mxu0 %v1044
        %1337 = vmatprep.subr.bf16.mxu0 %v1037
        %1338 = vmatpush1.bf16.msra.mxu0 %v1036
        %1339 = vmatprep.subr.bf16.mxu0 %v1029
        %1340 = vmatpush1.bf16.msra.mxu0 %v1028
        %1341 = vmatprep.subr.bf16.mxu0 %v1021
        %1342 = vmatpush1.bf16.msra.mxu0 %v1020
        %1343 = vmatprep.subr.bf16.mxu0 %v1141
        %1344 = vmatpush2.bf16.msra.mxu0 %v1140
        %1345 = vmatprep.subr.bf16.mxu0 %v1133
        %1346 = vmatpush2.bf16.msra.mxu0 %v1132
        %1347 = vmatprep.subr.bf16.mxu0 %v1125
        %1348 = vmatpush2.bf16.msra.mxu0 %v1124
        %1349 = vmatprep.subr.bf16.mxu0 %v1117
        %1350 = vmatpush2.bf16.msra.mxu0 %v1116
        %1351 = vmatprep.subr.bf16.mxu0 %v1109
        %1352 = vmatpush2.bf16.msra.mxu0 %v1108
        %1353 = vmatprep.subr.bf16.mxu0 %v1101
        %1354 = vmatpush2.bf16.msra.mxu0 %v1100
        %1355 = vmatprep.subr.bf16.mxu0 %v1093
        %1356 = vmatpush2.bf16.msra.mxu0 %v1092
        %1357 = vmatprep.subr.bf16.mxu0 %v1085
        %1358 = vmatpush2.bf16.msra.mxu0 %v1084
        %1359 = vmatprep.mubr.bf16.mxu0 %v627
        %1360 = vmatmul.mubr.bf16.gmra.mxu0 %v626
        %v1361 = vpop.f32.mrf.mxu0
        %v1362 = vadd.f32 0.0, %v1361
        %v1363 = vpop.f32.mrf.mxu0
        %v1364 = vadd.f32 0.0, %v1363
        %v1365 = vpop.f32.mrf.mxu0
        %v1366 = vadd.f32 0.0, %v1365
        %v1367 = vpop.f32.mrf.mxu0
        %v1368 = vadd.f32 0.0, %v1367
        %1369 = vmatprep.mubr.bf16.mxu0 %v629
        %1370 = vmatmul.mubr.bf16.gmra.mxu0 %v628
        %v1371 = vpop.f32.mrf.mxu0
        %v1372 = vadd.f32 0.0, %v1371
        %v1373 = vpop.f32.mrf.mxu0
        %v1374 = vadd.f32 0.0, %v1373
        %v1375 = vpop.f32.mrf.mxu0
        %v1376 = vadd.f32 0.0, %v1375
        %v1377 = vpop.f32.mrf.mxu0
        %v1378 = vadd.f32 0.0, %v1377
        %1379 = vdwg.mxu0
        %1380 = vmatprep.subr.bf16.mxu0 %v1079
        %1381 = vmatpush1.bf16.msra.mxu0 %v1078
        %1382 = vmatprep.subr.bf16.mxu0 %v1071
        %1383 = vmatpush1.bf16.msra.mxu0 %v1070
        %1384 = vmatprep.subr.bf16.mxu0 %v1063
        %1385 = vmatpush1.bf16.msra.mxu0 %v1062
        %1386 = vmatprep.subr.bf16.mxu0 %v1055
        %1387 = vmatpush1.bf16.msra.mxu0 %v1054
        %1388 = vmatprep.subr.bf16.mxu0 %v1047
        %1389 = vmatpush1.bf16.msra.mxu0 %v1046
        %1390 = vmatprep.subr.bf16.mxu0 %v1039
        %1391 = vmatpush1.bf16.msra.mxu0 %v1038
        %1392 = vmatprep.subr.bf16.mxu0 %v1031
        %1393 = vmatpush1.bf16.msra.mxu0 %v1030
        %1394 = vmatprep.subr.bf16.mxu0 %v1023
        %1395 = vmatpush1.bf16.msra.mxu0 %v1022
        %1396 = vmatprep.subr.bf16.mxu0 %v1143
        %1397 = vmatpush2.bf16.msra.mxu0 %v1142
        %1398 = vmatprep.subr.bf16.mxu0 %v1135
        %1399 = vmatpush2.bf16.msra.mxu0 %v1134
        %1400 = vmatprep.subr.bf16.mxu0 %v1127
        %1401 = vmatpush2.bf16.msra.mxu0 %v1126
        %1402 = vmatprep.subr.bf16.mxu0 %v1119
        %1403 = vmatpush2.bf16.msra.mxu0 %v1118
        %1404 = vmatprep.subr.bf16.mxu0 %v1111
        %1405 = vmatpush2.bf16.msra.mxu0 %v1110
        %1406 = vmatprep.subr.bf16.mxu0 %v1103
        %1407 = vmatpush2.bf16.msra.mxu0 %v1102
        %1408 = vmatprep.subr.bf16.mxu0 %v1095
        %1409 = vmatpush2.bf16.msra.mxu0 %v1094
        %1410 = vmatprep.subr.bf16.mxu0 %v1087
        %1411 = vmatpush2.bf16.msra.mxu0 %v1086
        %1412 = vmatprep.mubr.bf16.mxu0 %v627
        %1413 = vmatmul.mubr.bf16.gmra.mxu0 %v626
        %v1414 = vpop.f32.mrf.mxu0
        %v1415 = vadd.f32 0.0, %v1414
        %v1416 = vpop.f32.mrf.mxu0
        %v1417 = vadd.f32 0.0, %v1416
        %v1418 = vpop.f32.mrf.mxu0
        %v1419 = vadd.f32 0.0, %v1418
        %v1420 = vpop.f32.mrf.mxu0
        %v1421 = vadd.f32 0.0, %v1420
        %1422 = vmatprep.mubr.bf16.mxu0 %v629
        %1423 = vmatmul.mubr.bf16.gmra.mxu0 %v628
        %v1424 = vpop.f32.mrf.mxu0
        %v1425 = vadd.f32 0.0, %v1424
        %v1426 = vpop.f32.mrf.mxu0
        %v1427 = vadd.f32 0.0, %v1426
        %v1428 = vpop.f32.mrf.mxu0
        %v1429 = vadd.f32 0.0, %v1428
        %v1430 = vpop.f32.mrf.mxu0
        %v1431 = vadd.f32 0.0, %v1430
        %1432 = vdwg.mxu0
        %1433 = vmatprep.subr.bf16.mxu0 %v1081
        %1434 = vmatpush1.bf16.msra.mxu0 %v1080
        %1435 = vmatprep.subr.bf16.mxu0 %v1073
        %1436 = vmatpush1.bf16.msra.mxu0 %v1072
        %1437 = vmatprep.subr.bf16.mxu0 %v1065
        %1438 = vmatpush1.bf16.msra.mxu0 %v1064
        %1439 = vmatprep.subr.bf16.mxu0 %v1057
        %1440 = vmatpush1.bf16.msra.mxu0 %v1056
        %1441 = vmatprep.subr.bf16.mxu0 %v1049
        %1442 = vmatpush1.bf16.msra.mxu0 %v1048
        %1443 = vmatprep.subr.bf16.mxu0 %v1041
        %1444 = vmatpush1.bf16.msra.mxu0 %v1040
        %1445 = vmatprep.subr.bf16.mxu0 %v1033
        %1446 = vmatpush1.bf16.msra.mxu0 %v1032
        %1447 = vmatprep.subr.bf16.mxu0 %v1025
        %1448 = vmatpush1.bf16.msra.mxu0 %v1024
        %1449 = vmatprep.subr.bf16.mxu0 %v1145
        %1450 = vmatpush2.bf16.msra.mxu0 %v1144
        %1451 = vmatprep.subr.bf16.mxu0 %v1137
        %1452 = vmatpush2.bf16.msra.mxu0 %v1136
        %1453 = vmatprep.subr.bf16.mxu0 %v1129
        %1454 = vmatpush2.bf16.msra.mxu0 %v1128
        %1455 = vmatprep.subr.bf16.mxu0 %v1121
        %1456 = vmatpush2.bf16.msra.mxu0 %v1120
        %1457 = vmatprep.subr.bf16.mxu0 %v1113
        %1458 = vmatpush2.bf16.msra.mxu0 %v1112
        %1459 = vmatprep.subr.bf16.mxu0 %v1105
        %1460 = vmatpush2.bf16.msra.mxu0 %v1104
        %1461 = vmatprep.subr.bf16.mxu0 %v1097
        %1462 = vmatpush2.bf16.msra.mxu0 %v1096
        %1463 = vmatprep.subr.bf16.mxu0 %v1089
        %1464 = vmatpush2.bf16.msra.mxu0 %v1088
        %1465 = vmatprep.mubr.bf16.mxu0 %v627
        %1466 = vmatmul.mubr.bf16.gmra.mxu0 %v626
        %v1467 = vpop.f32.mrf.mxu0
        %v1468 = vadd.f32 0.0, %v1467
        %v1469 = vpop.f32.mrf.mxu0
        %v1470 = vadd.f32 0.0, %v1469
        %v1471 = vpop.f32.mrf.mxu0
        %v1472 = vadd.f32 0.0, %v1471
        %v1473 = vpop.f32.mrf.mxu0
        %v1474 = vadd.f32 0.0, %v1473
        %1475 = vmatprep.mubr.bf16.mxu0 %v629
        %1476 = vmatmul.mubr.bf16.gmra.mxu0 %v628
        %v1477 = vpop.f32.mrf.mxu0
        %v1478 = vadd.f32 0.0, %v1477
        %v1479 = vpop.f32.mrf.mxu0
        %v1480 = vadd.f32 0.0, %v1479
        %v1481 = vpop.f32.mrf.mxu0
        %v1482 = vadd.f32 0.0, %v1481
        %v1483 = vpop.f32.mrf.mxu0
        %v1484 = vadd.f32 0.0, %v1483
        %1485 = vdwg.mxu0
        %v1486 = vadd.f32 %v450, %v1309
        %v1487 = vadd.f32 %v451, %v1311
        %v1488 = vadd.f32 %v452, %v1362
        %v1489 = vadd.f32 %v453, %v1364
        %v1490 = vadd.f32 %v454, %v1415
        %v1491 = vadd.f32 %v455, %v1417
        %v1492 = vadd.f32 %v456, %v1468
        %v1493 = vadd.f32 %v457, %v1470
        %v1494 = vadd.f32 %v458, %v1313
        %v1495 = vadd.f32 %v459, %v1315
        %v1496 = vadd.f32 %v460, %v1366
        %v1497 = vadd.f32 %v461, %v1368
        %v1498 = vadd.f32 %v462, %v1419
        %v1499 = vadd.f32 %v463, %v1421
        %v1500 = vadd.f32 %v464, %v1472
        %v1501 = vadd.f32 %v465, %v1474
        %v1502 = vadd.f32 %v466, %v1319
        %v1503 = vadd.f32 %v467, %v1321
        %v1504 = vadd.f32 %v468, %v1372
        %v1505 = vadd.f32 %v469, %v1374
        %v1506 = vadd.f32 %v470, %v1425
        %v1507 = vadd.f32 %v471, %v1427
        %v1508 = vadd.f32 %v472, %v1478
        %v1509 = vadd.f32 %v473, %v1480
        %v1510 = vadd.f32 %v474, %v1323
        %v1511 = vadd.f32 %v475, %v1325
        %v1512 = vadd.f32 %v476, %v1376
        %v1513 = vadd.f32 %v477, %v1378
        %v1514 = vadd.f32 %v478, %v1429
        %v1515 = vadd.f32 %v479, %v1431
        %v1516 = vadd.f32 %v480, %v1482
        %v1517 = vadd.f32 %v481, %v1484
        %1518 = vst [vmem:[#allocation2] sm:$0xff] %v1486
        %1519 = vst [vmem:[#allocation2 + $0x8] sm:$0xff] %v1487
        %1520 = vst [vmem:[#allocation2 + $0x10] sm:$0xff] %v1488
        %1521 = vst [vmem:[#allocation2 + $0x18] sm:$0xff] %v1489
        %1522 = vst [vmem:[#allocation2 + $0x20] sm:$0xff] %v1490
        %1523 = vst [vmem:[#allocation2 + $0x28] sm:$0xff] %v1491
        %1524 = vst [vmem:[#allocation2 + $0x30] sm:$0xff] %v1492
        %1525 = vst [vmem:[#allocation2 + $0x38] sm:$0xff] %v1493
        %1526 = vst [vmem:[#allocation2 + $0x40] sm:$0xff] %v1494
        %1527 = vst [vmem:[#allocation2 + $0x48] sm:$0xff] %v1495
        %1528 = vst [vmem:[#allocation2 + $0x50] sm:$0xff] %v1496
        %1529 = vst [vmem:[#allocation2 + $0x58] sm:$0xff] %v1497
        %1530 = vst [vmem:[#allocation2 + $0x60] sm:$0xff] %v1498
        %1531 = vst [vmem:[#allocation2 + $0x68] sm:$0xff] %v1499
        %1532 = vst [vmem:[#allocation2 + $0x70] sm:$0xff] %v1500
        %1533 = vst [vmem:[#allocation2 + $0x78] sm:$0xff] %v1501
        %1534 = vst [vmem:[#allocation2 + $0x80] sm:$0xff] %v1502
        %1535 = vst [vmem:[#allocation2 + $0x88] sm:$0xff] %v1503
        %1536 = vst [vmem:[#allocation2 + $0x90] sm:$0xff] %v1504
        %1537 = vst [vmem:[#allocation2 + $0x98] sm:$0xff] %v1505
        %1538 = vst [vmem:[#allocation2 + $0xa0] sm:$0xff] %v1506
        %1539 = vst [vmem:[#allocation2 + $0xa8] sm:$0xff] %v1507
        %1540 = vst [vmem:[#allocation2 + $0xb0] sm:$0xff] %v1508
        %1541 = vst [vmem:[#allocation2 + $0xb8] sm:$0xff] %v1509
        %1542 = vst [vmem:[#allocation2 + $0xc0] sm:$0xff] %v1510
        %1543 = vst [vmem:[#allocation2 + $0xc8] sm:$0xff] %v1511
        %1544 = vst [vmem:[#allocation2 + $0xd0] sm:$0xff] %v1512
        %1545 = vst [vmem:[#allocation2 + $0xd8] sm:$0xff] %v1513
        %1546 = vst [vmem:[#allocation2 + $0xe0] sm:$0xff] %v1514
        %1547 = vst [vmem:[#allocation2 + $0xe8] sm:$0xff] %v1515
        %1548 = vst [vmem:[#allocation2 + $0xf0] sm:$0xff] %v1516
        %1549 = vst [vmem:[#allocation2 + $0xf8] sm:$0xff] %v1517
        %p1550 = scmp.eq.s32.totalorder %s37, 1
        // Predicated region
        $region53: #{tpu_custom_call.1} parent=35 // pred_check
          %p1551 = pneg %p1550
        $region54: #{tpu_custom_call.1} parent=35 // pred_check_branch
          %1553 = sbr.rel (%p1551) target = $region56
        $region55: #{tpu_custom_call.1} parent=35 // pred_region
          %v1554 = vld [vmem:[#allocation2] sm:$0xff]
          %v1555 = vld [vmem:[#allocation2 + $0x8] sm:$0xff]
          %v1556 = vld [vmem:[#allocation2 + $0x10] sm:$0xff]
          %v1557 = vld [vmem:[#allocation2 + $0x18] sm:$0xff]
          %v1558 = vld [vmem:[#allocation2 + $0x20] sm:$0xff]
          %v1559 = vld [vmem:[#allocation2 + $0x28] sm:$0xff]
          %v1560 = vld [vmem:[#allocation2 + $0x30] sm:$0xff]
          %v1561 = vld [vmem:[#allocation2 + $0x38] sm:$0xff]
          %v1562 = vld [vmem:[#allocation2 + $0x40] sm:$0xff]
          %v1563 = vld [vmem:[#allocation2 + $0x48] sm:$0xff]
          %v1564 = vld [vmem:[#allocation2 + $0x50] sm:$0xff]
          %v1565 = vld [vmem:[#allocation2 + $0x58] sm:$0xff]
          %v1566 = vld [vmem:[#allocation2 + $0x60] sm:$0xff]
          %v1567 = vld [vmem:[#allocation2 + $0x68] sm:$0xff]
          %v1568 = vld [vmem:[#allocation2 + $0x70] sm:$0xff]
          %v1569 = vld [vmem:[#allocation2 + $0x78] sm:$0xff]
          %v1570 = vld [vmem:[#allocation2 + $0x80] sm:$0xff]
          %v1571 = vld [vmem:[#allocation2 + $0x88] sm:$0xff]
          %v1572 = vld [vmem:[#allocation2 + $0x90] sm:$0xff]
          %v1573 = vld [vmem:[#allocation2 + $0x98] sm:$0xff]
          %v1574 = vld [vmem:[#allocation2 + $0xa0] sm:$0xff]
          %v1575 = vld [vmem:[#allocation2 + $0xa8] sm:$0xff]
          %v1576 = vld [vmem:[#allocation2 + $0xb0] sm:$0xff]
          %v1577 = vld [vmem:[#allocation2 + $0xb8] sm:$0xff]
          %v1578 = vld [vmem:[#allocation2 + $0xc0] sm:$0xff]
          %v1579 = vld [vmem:[#allocation2 + $0xc8] sm:$0xff]
          %v1580 = vld [vmem:[#allocation2 + $0xd0] sm:$0xff]
          %v1581 = vld [vmem:[#allocation2 + $0xd8] sm:$0xff]
          %v1582 = vld [vmem:[#allocation2 + $0xe0] sm:$0xff]
          %v1583 = vld [vmem:[#allocation2 + $0xe8] sm:$0xff]
          %v1584 = vld [vmem:[#allocation2 + $0xf0] sm:$0xff]
          %v1585 = vld [vmem:[#allocation2 + $0xf8] sm:$0xff]
          %v1586 = vld [vmem:[%s345] sm:$0x1]
          %v1587 = vld [vmem:[%s409] sm:$0x1]
          %v1588 = vmul.f32 %v1586, 0.088388346
          %v1589 = vmul.f32 %v1587, 0.088388346
          %v1590 = vcombine.low %v1554, %v1556
          %v1591 = vcombine.high %v1554, %v1556
          %v1593 = vunpack.c.l.s4 1983009808
          %v1594 = vunpack.c.0.s8 %v1593
          %v1595 = vlaneseq
          %v1596 = vshrl.u32 %v1595, 7
          %v1597 = vsub.s32 %v1594, %v1596
          %v1598 = vrot.slane %v1590, %v1597
          %v1600 = vunpack.c.l.s4 1983009808
          %v1601 = vunpack.c.0.s8 %v1600
          %v1602 = vlaneseq
          %v1603 = vshrl.u32 %v1602, 7
          %v1604 = vsub.s32 %v1601, %v1603
          %v1605 = vrot.slane %v1591, %v1604
          %v1606 = vcombine.low %v1555, %v1557
          %v1607 = vcombine.high %v1555, %v1557
          %v1609 = vunpack.c.l.s4 1983009808
          %v1610 = vunpack.c.0.s8 %v1609
          %v1611 = vlaneseq
          %v1612 = vshrl.u32 %v1611, 7
          %v1613 = vsub.s32 %v1610, %v1612
          %v1614 = vrot.slane %v1606, %v1613
          %v1616 = vunpack.c.l.s4 1983009808
          %v1617 = vunpack.c.0.s8 %v1616
          %v1618 = vlaneseq
          %v1619 = vshrl.u32 %v1618, 7
          %v1620 = vsub.s32 %v1617, %v1619
          %v1621 = vrot.slane %v1607, %v1620
          %v1622 = vcombine.low %v1598, %v1614
          %v1623 = vcombine.high %v1598, %v1614
          %v1625 = vunpack.c.l.s4 1934713408
          %v1626 = vunpack.c.0.s8 %v1625
          %v1627 = vlaneseq
          %v1628 = vshrl.u32 %v1627, 7
          %v1629 = vsub.s32 %v1626, %v1628
          %v1630 = vrot.slane %v1622, %v1629
          %v1632 = vunpack.c.l.s4 1934713408
          %v1633 = vunpack.c.0.s8 %v1632
          %v1634 = vlaneseq
          %v1635 = vshrl.u32 %v1634, 7
          %v1636 = vsub.s32 %v1633, %v1635
          %v1637 = vrot.slane %v1623, %v1636
          %v1638 = vcombine.low %v1605, %v1621
          %v1639 = vcombine.high %v1605, %v1621
          %v1641 = vunpack.c.l.s4 1934713408
          %v1642 = vunpack.c.0.s8 %v1641
          %v1643 = vlaneseq
          %v1644 = vshrl.u32 %v1643, 7
          %v1645 = vsub.s32 %v1642, %v1644
          %v1646 = vrot.slane %v1638, %v1645
          %v1648 = vunpack.c.l.s4 1934713408
          %v1649 = vunpack.c.0.s8 %v1648
          %v1650 = vlaneseq
          %v1651 = vshrl.u32 %v1650, 7
          %v1652 = vsub.s32 %v1649, %v1651
          %v1653 = vrot.slane %v1639, %v1652
          %v1654 = vcombine.high %v1630, 0.0
          %v1655 = vcombine.high %v1637, 0.0
          %v1656 = vcombine.high %v1646, 0.0
          %v1657 = vcombine.high %v1653, 0.0
          %v1658 = vcombine.low %v1562, %v1564
          %v1659 = vcombine.high %v1562, %v1564
          %v1661 = vunpack.c.l.s4 1983009808
          %v1662 = vunpack.c.0.s8 %v1661
          %v1663 = vlaneseq
          %v1664 = vshrl.u32 %v1663, 7
          %v1665 = vsub.s32 %v1662, %v1664
          %v1666 = vrot.slane %v1658, %v1665
          %v1668 = vunpack.c.l.s4 1983009808
          %v1669 = vunpack.c.0.s8 %v1668
          %v1670 = vlaneseq
          %v1671 = vshrl.u32 %v1670, 7
          %v1672 = vsub.s32 %v1669, %v1671
          %v1673 = vrot.slane %v1659, %v1672
          %v1674 = vcombine.low %v1563, %v1565
          %v1675 = vcombine.high %v1563, %v1565
          %v1677 = vunpack.c.l.s4 1983009808
          %v1678 = vunpack.c.0.s8 %v1677
          %v1679 = vlaneseq
          %v1680 = vshrl.u32 %v1679, 7
          %v1681 = vsub.s32 %v1678, %v1680
          %v1682 = vrot.slane %v1674, %v1681
          %v1684 = vunpack.c.l.s4 1983009808
          %v1685 = vunpack.c.0.s8 %v1684
          %v1686 = vlaneseq
          %v1687 = vshrl.u32 %v1686, 7
          %v1688 = vsub.s32 %v1685, %v1687
          %v1689 = vrot.slane %v1675, %v1688
          %v1690 = vcombine.low %v1666, %v1682
          %v1691 = vcombine.high %v1666, %v1682
          %v1693 = vunpack.c.l.s4 1934713408
          %v1694 = vunpack.c.0.s8 %v1693
          %v1695 = vlaneseq
          %v1696 = vshrl.u32 %v1695, 7
          %v1697 = vsub.s32 %v1694, %v1696
          %v1698 = vrot.slane %v1690, %v1697
          %v1700 = vunpack.c.l.s4 1934713408
          %v1701 = vunpack.c.0.s8 %v1700
          %v1702 = vlaneseq
          %v1703 = vshrl.u32 %v1702, 7
          %v1704 = vsub.s32 %v1701, %v1703
          %v1705 = vrot.slane %v1691, %v1704
          %v1706 = vcombine.low %v1673, %v1689
          %v1707 = vcombine.high %v1673, %v1689
          %v1709 = vunpack.c.l.s4 1934713408
          %v1710 = vunpack.c.0.s8 %v1709
          %v1711 = vlaneseq
          %v1712 = vshrl.u32 %v1711, 7
          %v1713 = vsub.s32 %v1710, %v1712
          %v1714 = vrot.slane %v1706, %v1713
          %v1716 = vunpack.c.l.s4 1934713408
          %v1717 = vunpack.c.0.s8 %v1716
          %v1718 = vlaneseq
          %v1719 = vshrl.u32 %v1718, 7
          %v1720 = vsub.s32 %v1717, %v1719
          %v1721 = vrot.slane %v1707, %v1720
          %v1722 = vcombine.high %v1698, 0.0
          %v1723 = vcombine.high %v1705, 0.0
          %v1724 = vcombine.high %v1714, 0.0
          %v1725 = vcombine.high %v1721, 0.0
          %v1726 = vcombine.low %v1570, %v1572
          %v1727 = vcombine.high %v1570, %v1572
          %v1729 = vunpack.c.l.s4 1983009808
          %v1730 = vunpack.c.0.s8 %v1729
          %v1731 = vlaneseq
          %v1732 = vshrl.u32 %v1731, 7
          %v1733 = vsub.s32 %v1730, %v1732
          %v1734 = vrot.slane %v1726, %v1733
          %v1736 = vunpack.c.l.s4 1983009808
          %v1737 = vunpack.c.0.s8 %v1736
          %v1738 = vlaneseq
          %v1739 = vshrl.u32 %v1738, 7
          %v1740 = vsub.s32 %v1737, %v1739
          %v1741 = vrot.slane %v1727, %v1740
          %v1742 = vcombine.low %v1571, %v1573
          %v1743 = vcombine.high %v1571, %v1573
          %v1745 = vunpack.c.l.s4 1983009808
          %v1746 = vunpack.c.0.s8 %v1745
          %v1747 = vlaneseq
          %v1748 = vshrl.u32 %v1747, 7
          %v1749 = vsub.s32 %v1746, %v1748
          %v1750 = vrot.slane %v1742, %v1749
          %v1752 = vunpack.c.l.s4 1983009808
          %v1753 = vunpack.c.0.s8 %v1752
          %v1754 = vlaneseq
          %v1755 = vshrl.u32 %v1754, 7
          %v1756 = vsub.s32 %v1753, %v1755
          %v1757 = vrot.slane %v1743, %v1756
          %v1758 = vcombine.low %v1734, %v1750
          %v1759 = vcombine.high %v1734, %v1750
          %v1761 = vunpack.c.l.s4 1934713408
          %v1762 = vunpack.c.0.s8 %v1761
          %v1763 = vlaneseq
          %v1764 = vshrl.u32 %v1763, 7
          %v1765 = vsub.s32 %v1762, %v1764
          %v1766 = vrot.slane %v1758, %v1765
          %v1768 = vunpack.c.l.s4 1934713408
          %v1769 = vunpack.c.0.s8 %v1768
          %v1770 = vlaneseq
          %v1771 = vshrl.u32 %v1770, 7
          %v1772 = vsub.s32 %v1769, %v1771
          %v1773 = vrot.slane %v1759, %v1772
          %v1774 = vcombine.low %v1741, %v1757
          %v1775 = vcombine.high %v1741, %v1757
          %v1777 = vunpack.c.l.s4 1934713408
          %v1778 = vunpack.c.0.s8 %v1777
          %v1779 = vlaneseq
          %v1780 = vshrl.u32 %v1779, 7
          %v1781 = vsub.s32 %v1778, %v1780
          %v1782 = vrot.slane %v1774, %v1781
          %v1784 = vunpack.c.l.s4 1934713408
          %v1785 = vunpack.c.0.s8 %v1784
          %v1786 = vlaneseq
          %v1787 = vshrl.u32 %v1786, 7
          %v1788 = vsub.s32 %v1785, %v1787
          %v1789 = vrot.slane %v1775, %v1788
          %v1790 = vcombine.high %v1766, 0.0
          %v1791 = vcombine.high %v1773, 0.0
          %v1792 = vcombine.high %v1782, 0.0
          %v1793 = vcombine.high %v1789, 0.0
          %v1794 = vcombine.low %v1578, %v1580
          %v1795 = vcombine.high %v1578, %v1580
          %v1797 = vunpack.c.l.s4 1983009808
          %v1798 = vunpack.c.0.s8 %v1797
          %v1799 = vlaneseq
          %v1800 = vshrl.u32 %v1799, 7
          %v1801 = vsub.s32 %v1798, %v1800
          %v1802 = vrot.slane %v1794, %v1801
          %v1804 = vunpack.c.l.s4 1983009808
          %v1805 = vunpack.c.0.s8 %v1804
          %v1806 = vlaneseq
          %v1807 = vshrl.u32 %v1806, 7
          %v1808 = vsub.s32 %v1805, %v1807
          %v1809 = vrot.slane %v1795, %v1808
          %v1810 = vcombine.low %v1579, %v1581
          %v1811 = vcombine.high %v1579, %v1581
          %v1813 = vunpack.c.l.s4 1983009808
          %v1814 = vunpack.c.0.s8 %v1813
          %v1815 = vlaneseq
          %v1816 = vshrl.u32 %v1815, 7
          %v1817 = vsub.s32 %v1814, %v1816
          %v1818 = vrot.slane %v1810, %v1817
          %v1820 = vunpack.c.l.s4 1983009808
          %v1821 = vunpack.c.0.s8 %v1820
          %v1822 = vlaneseq
          %v1823 = vshrl.u32 %v1822, 7
          %v1824 = vsub.s32 %v1821, %v1823
          %v1825 = vrot.slane %v1811, %v1824
          %v1826 = vcombine.low %v1802, %v1818
          %v1827 = vcombine.high %v1802, %v1818
          %v1829 = vunpack.c.l.s4 1934713408
          %v1830 = vunpack.c.0.s8 %v1829
          %v1831 = vlaneseq
          %v1832 = vshrl.u32 %v1831, 7
          %v1833 = vsub.s32 %v1830, %v1832
          %v1834 = vrot.slane %v1826, %v1833
          %v1836 = vunpack.c.l.s4 1934713408
          %v1837 = vunpack.c.0.s8 %v1836
          %v1838 = vlaneseq
          %v1839 = vshrl.u32 %v1838, 7
          %v1840 = vsub.s32 %v1837, %v1839
          %v1841 = vrot.slane %v1827, %v1840
          %v1842 = vcombine.low %v1809, %v1825
          %v1843 = vcombine.high %v1809, %v1825
          %v1845 = vunpack.c.l.s4 1934713408
          %v1846 = vunpack.c.0.s8 %v1845
          %v1847 = vlaneseq
          %v1848 = vshrl.u32 %v1847, 7
          %v1849 = vsub.s32 %v1846, %v1848
          %v1850 = vrot.slane %v1842, %v1849
          %v1852 = vunpack.c.l.s4 1934713408
          %v1853 = vunpack.c.0.s8 %v1852
          %v1854 = vlaneseq
          %v1855 = vshrl.u32 %v1854, 7
          %v1856 = vsub.s32 %v1853, %v1855
          %v1857 = vrot.slane %v1843, %v1856
          %v1858 = vcombine.high %v1834, 0.0
          %v1859 = vcombine.high %v1841, 0.0
          %v1860 = vcombine.high %v1850, 0.0
          %v1861 = vcombine.high %v1857, 0.0
          %v1862 = vsub.f32 0.0, %v1630
          %v1863 = vsub.f32 0.0, %v1654
          %v1864 = vsub.f32 0.0, %v1637
          %v1865 = vsub.f32 0.0, %v1655
          %v1866 = vsub.f32 0.0, %v1646
          %v1867 = vsub.f32 0.0, %v1656
          %v1868 = vsub.f32 0.0, %v1653
          %v1869 = vsub.f32 0.0, %v1657
          %v1870 = vsub.f32 0.0, %v1698
          %v1871 = vsub.f32 0.0, %v1722
          %v1872 = vsub.f32 0.0, %v1705
          %v1873 = vsub.f32 0.0, %v1723
          %v1874 = vsub.f32 0.0, %v1714
          %v1875 = vsub.f32 0.0, %v1724
          %v1876 = vsub.f32 0.0, %v1721
          %v1877 = vsub.f32 0.0, %v1725
          %v1878 = vsub.f32 0.0, %v1766
          %v1879 = vsub.f32 0.0, %v1790
          %v1880 = vsub.f32 0.0, %v1773
          %v1881 = vsub.f32 0.0, %v1791
          %v1882 = vsub.f32 0.0, %v1782
          %v1883 = vsub.f32 0.0, %v1792
          %v1884 = vsub.f32 0.0, %v1789
          %v1885 = vsub.f32 0.0, %v1793
          %v1886 = vsub.f32 0.0, %v1834
          %v1887 = vsub.f32 0.0, %v1858
          %v1888 = vsub.f32 0.0, %v1841
          %v1889 = vsub.f32 0.0, %v1859
          %v1890 = vsub.f32 0.0, %v1850
          %v1891 = vsub.f32 0.0, %v1860
          %v1892 = vsub.f32 0.0, %v1857
          %v1893 = vsub.f32 0.0, %v1861
          %1926 = vrot.lane.b32.xlu0 %v1862, 64
          %v1927 = vpop.permute.xlu0 %1926
          %1928 = vrot.lane.b32.xlu0 %v1863, 64
          %v1929 = vpop.permute.xlu0 %1928
          %1930 = vrot.lane.b32.xlu0 %v1864, 64
          %v1931 = vpop.permute.xlu0 %1930
          %1932 = vrot.lane.b32.xlu0 %v1865, 64
          %v1933 = vpop.permute.xlu0 %1932
          %1934 = vrot.lane.b32.xlu0 %v1866, 64
          %v1935 = vpop.permute.xlu0 %1934
          %1936 = vrot.lane.b32.xlu0 %v1867, 64
          %v1937 = vpop.permute.xlu0 %1936
          %1938 = vrot.lane.b32.xlu0 %v1868, 64
          %v1939 = vpop.permute.xlu0 %1938
          %1940 = vrot.lane.b32.xlu0 %v1869, 64
          %v1941 = vpop.permute.xlu0 %1940
          %1942 = vrot.lane.b32.xlu0 %v1870, 64
          %v1943 = vpop.permute.xlu0 %1942
          %1944 = vrot.lane.b32.xlu0 %v1871, 64
          %v1945 = vpop.permute.xlu0 %1944
          %1946 = vrot.lane.b32.xlu0 %v1872, 64
          %v1947 = vpop.permute.xlu0 %1946
          %1948 = vrot.lane.b32.xlu0 %v1873, 64
          %v1949 = vpop.permute.xlu0 %1948
          %1950 = vrot.lane.b32.xlu0 %v1874, 64
          %v1951 = vpop.permute.xlu0 %1950
          %1952 = vrot.lane.b32.xlu0 %v1875, 64
          %v1953 = vpop.permute.xlu0 %1952
          %1954 = vrot.lane.b32.xlu0 %v1876, 64
          %v1955 = vpop.permute.xlu0 %1954
          %1956 = vrot.lane.b32.xlu0 %v1877, 64
          %v1957 = vpop.permute.xlu0 %1956
          %1958 = vrot.lane.b32.xlu0 %v1878, 64
          %v1959 = vpop.permute.xlu0 %1958
          %1960 = vrot.lane.b32.xlu0 %v1879, 64
          %v1961 = vpop.permute.xlu0 %1960
          %1962 = vrot.lane.b32.xlu0 %v1880, 64
          %v1963 = vpop.permute.xlu0 %1962
          %1964 = vrot.lane.b32.xlu0 %v1881, 64
          %v1965 = vpop.permute.xlu0 %1964
          %1966 = vrot.lane.b32.xlu0 %v1882, 64
          %v1967 = vpop.permute.xlu0 %1966
          %1968 = vrot.lane.b32.xlu0 %v1883, 64
          %v1969 = vpop.permute.xlu0 %1968
          %1970 = vrot.lane.b32.xlu0 %v1884, 64
          %v1971 = vpop.permute.xlu0 %1970
          %1972 = vrot.lane.b32.xlu0 %v1885, 64
          %v1973 = vpop.permute.xlu0 %1972
          %1974 = vrot.lane.b32.xlu0 %v1886, 64
          %v1975 = vpop.permute.xlu0 %1974
          %1976 = vrot.lane.b32.xlu0 %v1887, 64
          %v1977 = vpop.permute.xlu0 %1976
          %1978 = vrot.lane.b32.xlu0 %v1888, 64
          %v1979 = vpop.permute.xlu0 %1978
          %1980 = vrot.lane.b32.xlu0 %v1889, 64
          %v1981 = vpop.permute.xlu0 %1980
          %1982 = vrot.lane.b32.xlu0 %v1890, 64
          %v1983 = vpop.permute.xlu0 %1982
          %1984 = vrot.lane.b32.xlu0 %v1891, 64
          %v1985 = vpop.permute.xlu0 %1984
          %1986 = vrot.lane.b32.xlu0 %v1892, 64
          %v1987 = vpop.permute.xlu0 %1986
          %1988 = vrot.lane.b32.xlu0 %v1893, 64
          %v1989 = vpop.permute.xlu0 %1988
          %2054 = vrot.lane.b32.xlu0 %v1630, 64
          %v2055 = vpop.permute.xlu0 %2054
          %2056 = vrot.lane.b32.xlu0 %v1654, 64
          %v2057 = vpop.permute.xlu0 %2056
          %2058 = vrot.lane.b32.xlu0 %v1637, 64
          %v2059 = vpop.permute.xlu0 %2058
          %2060 = vrot.lane.b32.xlu0 %v1655, 64
          %v2061 = vpop.permute.xlu0 %2060
          %2062 = vrot.lane.b32.xlu0 %v1646, 64
          %v2063 = vpop.permute.xlu0 %2062
          %2064 = vrot.lane.b32.xlu0 %v1656, 64
          %v2065 = vpop.permute.xlu0 %2064
          %2066 = vrot.lane.b32.xlu0 %v1653, 64
          %v2067 = vpop.permute.xlu0 %2066
          %2068 = vrot.lane.b32.xlu0 %v1657, 64
          %v2069 = vpop.permute.xlu0 %2068
          %2070 = vrot.lane.b32.xlu0 %v1698, 64
          %v2071 = vpop.permute.xlu0 %2070
          %2072 = vrot.lane.b32.xlu0 %v1722, 64
          %v2073 = vpop.permute.xlu0 %2072
          %2074 = vrot.lane.b32.xlu0 %v1705, 64
          %v2075 = vpop.permute.xlu0 %2074
          %2076 = vrot.lane.b32.xlu0 %v1723, 64
          %v2077 = vpop.permute.xlu0 %2076
          %2078 = vrot.lane.b32.xlu0 %v1714, 64
          %v2079 = vpop.permute.xlu0 %2078
          %2080 = vrot.lane.b32.xlu0 %v1724, 64
          %v2081 = vpop.permute.xlu0 %2080
          %2082 = vrot.lane.b32.xlu0 %v1721, 64
          %v2083 = vpop.permute.xlu0 %2082
          %2084 = vrot.lane.b32.xlu0 %v1725, 64
          %v2085 = vpop.permute.xlu0 %2084
          %2086 = vrot.lane.b32.xlu0 %v1766, 64
          %v2087 = vpop.permute.xlu0 %2086
          %2088 = vrot.lane.b32.xlu0 %v1790, 64
          %v2089 = vpop.permute.xlu0 %2088
          %2090 = vrot.lane.b32.xlu0 %v1773, 64
          %v2091 = vpop.permute.xlu0 %2090
          %2092 = vrot.lane.b32.xlu0 %v1791, 64
          %v2093 = vpop.permute.xlu0 %2092
          %2094 = vrot.lane.b32.xlu0 %v1782, 64
          %v2095 = vpop.permute.xlu0 %2094
          %2096 = vrot.lane.b32.xlu0 %v1792, 64
          %v2097 = vpop.permute.xlu0 %2096
          %2098 = vrot.lane.b32.xlu0 %v1789, 64
          %v2099 = vpop.permute.xlu0 %2098
          %2100 = vrot.lane.b32.xlu0 %v1793, 64
          %v2101 = vpop.permute.xlu0 %2100
          %2102 = vrot.lane.b32.xlu0 %v1834, 64
          %v2103 = vpop.permute.xlu0 %2102
          %2104 = vrot.lane.b32.xlu0 %v1858, 64
          %v2105 = vpop.permute.xlu0 %2104
          %2106 = vrot.lane.b32.xlu0 %v1841, 64
          %v2107 = vpop.permute.xlu0 %2106
          %2108 = vrot.lane.b32.xlu0 %v1859, 64
          %v2109 = vpop.permute.xlu0 %2108
          %2110 = vrot.lane.b32.xlu0 %v1850, 64
          %v2111 = vpop.permute.xlu0 %2110
          %2112 = vrot.lane.b32.xlu0 %v1860, 64
          %v2113 = vpop.permute.xlu0 %2112
          %2114 = vrot.lane.b32.xlu0 %v1857, 64
          %v2115 = vpop.permute.xlu0 %2114
          %2116 = vrot.lane.b32.xlu0 %v1861, 64
          %v2117 = vpop.permute.xlu0 %2116
          %vm2150 = vcmask 523264
          %v2151 = vsel %vm2150, %v1927, %v2055
          %v2152 = vsel %vm2150, %v1929, %v2057
          %v2153 = vsel %vm2150, %v1931, %v2059
          %v2154 = vsel %vm2150, %v1933, %v2061
          %v2155 = vsel %vm2150, %v1935, %v2063
          %v2156 = vsel %vm2150, %v1937, %v2065
          %v2157 = vsel %vm2150, %v1939, %v2067
          %v2158 = vsel %vm2150, %v1941, %v2069
          %v2159 = vsel %vm2150, %v1943, %v2071
          %v2160 = vsel %vm2150, %v1945, %v2073
          %v2161 = vsel %vm2150, %v1947, %v2075
          %v2162 = vsel %vm2150, %v1949, %v2077
          %v2163 = vsel %vm2150, %v1951, %v2079
          %v2164 = vsel %vm2150, %v1953, %v2081
          %v2165 = vsel %vm2150, %v1955, %v2083
          %v2166 = vsel %vm2150, %v1957, %v2085
          %v2167 = vsel %vm2150, %v1959, %v2087
          %v2168 = vsel %vm2150, %v1961, %v2089
          %v2169 = vsel %vm2150, %v1963, %v2091
          %v2170 = vsel %vm2150, %v1965, %v2093
          %v2171 = vsel %vm2150, %v1967, %v2095
          %v2172 = vsel %vm2150, %v1969, %v2097
          %v2173 = vsel %vm2150, %v1971, %v2099
          %v2174 = vsel %vm2150, %v1973, %v2101
          %v2175 = vsel %vm2150, %v1975, %v2103
          %v2176 = vsel %vm2150, %v1977, %v2105
          %v2177 = vsel %vm2150, %v1979, %v2107
          %v2178 = vsel %vm2150, %v1981, %v2109
          %v2179 = vsel %vm2150, %v1983, %v2111
          %v2180 = vsel %vm2150, %v1985, %v2113
          %v2181 = vsel %vm2150, %v1987, %v2115
          %v2182 = vsel %vm2150, %v1989, %v2117
          %v2184 = vlaneseq
          %v2185 = vshrl.u32 %v2184, 7
          %v2186 = vsub.s32 0, %v2185
          %v2187 = vrot.slane %v1588, %v2186
          %v2189 = vmul.f32 %v1630, %v2187
          %v2190 = vmul.f32 %v1654, %v2187
          %v2191 = vmul.f32 %v1637, %v2187
          %v2192 = vmul.f32 %v1655, %v2187
          %v2193 = vmul.f32 %v1646, %v2187
          %v2194 = vmul.f32 %v1656, %v2187
          %v2195 = vmul.f32 %v1653, %v2187
          %v2196 = vmul.f32 %v1657, %v2187
          %v2197 = vmul.f32 %v1698, %v2187
          %v2198 = vmul.f32 %v1722, %v2187
          %v2199 = vmul.f32 %v1705, %v2187
          %v2200 = vmul.f32 %v1723, %v2187
          %v2201 = vmul.f32 %v1714, %v2187
          %v2202 = vmul.f32 %v1724, %v2187
          %v2203 = vmul.f32 %v1721, %v2187
          %v2204 = vmul.f32 %v1725, %v2187
          %v2205 = vmul.f32 %v1766, %v2187
          %v2206 = vmul.f32 %v1790, %v2187
          %v2207 = vmul.f32 %v1773, %v2187
          %v2208 = vmul.f32 %v1791, %v2187
          %v2209 = vmul.f32 %v1782, %v2187
          %v2210 = vmul.f32 %v1792, %v2187
          %v2211 = vmul.f32 %v1789, %v2187
          %v2212 = vmul.f32 %v1793, %v2187
          %v2213 = vmul.f32 %v1834, %v2187
          %v2214 = vmul.f32 %v1858, %v2187
          %v2215 = vmul.f32 %v1841, %v2187
          %v2216 = vmul.f32 %v1859, %v2187
          %v2217 = vmul.f32 %v1850, %v2187
          %v2218 = vmul.f32 %v1860, %v2187
          %v2219 = vmul.f32 %v1857, %v2187
          %v2220 = vmul.f32 %v1861, %v2187
          %v2222 = vlaneseq
          %v2223 = vshrl.u32 %v2222, 7
          %v2224 = vsub.s32 0, %v2223
          %v2225 = vrot.slane %v1589, %v2224
          %v2227 = vmul.f32 %v2151, %v2225
          %v2228 = vmul.f32 %v2152, %v2225
          %v2229 = vmul.f32 %v2153, %v2225
          %v2230 = vmul.f32 %v2154, %v2225
          %v2231 = vmul.f32 %v2155, %v2225
          %v2232 = vmul.f32 %v2156, %v2225
          %v2233 = vmul.f32 %v2157, %v2225
          %v2234 = vmul.f32 %v2158, %v2225
          %v2235 = vmul.f32 %v2159, %v2225
          %v2236 = vmul.f32 %v2160, %v2225
          %v2237 = vmul.f32 %v2161, %v2225
          %v2238 = vmul.f32 %v2162, %v2225
          %v2239 = vmul.f32 %v2163, %v2225
          %v2240 = vmul.f32 %v2164, %v2225
          %v2241 = vmul.f32 %v2165, %v2225
          %v2242 = vmul.f32 %v2166, %v2225
          %v2243 = vmul.f32 %v2167, %v2225
          %v2244 = vmul.f32 %v2168, %v2225
          %v2245 = vmul.f32 %v2169, %v2225
          %v2246 = vmul.f32 %v2170, %v2225
          %v2247 = vmul.f32 %v2171, %v2225
          %v2248 = vmul.f32 %v2172, %v2225
          %v2249 = vmul.f32 %v2173, %v2225
          %v2250 = vmul.f32 %v2174, %v2225
          %v2251 = vmul.f32 %v2175, %v2225
          %v2252 = vmul.f32 %v2176, %v2225
          %v2253 = vmul.f32 %v2177, %v2225
          %v2254 = vmul.f32 %v2178, %v2225
          %v2255 = vmul.f32 %v2179, %v2225
          %v2256 = vmul.f32 %v2180, %v2225
          %v2257 = vmul.f32 %v2181, %v2225
          %v2258 = vmul.f32 %v2182, %v2225
          %v2259 = vadd.f32 %v2189, %v2227
          %v2260 = vadd.f32 %v2190, %v2228
          %v2261 = vadd.f32 %v2191, %v2229
          %v2262 = vadd.f32 %v2192, %v2230
          %v2263 = vadd.f32 %v2193, %v2231
          %v2264 = vadd.f32 %v2194, %v2232
          %v2265 = vadd.f32 %v2195, %v2233
          %v2266 = vadd.f32 %v2196, %v2234
          %v2267 = vadd.f32 %v2197, %v2235
          %v2268 = vadd.f32 %v2198, %v2236
          %v2269 = vadd.f32 %v2199, %v2237
          %v2270 = vadd.f32 %v2200, %v2238
          %v2271 = vadd.f32 %v2201, %v2239
          %v2272 = vadd.f32 %v2202, %v2240
          %v2273 = vadd.f32 %v2203, %v2241
          %v2274 = vadd.f32 %v2204, %v2242
          %v2275 = vadd.f32 %v2205, %v2243
          %v2276 = vadd.f32 %v2206, %v2244
          %v2277 = vadd.f32 %v2207, %v2245
          %v2278 = vadd.f32 %v2208, %v2246
          %v2279 = vadd.f32 %v2209, %v2247
          %v2280 = vadd.f32 %v2210, %v2248
          %v2281 = vadd.f32 %v2211, %v2249
          %v2282 = vadd.f32 %v2212, %v2250
          %v2283 = vadd.f32 %v2213, %v2251
          %v2284 = vadd.f32 %v2214, %v2252
          %v2285 = vadd.f32 %v2215, %v2253
          %v2286 = vadd.f32 %v2216, %v2254
          %v2287 = vadd.f32 %v2217, %v2255
          %v2288 = vadd.f32 %v2218, %v2256
          %v2289 = vadd.f32 %v2219, %v2257
          %v2290 = vadd.f32 %v2220, %v2258
          %v2291 = vcombine.low %v2259, %v2261
          %v2293 = vunpack.c.l.s4 1983009808
          %v2294 = vunpack.c.0.s8 %v2293
          %v2295 = vlaneseq
          %v2296 = vshrl.u32 %v2295, 7
          %v2297 = vsub.s32 %v2294, %v2296
          %v2298 = vrot.slane %v2291, %v2297
          %v2299 = vcombine.low %v2260, %v2262
          %v2301 = vunpack.c.l.s4 1983009808
          %v2302 = vunpack.c.0.s8 %v2301
          %v2303 = vlaneseq
          %v2304 = vshrl.u32 %v2303, 7
          %v2305 = vsub.s32 %v2302, %v2304
          %v2306 = vrot.slane %v2299, %v2305
          %v2307 = vcombine.low %v2263, %v2265
          %v2309 = vunpack.c.l.s4 1983009808
          %v2310 = vunpack.c.0.s8 %v2309
          %v2311 = vlaneseq
          %v2312 = vshrl.u32 %v2311, 7
          %v2313 = vsub.s32 %v2310, %v2312
          %v2314 = vrot.slane %v2307, %v2313
          %v2315 = vcombine.low %v2264, %v2266
          %v2317 = vunpack.c.l.s4 1983009808
          %v2318 = vunpack.c.0.s8 %v2317
          %v2319 = vlaneseq
          %v2320 = vshrl.u32 %v2319, 7
          %v2321 = vsub.s32 %v2318, %v2320
          %v2322 = vrot.slane %v2315, %v2321
          %v2323 = vcombine.low %v2298, %v2306
          %v2324 = vcombine.high %v2298, %v2306
          %v2326 = vunpack.c.l.s4 1934713408
          %v2327 = vunpack.c.0.s8 %v2326
          %v2328 = vlaneseq
          %v2329 = vshrl.u32 %v2328, 7
          %v2330 = vsub.s32 %v2327, %v2329
          %v2331 = vrot.slane %v2323, %v2330
          %v2333 = vunpack.c.l.s4 1934713408
          %v2334 = vunpack.c.0.s8 %v2333
          %v2335 = vlaneseq
          %v2336 = vshrl.u32 %v2335, 7
          %v2337 = vsub.s32 %v2334, %v2336
          %v2338 = vrot.slane %v2324, %v2337
          %v2339 = vcombine.low %v2314, %v2322
          %v2340 = vcombine.high %v2314, %v2322
          %v2342 = vunpack.c.l.s4 1934713408
          %v2343 = vunpack.c.0.s8 %v2342
          %v2344 = vlaneseq
          %v2345 = vshrl.u32 %v2344, 7
          %v2346 = vsub.s32 %v2343, %v2345
          %v2347 = vrot.slane %v2339, %v2346
          %v2349 = vunpack.c.l.s4 1934713408
          %v2350 = vunpack.c.0.s8 %v2349
          %v2351 = vlaneseq
          %v2352 = vshrl.u32 %v2351, 7
          %v2353 = vsub.s32 %v2350, %v2352
          %v2354 = vrot.slane %v2340, %v2353
          %v2355 = vcombine.low %v2331, %v2347
          %v2356 = vcombine.high %v2331, %v2347
          %v2357 = vcombine.low %v2338, %v2354
          %v2358 = vcombine.high %v2338, %v2354
          %v2359 = vcombine.low %v2267, %v2269
          %v2361 = vunpack.c.l.s4 1983009808
          %v2362 = vunpack.c.0.s8 %v2361
          %v2363 = vlaneseq
          %v2364 = vshrl.u32 %v2363, 7
          %v2365 = vsub.s32 %v2362, %v2364
          %v2366 = vrot.slane %v2359, %v2365
          %v2367 = vcombine.low %v2268, %v2270
          %v2369 = vunpack.c.l.s4 1983009808
          %v2370 = vunpack.c.0.s8 %v2369
          %v2371 = vlaneseq
          %v2372 = vshrl.u32 %v2371, 7
          %v2373 = vsub.s32 %v2370, %v2372
          %v2374 = vrot.slane %v2367, %v2373
          %v2375 = vcombine.low %v2271, %v2273
          %v2377 = vunpack.c.l.s4 1983009808
          %v2378 = vunpack.c.0.s8 %v2377
          %v2379 = vlaneseq
          %v2380 = vshrl.u32 %v2379, 7
          %v2381 = vsub.s32 %v2378, %v2380
          %v2382 = vrot.slane %v2375, %v2381
          %v2383 = vcombine.low %v2272, %v2274
          %v2385 = vunpack.c.l.s4 1983009808
          %v2386 = vunpack.c.0.s8 %v2385
          %v2387 = vlaneseq
          %v2388 = vshrl.u32 %v2387, 7
          %v2389 = vsub.s32 %v2386, %v2388
          %v2390 = vrot.slane %v2383, %v2389
          %v2391 = vcombine.low %v2366, %v2374
          %v2392 = vcombine.high %v2366, %v2374
          %v2394 = vunpack.c.l.s4 1934713408
          %v2395 = vunpack.c.0.s8 %v2394
          %v2396 = vlaneseq
          %v2397 = vshrl.u32 %v2396, 7
          %v2398 = vsub.s32 %v2395, %v2397
          %v2399 = vrot.slane %v2391, %v2398
          %v2401 = vunpack.c.l.s4 1934713408
          %v2402 = vunpack.c.0.s8 %v2401
          %v2403 = vlaneseq
          %v2404 = vshrl.u32 %v2403, 7
          %v2405 = vsub.s32 %v2402, %v2404
          %v2406 = vrot.slane %v2392, %v2405
          %v2407 = vcombine.low %v2382, %v2390
          %v2408 = vcombine.high %v2382, %v2390
          %v2410 = vunpack.c.l.s4 1934713408
          %v2411 = vunpack.c.0.s8 %v2410
          %v2412 = vlaneseq
          %v2413 = vshrl.u32 %v2412, 7
          %v2414 = vsub.s32 %v2411, %v2413
          %v2415 = vrot.slane %v2407, %v2414
          %v2417 = vunpack.c.l.s4 1934713408
          %v2418 = vunpack.c.0.s8 %v2417
          %v2419 = vlaneseq
          %v2420 = vshrl.u32 %v2419, 7
          %v2421 = vsub.s32 %v2418, %v2420
          %v2422 = vrot.slane %v2408, %v2421
          %v2423 = vcombine.low %v2399, %v2415
          %v2424 = vcombine.high %v2399, %v2415
          %v2425 = vcombine.low %v2406, %v2422
          %v2426 = vcombine.high %v2406, %v2422
          %v2427 = vcombine.low %v2275, %v2277
          %v2429 = vunpack.c.l.s4 1983009808
          %v2430 = vunpack.c.0.s8 %v2429
          %v2431 = vlaneseq
          %v2432 = vshrl.u32 %v2431, 7
          %v2433 = vsub.s32 %v2430, %v2432
          %v2434 = vrot.slane %v2427, %v2433
          %v2435 = vcombine.low %v2276, %v2278
          %v2437 = vunpack.c.l.s4 1983009808
          %v2438 = vunpack.c.0.s8 %v2437
          %v2439 = vlaneseq
          %v2440 = vshrl.u32 %v2439, 7
          %v2441 = vsub.s32 %v2438, %v2440
          %v2442 = vrot.slane %v2435, %v2441
          %v2443 = vcombine.low %v2279, %v2281
          %v2445 = vunpack.c.l.s4 1983009808
          %v2446 = vunpack.c.0.s8 %v2445
          %v2447 = vlaneseq
          %v2448 = vshrl.u32 %v2447, 7
          %v2449 = vsub.s32 %v2446, %v2448
          %v2450 = vrot.slane %v2443, %v2449
          %v2451 = vcombine.low %v2280, %v2282
          %v2453 = vunpack.c.l.s4 1983009808
          %v2454 = vunpack.c.0.s8 %v2453
          %v2455 = vlaneseq
          %v2456 = vshrl.u32 %v2455, 7
          %v2457 = vsub.s32 %v2454, %v2456
          %v2458 = vrot.slane %v2451, %v2457
          %v2459 = vcombine.low %v2434, %v2442
          %v2460 = vcombine.high %v2434, %v2442
          %v2462 = vunpack.c.l.s4 1934713408
          %v2463 = vunpack.c.0.s8 %v2462
          %v2464 = vlaneseq
          %v2465 = vshrl.u32 %v2464, 7
          %v2466 = vsub.s32 %v2463, %v2465
          %v2467 = vrot.slane %v2459, %v2466
          %v2469 = vunpack.c.l.s4 1934713408
          %v2470 = vunpack.c.0.s8 %v2469
          %v2471 = vlaneseq
          %v2472 = vshrl.u32 %v2471, 7
          %v2473 = vsub.s32 %v2470, %v2472
          %v2474 = vrot.slane %v2460, %v2473
          %v2475 = vcombine.low %v2450, %v2458
          %v2476 = vcombine.high %v2450, %v2458
          %v2478 = vunpack.c.l.s4 1934713408
          %v2479 = vunpack.c.0.s8 %v2478
          %v2480 = vlaneseq
          %v2481 = vshrl.u32 %v2480, 7
          %v2482 = vsub.s32 %v2479, %v2481
          %v2483 = vrot.slane %v2475, %v2482
          %v2485 = vunpack.c.l.s4 1934713408
          %v2486 = vunpack.c.0.s8 %v2485
          %v2487 = vlaneseq
          %v2488 = vshrl.u32 %v2487, 7
          %v2489 = vsub.s32 %v2486, %v2488
          %v2490 = vrot.slane %v2476, %v2489
          %v2491 = vcombine.low %v2467, %v2483
          %v2492 = vcombine.high %v2467, %v2483
          %v2493 = vcombine.low %v2474, %v2490
          %v2494 = vcombine.high %v2474, %v2490
          %v2495 = vcombine.low %v2283, %v2285
          %v2497 = vunpack.c.l.s4 1983009808
          %v2498 = vunpack.c.0.s8 %v2497
          %v2499 = vlaneseq
          %v2500 = vshrl.u32 %v2499, 7
          %v2501 = vsub.s32 %v2498, %v2500
          %v2502 = vrot.slane %v2495, %v2501
          %v2503 = vcombine.low %v2284, %v2286
          %v2505 = vunpack.c.l.s4 1983009808
          %v2506 = vunpack.c.0.s8 %v2505
          %v2507 = vlaneseq
          %v2508 = vshrl.u32 %v2507, 7
          %v2509 = vsub.s32 %v2506, %v2508
          %v2510 = vrot.slane %v2503, %v2509
          %v2511 = vcombine.low %v2287, %v2289
          %v2513 = vunpack.c.l.s4 1983009808
          %v2514 = vunpack.c.0.s8 %v2513
          %v2515 = vlaneseq
          %v2516 = vshrl.u32 %v2515, 7
          %v2517 = vsub.s32 %v2514, %v2516
          %v2518 = vrot.slane %v2511, %v2517
          %v2519 = vcombine.low %v2288, %v2290
          %v2521 = vunpack.c.l.s4 1983009808
          %v2522 = vunpack.c.0.s8 %v2521
          %v2523 = vlaneseq
          %v2524 = vshrl.u32 %v2523, 7
          %v2525 = vsub.s32 %v2522, %v2524
          %v2526 = vrot.slane %v2519, %v2525
          %v2527 = vcombine.low %v2502, %v2510
          %v2528 = vcombine.high %v2502, %v2510
          %v2530 = vunpack.c.l.s4 1934713408
          %v2531 = vunpack.c.0.s8 %v2530
          %v2532 = vlaneseq
          %v2533 = vshrl.u32 %v2532, 7
          %v2534 = vsub.s32 %v2531, %v2533
          %v2535 = vrot.slane %v2527, %v2534
          %v2537 = vunpack.c.l.s4 1934713408
          %v2538 = vunpack.c.0.s8 %v2537
          %v2539 = vlaneseq
          %v2540 = vshrl.u32 %v2539, 7
          %v2541 = vsub.s32 %v2538, %v2540
          %v2542 = vrot.slane %v2528, %v2541
          %v2543 = vcombine.low %v2518, %v2526
          %v2544 = vcombine.high %v2518, %v2526
          %v2546 = vunpack.c.l.s4 1934713408
          %v2547 = vunpack.c.0.s8 %v2546
          %v2548 = vlaneseq
          %v2549 = vshrl.u32 %v2548, 7
          %v2550 = vsub.s32 %v2547, %v2549
          %v2551 = vrot.slane %v2543, %v2550
          %v2553 = vunpack.c.l.s4 1934713408
          %v2554 = vunpack.c.0.s8 %v2553
          %v2555 = vlaneseq
          %v2556 = vshrl.u32 %v2555, 7
          %v2557 = vsub.s32 %v2554, %v2556
          %v2558 = vrot.slane %v2544, %v2557
          %v2559 = vcombine.low %v2535, %v2551
          %v2560 = vcombine.high %v2535, %v2551
          %v2561 = vcombine.low %v2542, %v2558
          %v2562 = vcombine.high %v2542, %v2558
          %v2563 = vcombine.high %v1558, 0.0
          %v2565 = vunpack.c.l.s4 1983009808
          %v2566 = vunpack.c.0.s8 %v2565
          %v2567 = vlaneseq
          %v2568 = vshrl.u32 %v2567, 7
          %v2569 = vsub.s32 %v2566, %v2568
          %v2570 = vrot.slane %v1558, %v2569
          %v2572 = vunpack.c.l.s4 1983009808
          %v2573 = vunpack.c.0.s8 %v2572
          %v2574 = vlaneseq
          %v2575 = vshrl.u32 %v2574, 7
          %v2576 = vsub.s32 %v2573, %v2575
          %v2577 = vrot.slane %v2563, %v2576
          %v2578 = vcombine.high %v1559, 0.0
          %v2580 = vunpack.c.l.s4 1983009808
          %v2581 = vunpack.c.0.s8 %v2580
          %v2582 = vlaneseq
          %v2583 = vshrl.u32 %v2582, 7
          %v2584 = vsub.s32 %v2581, %v2583
          %v2585 = vrot.slane %v1559, %v2584
          %v2587 = vunpack.c.l.s4 1983009808
          %v2588 = vunpack.c.0.s8 %v2587
          %v2589 = vlaneseq
          %v2590 = vshrl.u32 %v2589, 7
          %v2591 = vsub.s32 %v2588, %v2590
          %v2592 = vrot.slane %v2578, %v2591
          %v2593 = vcombine.low %v2570, %v2585
          %v2594 = vcombine.high %v2570, %v2585
          %v2596 = vunpack.c.l.s4 1934713408
          %v2597 = vunpack.c.0.s8 %v2596
          %v2598 = vlaneseq
          %v2599 = vshrl.u32 %v2598, 7
          %v2600 = vsub.s32 %v2597, %v2599
          %v2601 = vrot.slane %v2593, %v2600
          %v2603 = vunpack.c.l.s4 1934713408
          %v2604 = vunpack.c.0.s8 %v2603
          %v2605 = vlaneseq
          %v2606 = vshrl.u32 %v2605, 7
          %v2607 = vsub.s32 %v2604, %v2606
          %v2608 = vrot.slane %v2594, %v2607
          %v2609 = vcombine.low %v2577, %v2592
          %v2610 = vcombine.high %v2577, %v2592
          %v2612 = vunpack.c.l.s4 1934713408
          %v2613 = vunpack.c.0.s8 %v2612
          %v2614 = vlaneseq
          %v2615 = vshrl.u32 %v2614, 7
          %v2616 = vsub.s32 %v2613, %v2615
          %v2617 = vrot.slane %v2609, %v2616
          %v2619 = vunpack.c.l.s4 1934713408
          %v2620 = vunpack.c.0.s8 %v2619
          %v2621 = vlaneseq
          %v2622 = vshrl.u32 %v2621, 7
          %v2623 = vsub.s32 %v2620, %v2622
          %v2624 = vrot.slane %v2610, %v2623
          %v2625 = vcombine.high %v2601, 0.0
          %v2626 = vcombine.high %v2608, 0.0
          %v2627 = vcombine.high %v2617, 0.0
          %v2628 = vcombine.high %v2624, 0.0
          %v2629 = vcombine.high %v1566, 0.0
          %v2631 = vunpack.c.l.s4 1983009808
          %v2632 = vunpack.c.0.s8 %v2631
          %v2633 = vlaneseq
          %v2634 = vshrl.u32 %v2633, 7
          %v2635 = vsub.s32 %v2632, %v2634
          %v2636 = vrot.slane %v1566, %v2635
          %v2638 = vunpack.c.l.s4 1983009808
          %v2639 = vunpack.c.0.s8 %v2638
          %v2640 = vlaneseq
          %v2641 = vshrl.u32 %v2640, 7
          %v2642 = vsub.s32 %v2639, %v2641
          %v2643 = vrot.slane %v2629, %v2642
          %v2644 = vcombine.high %v1567, 0.0
          %v2646 = vunpack.c.l.s4 1983009808
          %v2647 = vunpack.c.0.s8 %v2646
          %v2648 = vlaneseq
          %v2649 = vshrl.u32 %v2648, 7
          %v2650 = vsub.s32 %v2647, %v2649
          %v2651 = vrot.slane %v1567, %v2650
          %v2653 = vunpack.c.l.s4 1983009808
          %v2654 = vunpack.c.0.s8 %v2653
          %v2655 = vlaneseq
          %v2656 = vshrl.u32 %v2655, 7
          %v2657 = vsub.s32 %v2654, %v2656
          %v2658 = vrot.slane %v2644, %v2657
          %v2659 = vcombine.low %v2636, %v2651
          %v2660 = vcombine.high %v2636, %v2651
          %v2662 = vunpack.c.l.s4 1934713408
          %v2663 = vunpack.c.0.s8 %v2662
          %v2664 = vlaneseq
          %v2665 = vshrl.u32 %v2664, 7
          %v2666 = vsub.s32 %v2663, %v2665
          %v2667 = vrot.slane %v2659, %v2666
          %v2669 = vunpack.c.l.s4 1934713408
          %v2670 = vunpack.c.0.s8 %v2669
          %v2671 = vlaneseq
          %v2672 = vshrl.u32 %v2671, 7
          %v2673 = vsub.s32 %v2670, %v2672
          %v2674 = vrot.slane %v2660, %v2673
          %v2675 = vcombine.low %v2643, %v2658
          %v2676 = vcombine.high %v2643, %v2658
          %v2678 = vunpack.c.l.s4 1934713408
          %v2679 = vunpack.c.0.s8 %v2678
          %v2680 = vlaneseq
          %v2681 = vshrl.u32 %v2680, 7
          %v2682 = vsub.s32 %v2679, %v2681
          %v2683 = vrot.slane %v2675, %v2682
          %v2685 = vunpack.c.l.s4 1934713408
          %v2686 = vunpack.c.0.s8 %v2685
          %v2687 = vlaneseq
          %v2688 = vshrl.u32 %v2687, 7
          %v2689 = vsub.s32 %v2686, %v2688
          %v2690 = vrot.slane %v2676, %v2689
          %v2691 = vcombine.high %v2667, 0.0
          %v2692 = vcombine.high %v2674, 0.0
          %v2693 = vcombine.high %v2683, 0.0
          %v2694 = vcombine.high %v2690, 0.0
          %v2695 = vcombine.high %v1574, 0.0
          %v2697 = vunpack.c.l.s4 1983009808
          %v2698 = vunpack.c.0.s8 %v2697
          %v2699 = vlaneseq
          %v2700 = vshrl.u32 %v2699, 7
          %v2701 = vsub.s32 %v2698, %v2700
          %v2702 = vrot.slane %v1574, %v2701
          %v2704 = vunpack.c.l.s4 1983009808
          %v2705 = vunpack.c.0.s8 %v2704
          %v2706 = vlaneseq
          %v2707 = vshrl.u32 %v2706, 7
          %v2708 = vsub.s32 %v2705, %v2707
          %v2709 = vrot.slane %v2695, %v2708
          %v2710 = vcombine.high %v1575, 0.0
          %v2712 = vunpack.c.l.s4 1983009808
          %v2713 = vunpack.c.0.s8 %v2712
          %v2714 = vlaneseq
          %v2715 = vshrl.u32 %v2714, 7
          %v2716 = vsub.s32 %v2713, %v2715
          %v2717 = vrot.slane %v1575, %v2716
          %v2719 = vunpack.c.l.s4 1983009808
          %v2720 = vunpack.c.0.s8 %v2719
          %v2721 = vlaneseq
          %v2722 = vshrl.u32 %v2721, 7
          %v2723 = vsub.s32 %v2720, %v2722
          %v2724 = vrot.slane %v2710, %v2723
          %v2725 = vcombine.low %v2702, %v2717
          %v2726 = vcombine.high %v2702, %v2717
          %v2728 = vunpack.c.l.s4 1934713408
          %v2729 = vunpack.c.0.s8 %v2728
          %v2730 = vlaneseq
          %v2731 = vshrl.u32 %v2730, 7
          %v2732 = vsub.s32 %v2729, %v2731
          %v2733 = vrot.slane %v2725, %v2732
          %v2735 = vunpack.c.l.s4 1934713408
          %v2736 = vunpack.c.0.s8 %v2735
          %v2737 = vlaneseq
          %v2738 = vshrl.u32 %v2737, 7
          %v2739 = vsub.s32 %v2736, %v2738
          %v2740 = vrot.slane %v2726, %v2739
          %v2741 = vcombine.low %v2709, %v2724
          %v2742 = vcombine.high %v2709, %v2724
          %v2744 = vunpack.c.l.s4 1934713408
          %v2745 = vunpack.c.0.s8 %v2744
          %v2746 = vlaneseq
          %v2747 = vshrl.u32 %v2746, 7
          %v2748 = vsub.s32 %v2745, %v2747
          %v2749 = vrot.slane %v2741, %v2748
          %v2751 = vunpack.c.l.s4 1934713408
          %v2752 = vunpack.c.0.s8 %v2751
          %v2753 = vlaneseq
          %v2754 = vshrl.u32 %v2753, 7
          %v2755 = vsub.s32 %v2752, %v2754
          %v2756 = vrot.slane %v2742, %v2755
          %v2757 = vcombine.high %v2733, 0.0
          %v2758 = vcombine.high %v2740, 0.0
          %v2759 = vcombine.high %v2749, 0.0
          %v2760 = vcombine.high %v2756, 0.0
          %v2761 = vcombine.high %v1582, 0.0
          %v2763 = vunpack.c.l.s4 1983009808
          %v2764 = vunpack.c.0.s8 %v2763
          %v2765 = vlaneseq
          %v2766 = vshrl.u32 %v2765, 7
          %v2767 = vsub.s32 %v2764, %v2766
          %v2768 = vrot.slane %v1582, %v2767
          %v2770 = vunpack.c.l.s4 1983009808
          %v2771 = vunpack.c.0.s8 %v2770
          %v2772 = vlaneseq
          %v2773 = vshrl.u32 %v2772, 7
          %v2774 = vsub.s32 %v2771, %v2773
          %v2775 = vrot.slane %v2761, %v2774
          %v2776 = vcombine.high %v1583, 0.0
          %v2778 = vunpack.c.l.s4 1983009808
          %v2779 = vunpack.c.0.s8 %v2778
          %v2780 = vlaneseq
          %v2781 = vshrl.u32 %v2780, 7
          %v2782 = vsub.s32 %v2779, %v2781
          %v2783 = vrot.slane %v1583, %v2782
          %v2785 = vunpack.c.l.s4 1983009808
          %v2786 = vunpack.c.0.s8 %v2785
          %v2787 = vlaneseq
          %v2788 = vshrl.u32 %v2787, 7
          %v2789 = vsub.s32 %v2786, %v2788
          %v2790 = vrot.slane %v2776, %v2789
          %v2791 = vcombine.low %v2768, %v2783
          %v2792 = vcombine.high %v2768, %v2783
          %v2794 = vunpack.c.l.s4 1934713408
          %v2795 = vunpack.c.0.s8 %v2794
          %v2796 = vlaneseq
          %v2797 = vshrl.u32 %v2796, 7
          %v2798 = vsub.s32 %v2795, %v2797
          %v2799 = vrot.slane %v2791, %v2798
          %v2801 = vunpack.c.l.s4 1934713408
          %v2802 = vunpack.c.0.s8 %v2801
          %v2803 = vlaneseq
          %v2804 = vshrl.u32 %v2803, 7
          %v2805 = vsub.s32 %v2802, %v2804
          %v2806 = vrot.slane %v2792, %v2805
          %v2807 = vcombine.low %v2775, %v2790
          %v2808 = vcombine.high %v2775, %v2790
          %v2810 = vunpack.c.l.s4 1934713408
          %v2811 = vunpack.c.0.s8 %v2810
          %v2812 = vlaneseq
          %v2813 = vshrl.u32 %v2812, 7
          %v2814 = vsub.s32 %v2811, %v2813
          %v2815 = vrot.slane %v2807, %v2814
          %v2817 = vunpack.c.l.s4 1934713408
          %v2818 = vunpack.c.0.s8 %v2817
          %v2819 = vlaneseq
          %v2820 = vshrl.u32 %v2819, 7
          %v2821 = vsub.s32 %v2818, %v2820
          %v2822 = vrot.slane %v2808, %v2821
          %v2823 = vcombine.high %v2799, 0.0
          %v2824 = vcombine.high %v2806, 0.0
          %v2825 = vcombine.high %v2815, 0.0
          %v2826 = vcombine.high %v2822, 0.0
          %v2827 = vsub.f32 0.0, %v2601
          %v2828 = vsub.f32 0.0, %v2625
          %v2829 = vsub.f32 0.0, %v2608
          %v2830 = vsub.f32 0.0, %v2626
          %v2831 = vsub.f32 0.0, %v2617
          %v2832 = vsub.f32 0.0, %v2627
          %v2833 = vsub.f32 0.0, %v2624
          %v2834 = vsub.f32 0.0, %v2628
          %v2835 = vsub.f32 0.0, %v2667
          %v2836 = vsub.f32 0.0, %v2691
          %v2837 = vsub.f32 0.0, %v2674
          %v2838 = vsub.f32 0.0, %v2692
          %v2839 = vsub.f32 0.0, %v2683
          %v2840 = vsub.f32 0.0, %v2693
          %v2841 = vsub.f32 0.0, %v2690
          %v2842 = vsub.f32 0.0, %v2694
          %v2843 = vsub.f32 0.0, %v2733
          %v2844 = vsub.f32 0.0, %v2757
          %v2845 = vsub.f32 0.0, %v2740
          %v2846 = vsub.f32 0.0, %v2758
          %v2847 = vsub.f32 0.0, %v2749
          %v2848 = vsub.f32 0.0, %v2759
          %v2849 = vsub.f32 0.0, %v2756
          %v2850 = vsub.f32 0.0, %v2760
          %v2851 = vsub.f32 0.0, %v2799
          %v2852 = vsub.f32 0.0, %v2823
          %v2853 = vsub.f32 0.0, %v2806
          %v2854 = vsub.f32 0.0, %v2824
          %v2855 = vsub.f32 0.0, %v2815
          %v2856 = vsub.f32 0.0, %v2825
          %v2857 = vsub.f32 0.0, %v2822
          %v2858 = vsub.f32 0.0, %v2826
          %2891 = vrot.lane.b32.xlu0 %v2827, 64
          %v2892 = vpop.permute.xlu0 %2891
          %2893 = vrot.lane.b32.xlu0 %v2828, 64
          %v2894 = vpop.permute.xlu0 %2893
          %2895 = vrot.lane.b32.xlu0 %v2829, 64
          %v2896 = vpop.permute.xlu0 %2895
          %2897 = vrot.lane.b32.xlu0 %v2830, 64
          %v2898 = vpop.permute.xlu0 %2897
          %2899 = vrot.lane.b32.xlu0 %v2831, 64
          %v2900 = vpop.permute.xlu0 %2899
          %2901 = vrot.lane.b32.xlu0 %v2832, 64
          %v2902 = vpop.permute.xlu0 %2901
          %2903 = vrot.lane.b32.xlu0 %v2833, 64
          %v2904 = vpop.permute.xlu0 %2903
          %2905 = vrot.lane.b32.xlu0 %v2834, 64
          %v2906 = vpop.permute.xlu0 %2905
          %2907 = vrot.lane.b32.xlu0 %v2835, 64
          %v2908 = vpop.permute.xlu0 %2907
          %2909 = vrot.lane.b32.xlu0 %v2836, 64
          %v2910 = vpop.permute.xlu0 %2909
          %2911 = vrot.lane.b32.xlu0 %v2837, 64
          %v2912 = vpop.permute.xlu0 %2911
          %2913 = vrot.lane.b32.xlu0 %v2838, 64
          %v2914 = vpop.permute.xlu0 %2913
          %2915 = vrot.lane.b32.xlu0 %v2839, 64
          %v2916 = vpop.permute.xlu0 %2915
          %2917 = vrot.lane.b32.xlu0 %v2840, 64
          %v2918 = vpop.permute.xlu0 %2917
          %2919 = vrot.lane.b32.xlu0 %v2841, 64
          %v2920 = vpop.permute.xlu0 %2919
          %2921 = vrot.lane.b32.xlu0 %v2842, 64
          %v2922 = vpop.permute.xlu0 %2921
          %2923 = vrot.lane.b32.xlu0 %v2843, 64
          %v2924 = vpop.permute.xlu0 %2923
          %2925 = vrot.lane.b32.xlu0 %v2844, 64
          %v2926 = vpop.permute.xlu0 %2925
          %2927 = vrot.lane.b32.xlu0 %v2845, 64
          %v2928 = vpop.permute.xlu0 %2927
          %2929 = vrot.lane.b32.xlu0 %v2846, 64
          %v2930 = vpop.permute.xlu0 %2929
          %2931 = vrot.lane.b32.xlu0 %v2847, 64
          %v2932 = vpop.permute.xlu0 %2931
          %2933 = vrot.lane.b32.xlu0 %v2848, 64
          %v2934 = vpop.permute.xlu0 %2933
          %2935 = vrot.lane.b32.xlu0 %v2849, 64
          %v2936 = vpop.permute.xlu0 %2935
          %2937 = vrot.lane.b32.xlu0 %v2850, 64
          %v2938 = vpop.permute.xlu0 %2937
          %2939 = vrot.lane.b32.xlu0 %v2851, 64
          %v2940 = vpop.permute.xlu0 %2939
          %2941 = vrot.lane.b32.xlu0 %v2852, 64
          %v2942 = vpop.permute.xlu0 %2941
          %2943 = vrot.lane.b32.xlu0 %v2853, 64
          %v2944 = vpop.permute.xlu0 %2943
          %2945 = vrot.lane.b32.xlu0 %v2854, 64
          %v2946 = vpop.permute.xlu0 %2945
          %2947 = vrot.lane.b32.xlu0 %v2855, 64
          %v2948 = vpop.permute.xlu0 %2947
          %2949 = vrot.lane.b32.xlu0 %v2856, 64
          %v2950 = vpop.permute.xlu0 %2949
          %2951 = vrot.lane.b32.xlu0 %v2857, 64
          %v2952 = vpop.permute.xlu0 %2951
          %2953 = vrot.lane.b32.xlu0 %v2858, 64
          %v2954 = vpop.permute.xlu0 %2953
          %3019 = vrot.lane.b32.xlu0 %v2601, 64
          %v3020 = vpop.permute.xlu0 %3019
          %3021 = vrot.lane.b32.xlu0 %v2625, 64
          %v3022 = vpop.permute.xlu0 %3021
          %3023 = vrot.lane.b32.xlu0 %v2608, 64
          %v3024 = vpop.permute.xlu0 %3023
          %3025 = vrot.lane.b32.xlu0 %v2626, 64
          %v3026 = vpop.permute.xlu0 %3025
          %3027 = vrot.lane.b32.xlu0 %v2617, 64
          %v3028 = vpop.permute.xlu0 %3027
          %3029 = vrot.lane.b32.xlu0 %v2627, 64
          %v3030 = vpop.permute.xlu0 %3029
          %3031 = vrot.lane.b32.xlu0 %v2624, 64
          %v3032 = vpop.permute.xlu0 %3031
          %3033 = vrot.lane.b32.xlu0 %v2628, 64
          %v3034 = vpop.permute.xlu0 %3033
          %3035 = vrot.lane.b32.xlu0 %v2667, 64
          %v3036 = vpop.permute.xlu0 %3035
          %3037 = vrot.lane.b32.xlu0 %v2691, 64
          %v3038 = vpop.permute.xlu0 %3037
          %3039 = vrot.lane.b32.xlu0 %v2674, 64
          %v3040 = vpop.permute.xlu0 %3039
          %3041 = vrot.lane.b32.xlu0 %v2692, 64
          %v3042 = vpop.permute.xlu0 %3041
          %3043 = vrot.lane.b32.xlu0 %v2683, 64
          %v3044 = vpop.permute.xlu0 %3043
          %3045 = vrot.lane.b32.xlu0 %v2693, 64
          %v3046 = vpop.permute.xlu0 %3045
          %3047 = vrot.lane.b32.xlu0 %v2690, 64
          %v3048 = vpop.permute.xlu0 %3047
          %3049 = vrot.lane.b32.xlu0 %v2694, 64
          %v3050 = vpop.permute.xlu0 %3049
          %3051 = vrot.lane.b32.xlu0 %v2733, 64
          %v3052 = vpop.permute.xlu0 %3051
          %3053 = vrot.lane.b32.xlu0 %v2757, 64
          %v3054 = vpop.permute.xlu0 %3053
          %3055 = vrot.lane.b32.xlu0 %v2740, 64
          %v3056 = vpop.permute.xlu0 %3055
          %3057 = vrot.lane.b32.xlu0 %v2758, 64
          %v3058 = vpop.permute.xlu0 %3057
          %3059 = vrot.lane.b32.xlu0 %v2749, 64
          %v3060 = vpop.permute.xlu0 %3059
          %3061 = vrot.lane.b32.xlu0 %v2759, 64
          %v3062 = vpop.permute.xlu0 %3061
          %3063 = vrot.lane.b32.xlu0 %v2756, 64
          %v3064 = vpop.permute.xlu0 %3063
          %3065 = vrot.lane.b32.xlu0 %v2760, 64
          %v3066 = vpop.permute.xlu0 %3065
          %3067 = vrot.lane.b32.xlu0 %v2799, 64
          %v3068 = vpop.permute.xlu0 %3067
          %3069 = vrot.lane.b32.xlu0 %v2823, 64
          %v3070 = vpop.permute.xlu0 %3069
          %3071 = vrot.lane.b32.xlu0 %v2806, 64
          %v3072 = vpop.permute.xlu0 %3071
          %3073 = vrot.lane.b32.xlu0 %v2824, 64
          %v3074 = vpop.permute.xlu0 %3073
          %3075 = vrot.lane.b32.xlu0 %v2815, 64
          %v3076 = vpop.permute.xlu0 %3075
          %3077 = vrot.lane.b32.xlu0 %v2825, 64
          %v3078 = vpop.permute.xlu0 %3077
          %3079 = vrot.lane.b32.xlu0 %v2822, 64
          %v3080 = vpop.permute.xlu0 %3079
          %3081 = vrot.lane.b32.xlu0 %v2826, 64
          %v3082 = vpop.permute.xlu0 %3081
          %v3115 = vsel %vm2150, %v2892, %v3020
          %v3116 = vsel %vm2150, %v2894, %v3022
          %v3117 = vsel %vm2150, %v2896, %v3024
          %v3118 = vsel %vm2150, %v2898, %v3026
          %v3119 = vsel %vm2150, %v2900, %v3028
          %v3120 = vsel %vm2150, %v2902, %v3030
          %v3121 = vsel %vm2150, %v2904, %v3032
          %v3122 = vsel %vm2150, %v2906, %v3034
          %v3123 = vsel %vm2150, %v2908, %v3036
          %v3124 = vsel %vm2150, %v2910, %v3038
          %v3125 = vsel %vm2150, %v2912, %v3040
          %v3126 = vsel %vm2150, %v2914, %v3042
          %v3127 = vsel %vm2150, %v2916, %v3044
          %v3128 = vsel %vm2150, %v2918, %v3046
          %v3129 = vsel %vm2150, %v2920, %v3048
          %v3130 = vsel %vm2150, %v2922, %v3050
          %v3131 = vsel %vm2150, %v2924, %v3052
          %v3132 = vsel %vm2150, %v2926, %v3054
          %v3133 = vsel %vm2150, %v2928, %v3056
          %v3134 = vsel %vm2150, %v2930, %v3058
          %v3135 = vsel %vm2150, %v2932, %v3060
          %v3136 = vsel %vm2150, %v2934, %v3062
          %v3137 = vsel %vm2150, %v2936, %v3064
          %v3138 = vsel %vm2150, %v2938, %v3066
          %v3139 = vsel %vm2150, %v2940, %v3068
          %v3140 = vsel %vm2150, %v2942, %v3070
          %v3141 = vsel %vm2150, %v2944, %v3072
          %v3142 = vsel %vm2150, %v2946, %v3074
          %v3143 = vsel %vm2150, %v2948, %v3076
          %v3144 = vsel %vm2150, %v2950, %v3078
          %v3145 = vsel %vm2150, %v2952, %v3080
          %v3146 = vsel %vm2150, %v2954, %v3082
          %v3148 = vlaneseq
          %v3149 = vshrl.u32 %v3148, 7
          %v3150 = vsub.s32 0, %v3149
          %v3151 = vrot.slane %v1586, %v3150
          %v3153 = vmul.f32 %v2601, %v3151
          %v3154 = vmul.f32 %v2625, %v3151
          %v3155 = vmul.f32 %v2608, %v3151
          %v3156 = vmul.f32 %v2626, %v3151
          %v3157 = vmul.f32 %v2617, %v3151
          %v3158 = vmul.f32 %v2627, %v3151
          %v3159 = vmul.f32 %v2624, %v3151
          %v3160 = vmul.f32 %v2628, %v3151
          %v3161 = vmul.f32 %v2667, %v3151
          %v3162 = vmul.f32 %v2691, %v3151
          %v3163 = vmul.f32 %v2674, %v3151
          %v3164 = vmul.f32 %v2692, %v3151
          %v3165 = vmul.f32 %v2683, %v3151
          %v3166 = vmul.f32 %v2693, %v3151
          %v3167 = vmul.f32 %v2690, %v3151
          %v3168 = vmul.f32 %v2694, %v3151
          %v3169 = vmul.f32 %v2733, %v3151
          %v3170 = vmul.f32 %v2757, %v3151
          %v3171 = vmul.f32 %v2740, %v3151
          %v3172 = vmul.f32 %v2758, %v3151
          %v3173 = vmul.f32 %v2749, %v3151
          %v3174 = vmul.f32 %v2759, %v3151
          %v3175 = vmul.f32 %v2756, %v3151
          %v3176 = vmul.f32 %v2760, %v3151
          %v3177 = vmul.f32 %v2799, %v3151
          %v3178 = vmul.f32 %v2823, %v3151
          %v3179 = vmul.f32 %v2806, %v3151
          %v3180 = vmul.f32 %v2824, %v3151
          %v3181 = vmul.f32 %v2815, %v3151
          %v3182 = vmul.f32 %v2825, %v3151
          %v3183 = vmul.f32 %v2822, %v3151
          %v3184 = vmul.f32 %v2826, %v3151
          %v3186 = vlaneseq
          %v3187 = vshrl.u32 %v3186, 7
          %v3188 = vsub.s32 0, %v3187
          %v3189 = vrot.slane %v1587, %v3188
          %v3191 = vmul.f32 %v3115, %v3189
          %v3192 = vmul.f32 %v3116, %v3189
          %v3193 = vmul.f32 %v3117, %v3189
          %v3194 = vmul.f32 %v3118, %v3189
          %v3195 = vmul.f32 %v3119, %v3189
          %v3196 = vmul.f32 %v3120, %v3189
          %v3197 = vmul.f32 %v3121, %v3189
          %v3198 = vmul.f32 %v3122, %v3189
          %v3199 = vmul.f32 %v3123, %v3189
          %v3200 = vmul.f32 %v3124, %v3189
          %v3201 = vmul.f32 %v3125, %v3189
          %v3202 = vmul.f32 %v3126, %v3189
          %v3203 = vmul.f32 %v3127, %v3189
          %v3204 = vmul.f32 %v3128, %v3189
          %v3205 = vmul.f32 %v3129, %v3189
          %v3206 = vmul.f32 %v3130, %v3189
          %v3207 = vmul.f32 %v3131, %v3189
          %v3208 = vmul.f32 %v3132, %v3189
          %v3209 = vmul.f32 %v3133, %v3189
          %v3210 = vmul.f32 %v3134, %v3189
          %v3211 = vmul.f32 %v3135, %v3189
          %v3212 = vmul.f32 %v3136, %v3189
          %v3213 = vmul.f32 %v3137, %v3189
          %v3214 = vmul.f32 %v3138, %v3189
          %v3215 = vmul.f32 %v3139, %v3189
          %v3216 = vmul.f32 %v3140, %v3189
          %v3217 = vmul.f32 %v3141, %v3189
          %v3218 = vmul.f32 %v3142, %v3189
          %v3219 = vmul.f32 %v3143, %v3189
          %v3220 = vmul.f32 %v3144, %v3189
          %v3221 = vmul.f32 %v3145, %v3189
          %v3222 = vmul.f32 %v3146, %v3189
          %v3223 = vadd.f32 %v3153, %v3191
          %v3224 = vadd.f32 %v3154, %v3192
          %v3225 = vadd.f32 %v3155, %v3193
          %v3226 = vadd.f32 %v3156, %v3194
          %v3227 = vadd.f32 %v3157, %v3195
          %v3228 = vadd.f32 %v3158, %v3196
          %v3229 = vadd.f32 %v3159, %v3197
          %v3230 = vadd.f32 %v3160, %v3198
          %v3231 = vadd.f32 %v3161, %v3199
          %v3232 = vadd.f32 %v3162, %v3200
          %v3233 = vadd.f32 %v3163, %v3201
          %v3234 = vadd.f32 %v3164, %v3202
          %v3235 = vadd.f32 %v3165, %v3203
          %v3236 = vadd.f32 %v3166, %v3204
          %v3237 = vadd.f32 %v3167, %v3205
          %v3238 = vadd.f32 %v3168, %v3206
          %v3239 = vadd.f32 %v3169, %v3207
          %v3240 = vadd.f32 %v3170, %v3208
          %v3241 = vadd.f32 %v3171, %v3209
          %v3242 = vadd.f32 %v3172, %v3210
          %v3243 = vadd.f32 %v3173, %v3211
          %v3244 = vadd.f32 %v3174, %v3212
          %v3245 = vadd.f32 %v3175, %v3213
          %v3246 = vadd.f32 %v3176, %v3214
          %v3247 = vadd.f32 %v3177, %v3215
          %v3248 = vadd.f32 %v3178, %v3216
          %v3249 = vadd.f32 %v3179, %v3217
          %v3250 = vadd.f32 %v3180, %v3218
          %v3251 = vadd.f32 %v3181, %v3219
          %v3252 = vadd.f32 %v3182, %v3220
          %v3253 = vadd.f32 %v3183, %v3221
          %v3254 = vadd.f32 %v3184, %v3222
          %v3255 = vcombine.low %v3223, %v3225
          %v3257 = vunpack.c.l.s4 1983009808
          %v3258 = vunpack.c.0.s8 %v3257
          %v3259 = vlaneseq
          %v3260 = vshrl.u32 %v3259, 7
          %v3261 = vsub.s32 %v3258, %v3260
          %v3262 = vrot.slane %v3255, %v3261
          %v3263 = vcombine.low %v3224, %v3226
          %v3265 = vunpack.c.l.s4 1983009808
          %v3266 = vunpack.c.0.s8 %v3265
          %v3267 = vlaneseq
          %v3268 = vshrl.u32 %v3267, 7
          %v3269 = vsub.s32 %v3266, %v3268
          %v3270 = vrot.slane %v3263, %v3269
          %v3271 = vcombine.low %v3227, %v3229
          %v3273 = vunpack.c.l.s4 1983009808
          %v3274 = vunpack.c.0.s8 %v3273
          %v3275 = vlaneseq
          %v3276 = vshrl.u32 %v3275, 7
          %v3277 = vsub.s32 %v3274, %v3276
          %v3278 = vrot.slane %v3271, %v3277
          %v3279 = vcombine.low %v3228, %v3230
          %v3281 = vunpack.c.l.s4 1983009808
          %v3282 = vunpack.c.0.s8 %v3281
          %v3283 = vlaneseq
          %v3284 = vshrl.u32 %v3283, 7
          %v3285 = vsub.s32 %v3282, %v3284
          %v3286 = vrot.slane %v3279, %v3285
          %v3287 = vcombine.low %v3262, %v3270
          %v3289 = vunpack.c.l.s4 1934713408
          %v3290 = vunpack.c.0.s8 %v3289
          %v3291 = vlaneseq
          %v3292 = vshrl.u32 %v3291, 7
          %v3293 = vsub.s32 %v3290, %v3292
          %v3294 = vrot.slane %v3287, %v3293
          %v3295 = vcombine.low %v3278, %v3286
          %v3297 = vunpack.c.l.s4 1934713408
          %v3298 = vunpack.c.0.s8 %v3297
          %v3299 = vlaneseq
          %v3300 = vshrl.u32 %v3299, 7
          %v3301 = vsub.s32 %v3298, %v3300
          %v3302 = vrot.slane %v3295, %v3301
          %v3303 = vcombine.low %v3294, %v3302
          %v3304 = vcombine.high %v3294, %v3302
          %v3305 = vcombine.low %v3231, %v3233
          %v3307 = vunpack.c.l.s4 1983009808
          %v3308 = vunpack.c.0.s8 %v3307
          %v3309 = vlaneseq
          %v3310 = vshrl.u32 %v3309, 7
          %v3311 = vsub.s32 %v3308, %v3310
          %v3312 = vrot.slane %v3305, %v3311
          %v3313 = vcombine.low %v3232, %v3234
          %v3315 = vunpack.c.l.s4 1983009808
          %v3316 = vunpack.c.0.s8 %v3315
          %v3317 = vlaneseq
          %v3318 = vshrl.u32 %v3317, 7
          %v3319 = vsub.s32 %v3316, %v3318
          %v3320 = vrot.slane %v3313, %v3319
          %v3321 = vcombine.low %v3235, %v3237
          %v3323 = vunpack.c.l.s4 1983009808
          %v3324 = vunpack.c.0.s8 %v3323
          %v3325 = vlaneseq
          %v3326 = vshrl.u32 %v3325, 7
          %v3327 = vsub.s32 %v3324, %v3326
          %v3328 = vrot.slane %v3321, %v3327
          %v3329 = vcombine.low %v3236, %v3238
          %v3331 = vunpack.c.l.s4 1983009808
          %v3332 = vunpack.c.0.s8 %v3331
          %v3333 = vlaneseq
          %v3334 = vshrl.u32 %v3333, 7
          %v3335 = vsub.s32 %v3332, %v3334
          %v3336 = vrot.slane %v3329, %v3335
          %v3337 = vcombine.low %v3312, %v3320
          %v3339 = vunpack.c.l.s4 1934713408
          %v3340 = vunpack.c.0.s8 %v3339
          %v3341 = vlaneseq
          %v3342 = vshrl.u32 %v3341, 7
          %v3343 = vsub.s32 %v3340, %v3342
          %v3344 = vrot.slane %v3337, %v3343
          %v3345 = vcombine.low %v3328, %v3336
          %v3347 = vunpack.c.l.s4 1934713408
          %v3348 = vunpack.c.0.s8 %v3347
          %v3349 = vlaneseq
          %v3350 = vshrl.u32 %v3349, 7
          %v3351 = vsub.s32 %v3348, %v3350
          %v3352 = vrot.slane %v3345, %v3351
          %v3353 = vcombine.low %v3344, %v3352
          %v3354 = vcombine.high %v3344, %v3352
          %v3355 = vcombine.low %v3239, %v3241
          %v3357 = vunpack.c.l.s4 1983009808
          %v3358 = vunpack.c.0.s8 %v3357
          %v3359 = vlaneseq
          %v3360 = vshrl.u32 %v3359, 7
          %v3361 = vsub.s32 %v3358, %v3360
          %v3362 = vrot.slane %v3355, %v3361
          %v3363 = vcombine.low %v3240, %v3242
          %v3365 = vunpack.c.l.s4 1983009808
          %v3366 = vunpack.c.0.s8 %v3365
          %v3367 = vlaneseq
          %v3368 = vshrl.u32 %v3367, 7
          %v3369 = vsub.s32 %v3366, %v3368
          %v3370 = vrot.slane %v3363, %v3369
          %v3371 = vcombine.low %v3243, %v3245
          %v3373 = vunpack.c.l.s4 1983009808
          %v3374 = vunpack.c.0.s8 %v3373
          %v3375 = vlaneseq
          %v3376 = vshrl.u32 %v3375, 7
          %v3377 = vsub.s32 %v3374, %v3376
          %v3378 = vrot.slane %v3371, %v3377
          %v3379 = vcombine.low %v3244, %v3246
          %v3381 = vunpack.c.l.s4 1983009808
          %v3382 = vunpack.c.0.s8 %v3381
          %v3383 = vlaneseq
          %v3384 = vshrl.u32 %v3383, 7
          %v3385 = vsub.s32 %v3382, %v3384
          %v3386 = vrot.slane %v3379, %v3385
          %v3387 = vcombine.low %v3362, %v3370
          %v3389 = vunpack.c.l.s4 1934713408
          %v3390 = vunpack.c.0.s8 %v3389
          %v3391 = vlaneseq
          %v3392 = vshrl.u32 %v3391, 7
          %v3393 = vsub.s32 %v3390, %v3392
          %v3394 = vrot.slane %v3387, %v3393
          %v3395 = vcombine.low %v3378, %v3386
          %v3397 = vunpack.c.l.s4 1934713408
          %v3398 = vunpack.c.0.s8 %v3397
          %v3399 = vlaneseq
          %v3400 = vshrl.u32 %v3399, 7
          %v3401 = vsub.s32 %v3398, %v3400
          %v3402 = vrot.slane %v3395, %v3401
          %v3403 = vcombine.low %v3394, %v3402
          %v3404 = vcombine.high %v3394, %v3402
          %v3405 = vcombine.low %v3247, %v3249
          %v3407 = vunpack.c.l.s4 1983009808
          %v3408 = vunpack.c.0.s8 %v3407
          %v3409 = vlaneseq
          %v3410 = vshrl.u32 %v3409, 7
          %v3411 = vsub.s32 %v3408, %v3410
          %v3412 = vrot.slane %v3405, %v3411
          %v3413 = vcombine.low %v3248, %v3250
          %v3415 = vunpack.c.l.s4 1983009808
          %v3416 = vunpack.c.0.s8 %v3415
          %v3417 = vlaneseq
          %v3418 = vshrl.u32 %v3417, 7
          %v3419 = vsub.s32 %v3416, %v3418
          %v3420 = vrot.slane %v3413, %v3419
          %v3421 = vcombine.low %v3251, %v3253
          %v3423 = vunpack.c.l.s4 1983009808
          %v3424 = vunpack.c.0.s8 %v3423
          %v3425 = vlaneseq
          %v3426 = vshrl.u32 %v3425, 7
          %v3427 = vsub.s32 %v3424, %v3426
          %v3428 = vrot.slane %v3421, %v3427
          %v3429 = vcombine.low %v3252, %v3254
          %v3431 = vunpack.c.l.s4 1983009808
          %v3432 = vunpack.c.0.s8 %v3431
          %v3433 = vlaneseq
          %v3434 = vshrl.u32 %v3433, 7
          %v3435 = vsub.s32 %v3432, %v3434
          %v3436 = vrot.slane %v3429, %v3435
          %v3437 = vcombine.low %v3412, %v3420
          %v3439 = vunpack.c.l.s4 1934713408
          %v3440 = vunpack.c.0.s8 %v3439
          %v3441 = vlaneseq
          %v3442 = vshrl.u32 %v3441, 7
          %v3443 = vsub.s32 %v3440, %v3442
          %v3444 = vrot.slane %v3437, %v3443
          %v3445 = vcombine.low %v3428, %v3436
          %v3447 = vunpack.c.l.s4 1934713408
          %v3448 = vunpack.c.0.s8 %v3447
          %v3449 = vlaneseq
          %v3450 = vshrl.u32 %v3449, 7
          %v3451 = vsub.s32 %v3448, %v3450
          %v3452 = vrot.slane %v3445, %v3451
          %v3453 = vcombine.low %v3444, %v3452
          %v3454 = vcombine.high %v3444, %v3452
          %v3455 = vpack.c.bf16 %v2423, %v2355
          %v3456 = vpack.c.bf16 %v2424, %v2356
          %v3457 = vpack.c.bf16 %v2425, %v2357
          %v3458 = vpack.c.bf16 %v2426, %v2358
          %v3459 = vpack.c.bf16 %v2559, %v2491
          %v3460 = vpack.c.bf16 %v2560, %v2492
          %v3461 = vpack.c.bf16 %v2561, %v2493
          %v3462 = vpack.c.bf16 %v2562, %v2494
          %v3471 = vunpack.c.l.b16 %v3455
          %v3472 = vunpack.c.l.b16 %v3456
          %v3473 = vunpack.c.l.b16 %v3457
          %v3474 = vunpack.c.l.b16 %v3458
          %v3475 = vunpack.c.h.b16 %v3455
          %v3476 = vunpack.c.h.b16 %v3456
          %v3477 = vunpack.c.h.b16 %v3457
          %v3478 = vunpack.c.h.b16 %v3458
          %v3479 = vunpack.c.l.b16 %v3459
          %v3480 = vunpack.c.l.b16 %v3460
          %v3481 = vunpack.c.l.b16 %v3461
          %v3482 = vunpack.c.l.b16 %v3462
          %v3483 = vunpack.c.h.b16 %v3459
          %v3484 = vunpack.c.h.b16 %v3460
          %v3485 = vunpack.c.h.b16 %v3461
          %v3486 = vunpack.c.h.b16 %v3462
          %v3487 = vpack.c.b16 %v3472, %v3471
          %v3488 = vpack.c.b16 %v3474, %v3473
          %v3489 = vpack.c.b16 %v3476, %v3475
          %v3490 = vpack.c.b16 %v3478, %v3477
          %v3491 = vpack.c.b16 %v3480, %v3479
          %v3492 = vpack.c.b16 %v3482, %v3481
          %v3493 = vpack.c.b16 %v3484, %v3483
          %v3494 = vpack.c.b16 %v3486, %v3485
          %3503 = vst [vmem:[%s390] sm:$0xff] %v3487
          %3504 = vst [vmem:[%s390 + $0x8] sm:$0xff] %v3488
          %3505 = vst [vmem:[%s390 + $0x10] sm:$0xff] %v3489
          %3506 = vst [vmem:[%s390 + $0x18] sm:$0xff] %v3490
          %3507 = vst [vmem:[%s390 + $0x20] sm:$0xff] %v3491
          %3508 = vst [vmem:[%s390 + $0x28] sm:$0xff] %v3492
          %3509 = vst [vmem:[%s390 + $0x30] sm:$0xff] %v3493
          %3510 = vst [vmem:[%s390 + $0x38] sm:$0xff] %v3494
          %v3511 = vpack.c.bf16 %v3353, %v3303
          %v3512 = vpack.c.bf16 %v3354, %v3304
          %v3513 = vpack.c.bf16 %v3453, %v3403
          %v3514 = vpack.c.bf16 %v3454, %v3404
          %v3519 = vunpack.c.l.b16 %v3511
          %v3520 = vunpack.c.l.b16 %v3512
          %v3521 = vunpack.c.h.b16 %v3511
          %v3522 = vunpack.c.h.b16 %v3512
          %v3523 = vunpack.c.l.b16 %v3513
          %v3524 = vunpack.c.l.b16 %v3514
          %v3525 = vunpack.c.h.b16 %v3513
          %v3526 = vunpack.c.h.b16 %v3514
          %v3527 = vpack.c.b16 %v3520, %v3519
          %v3528 = vpack.c.b16 %v3522, %v3521
          %v3529 = vpack.c.b16 %v3524, %v3523
          %v3530 = vpack.c.b16 %v3526, %v3525
          %3535 = vst [vmem:[%s397] sm:$0xff] %v3527
          %3536 = vst [vmem:[%s397 + $0x8] sm:$0xff] %v3528
          %3537 = vst [vmem:[%s397 + $0x10] sm:$0xff] %v3529
          %3538 = vst [vmem:[%s397 + $0x18] sm:$0xff] %v3530
          %v3539 = vpack.c.bf16 %v1568, %v1560
          %v3540 = vpack.c.bf16 %v1569, %v1561
          %v3541 = vpack.c.bf16 %v1584, %v1576
          %v3542 = vpack.c.bf16 %v1585, %v1577
          %v3547 = vunpack.c.l.b16 %v3539
          %v3548 = vunpack.c.l.b16 %v3540
          %v3549 = vunpack.c.h.b16 %v3539
          %v3550 = vunpack.c.h.b16 %v3540
          %v3551 = vunpack.c.l.b16 %v3541
          %v3552 = vunpack.c.l.b16 %v3542
          %v3553 = vunpack.c.h.b16 %v3541
          %v3554 = vunpack.c.h.b16 %v3542
          %v3555 = vpack.c.b16 %v3548, %v3547
          %v3556 = vpack.c.b16 %v3550, %v3549
          %v3557 = vpack.c.b16 %v3552, %v3551
          %v3558 = vpack.c.b16 %v3554, %v3553
          %3563 = vst [vmem:[%s404] sm:$0xff] %v3555
          %3564 = vst [vmem:[%s404 + $0x8] sm:$0xff] %v3556
          %3565 = vst [vmem:[%s404 + $0x10] sm:$0xff] %v3557
          %3566 = vst [vmem:[%s404 + $0x18] sm:$0xff] %v3558
        $region56: #{tpu_custom_call.1} parent=35 // pred_fallthru
          _
        %s3567 = sand.u32 %s167, 1
        %s3568 = scalar_lea.sflag [#allocation5], %s3567
        %s3569 = sand.u32 %s167, 1
        %s3570 = smul.addr %s3569, 64
        %s3571 = scalar_lea.vmem [#allocation9], %s3570
        %s3572 = sand.u32 %s30, 1
        %s3573 = scalar_lea.sflag [#allocation11], %s3572
        %s3574 = sand.u32 %s195, 1
        %s3575 = smul.addr %s3574, 32
        %s3576 = scalar_lea.vmem [#allocation10], %s3575
        %s3577 = sand.u32 %s30, 1
        %s3578 = scalar_lea.sflag [#allocation11], %s3577
        %s3579 = sand.u32 %s223, 1
        %s3580 = smul.addr %s3579, 32
        %s3581 = scalar_lea.vmem [#allocation12], %s3580
        // Predicated region
        $region57: #{tpu_custom_call.1} parent=35 // pred_check
          %p3582 = pneg %p177
        $region58: #{tpu_custom_call.1} parent=35 // pred_check_branch
          %3584 = sbr.rel (%p3582) target = $region60
        $region59: #{tpu_custom_call.1} parent=35 // pred_region
          %s3585 = smul.u32 4, %s36
          %s3587 = ssub.s32 1024, 1024
          %3588 = vsyncadd %s3568, %s3587
          %s3589 = smul.addr %s3585, 4
          %s3590 = smul.addr %s35, 32
          %s3591 = sadd.s32 %s3589, %s3590
          %s3592 = smul.addr %s3591, 64
          %s3593 = scalar_lea.hbm %s4, %s3592
          %s3594 = sshll.u32 %s3571, 4
          %s3595 = int_to_ptr.vmem [resolvable:$true] %s3594
          %3600 = dma.vmem_to_hbm [thread:$0]  %s3595, 1024, %s3593, %s3568, 256, 256, 16
        $region60: #{tpu_custom_call.1} parent=35 // pred_fallthru
          _
        // Predicated region
        $region61: #{tpu_custom_call.1} parent=35 // pred_check
          %p3601 = pneg %p205
        $region62: #{tpu_custom_call.1} parent=35 // pred_check_branch
          %3603 = sbr.rel (%p3601) target = $region64
        $region63: #{tpu_custom_call.1} parent=35 // pred_region
          %s3604 = smul.u32 4, %s36
          %s3606 = ssub.s32 512, 512
          %3607 = vsyncadd %s3573, %s3606
          %s3608 = smul.addr %s3604, 2
          %s3609 = smul.addr %s35, 16
          %s3610 = sadd.s32 %s3608, %s3609
          %s3611 = smul.addr %s3610, 64
          %s3612 = scalar_lea.hbm %s5, %s3611
          %s3613 = sshll.u32 %s3576, 4
          %s3614 = int_to_ptr.vmem [resolvable:$true] %s3613
          %3619 = dma.vmem_to_hbm [thread:$0]  %s3614, 512, %s3612, %s3573, 128, 128, 8
        $region64: #{tpu_custom_call.1} parent=35 // pred_fallthru
          _
        // Predicated region
        $region65: #{tpu_custom_call.1} parent=35 // pred_check
          %p3620 = pneg %p233
        $region66: #{tpu_custom_call.1} parent=35 // pred_check_branch
          %3622 = sbr.rel (%p3620) target = $region68
        $region67: #{tpu_custom_call.1} parent=35 // pred_region
          %s3623 = smul.u32 4, %s36
          %s3625 = ssub.s32 512, 512
          %3626 = vsyncadd %s3578, %s3625
          %s3627 = smul.addr %s3623, 2
          %s3628 = smul.addr %s35, 16
          %s3629 = sadd.s32 %s3627, %s3628
          %s3630 = smul.addr %s3629, 64
          %s3631 = scalar_lea.hbm %s6, %s3630
          %s3632 = sshll.u32 %s3581, 4
          %s3633 = int_to_ptr.vmem [resolvable:$true] %s3632
          %3638 = dma.vmem_to_hbm [thread:$0]  %s3633, 512, %s3631, %s3578, 128, 128, 8
        $region68: #{tpu_custom_call.1} parent=35 // pred_fallthru
          _
      $region36: #{tpu_custom_call.1} parent=5 // pred_fallthru
        _
      %p3639 = scmp.le.s32.totalorder 2, %s25
      // Predicated region
      $region69: #{tpu_custom_call.1} parent=5 // pred_check
        %p3640 = pneg %p3639
      $region70: #{tpu_custom_call.1} parent=5 // pred_check_branch
        %3642 = sbr.rel (%p3640) target = $region72
      $region71: #{tpu_custom_call.1} parent=5 // pred_region
        %s3643 = ssub.s32 %s25, 2
        // Predicated region
        $region73: #{tpu_custom_call.1} parent=71 // pred_check
          %p3644 = pneg %p183
        $region74: #{tpu_custom_call.1} parent=71 // pred_check_branch
          %3646 = sbr.rel (%p3644) target = $region76
        $region75: #{tpu_custom_call.1} parent=71 // pred_region
          %s3647 = sand.u32 %s168, 1
          %s3648 = scalar_lea.sflag [#allocation5], %s3647
          %s3649 = sand.u32 %s168, 1
          %s3650 = smul.addr %s3649, 64
          %s3651 = scalar_lea.vmem [#allocation9], %s3650
          %3652 = dma.done %s3648, 1024
        $region76: #{tpu_custom_call.1} parent=71 // pred_fallthru
          _
        // Predicated region
        $region77: #{tpu_custom_call.1} parent=71 // pred_check
          %p3653 = pneg %p211
        $region78: #{tpu_custom_call.1} parent=71 // pred_check_branch
          %3655 = sbr.rel (%p3653) target = $region80
        $region79: #{tpu_custom_call.1} parent=71 // pred_region
          %s3656 = sand.u32 %s31, 1
          %s3657 = scalar_lea.sflag [#allocation11], %s3656
          %s3658 = sand.u32 %s196, 1
          %s3659 = smul.addr %s3658, 32
          %s3660 = scalar_lea.vmem [#allocation10], %s3659
          %3661 = dma.done %s3657, 512
        $region80: #{tpu_custom_call.1} parent=71 // pred_fallthru
          _
        // Predicated region
        $region81: #{tpu_custom_call.1} parent=71 // pred_check
          %p3662 = pneg %p239
        $region82: #{tpu_custom_call.1} parent=71 // pred_check_branch
          %3664 = sbr.rel (%p3662) target = $region84
        $region83: #{tpu_custom_call.1} parent=71 // pred_region
          %s3665 = sand.u32 %s31, 1
          %s3666 = scalar_lea.sflag [#allocation11], %s3665
          %s3667 = sand.u32 %s224, 1
          %s3668 = smul.addr %s3667, 32
          %s3669 = scalar_lea.vmem [#allocation12], %s3668
          %3670 = dma.done %s3666, 512
        $region84: #{tpu_custom_call.1} parent=71 // pred_fallthru
          _
      $region72: #{tpu_custom_call.1} parent=5 // pred_fallthru
        _
    $region6: #{tpu_custom_call.1} parent=1 // loop_footer
      %s29 = sadd.s32 1, %s25
    $region7: #{tpu_custom_call.1} parent=1 // loop_footer_branch
      %24 = sbr.rel target = $region3
    $region8: #{tpu_custom_call.1} parent=1 // loop_exit
      _
    %3671 = vsyncpa [#allocation4], 1
    %s3672 = scalar_lea.sflag [#allocation4], 1
    %3673 = vsyncpa %s3672, 1
    %3674 = vsyncpa [#allocation7], 1
    %s3675 = scalar_lea.sflag [#allocation7], 1
    %3676 = vsyncpa %s3675, 1
    %3677 = vsyncpa [#allocation5], 1
    %s3678 = scalar_lea.sflag [#allocation5], 1
    %3679 = vsyncpa %s3678, 1
    %3680 = vsyncpa [#allocation11], 1
    %s3681 = scalar_lea.sflag [#allocation11], 1
    %3682 = vsyncpa %s3681, 1

</llo_original>
